<compile_context>
chip_gen: v7x
topology: tpu7x:2x2x1
jax: 0.10.0
libtpu: 0.0.40
codegen_flags: <defaults>
</compile_context>

<pallas_src>
import functools

import numpy as np
import jax
import jax.numpy as jnp
from jax.experimental import pallas as pl
from jax.experimental.pallas import tpu as pltpu


_VMEM_LIMIT = 32 * 1024 * 1024  # explicit scoped-VMEM budget (safe on v5e/v6e/v7x)


# ------------- fused stage: [conv3x3 + BN + ReLU] x N + maxpool2x2 -------------
def _stage_kernel(*refs, H, W, n_convs, conv_slots):
    """One batch element per grid step.

    refs = (x_ref, w_0..w_{n-1}, shift_0.., o_ref, scratch...)
      w_i     : (9*Cin_i, Cout_i) bf16  (BN scale pre-folded; (27, 64) for the
                pre-im2col'd first conv)
      shift_i : (1, Cout_i) f32   folded BN shift (+ conv bias)
    conv_slots[i] is None for the pre-im2col'd first conv, else the index of
    that conv's halo-pad buffer in the scratch tuple.
    """
    x_ref = refs[0]
    w_refs = refs[1:1 + n_convs]
    sh_refs = refs[1 + n_convs:1 + 2 * n_convs]
    o_ref = refs[1 + 2 * n_convs]
    scratch = refs[2 + 2 * n_convs:]

    # Zero each pad buffer ONCE per grid step: the interior is fully rewritten
    # by every conv that uses it, so the halo ring stays zero across convs.
    for s in sorted({slot for slot in conv_slots if slot is not None}):
        scratch[s][...] = jnp.zeros_like(scratch[s])

    act = None  # current activation, (H, W, C) f32
    for i in range(n_convs):
        cout = w_refs[i].shape[-1]
        if conv_slots[i] is None:
            # First conv of the network: input already im2col'd (K = 27) ->
            # a single MXU matmul, no 3-lane VMEM waste.
            lhs = x_ref[0].reshape(H * W, x_ref.shape[-1]).astype(jnp.bfloat16)
            acc = jnp.dot(lhs, w_refs[i][...], preferred_element_type=jnp.float32)
        else:
            pad_ref = scratch[conv_slots[i]]                 # (H+2, W+2, Cin) f32
            cin = pad_ref.shape[-1]
            src = x_ref[0] if act is None else act
            # Write the interior; the halo ring is already zero.
            pad_ref[pl.ds(1, H), pl.ds(1, W), :] = src
            # 9 shifted taps, each a K=Cin MXU matmul accumulated in f32 vregs.
            # (No (H*W, 9*Cin) im2col scratch: saves VMEM + store/load traffic.)
            acc = None
            for dy in range(3):
                for dx in range(3):
                    t = dy * 3 + dx
                    tap = pad_ref[pl.ds(dy, H), pl.ds(dx, W), :].reshape(H * W, cin)
                    part = jnp.dot(tap.astype(jnp.bfloat16),
                                   w_refs[i][pl.ds(t * cin, cin), :],
                                   preferred_element_type=jnp.float32)
                    acc = part if acc is None else acc + part
        # Folded BatchNorm shift (scale already in the weights) + ReLU, in f32.
        y = jnp.maximum(acc + sh_refs[i][...], 0.0)
        act = y.reshape(H, W, cout)

    # Fused MaxPool2d(2, 2) epilogue: avoids a full-resolution HBM round trip.
    C = act.shape[-1]
    p = act.reshape(H // 2, 2, W // 2, 2, C)
    o_ref[0] = jnp.max(jnp.max(p, axis=3), axis=1)


def _run_stage(x, convs, *, im2col_first):
    B, H, W, cin0 = x.shape
    n = len(convs)
    weights = [c[0] for c in convs]
    shifts = [c[1] for c in convs]
    cins = [wt.shape[0] // 9 for wt in weights]
    cout = weights[-1].shape[1]

    # VMEM scratch: one halo-pad buffer per distinct conv input channel count.
    scratch_shapes = []
    conv_slots = []
    slot_by_cin = {}
    for i, cin in enumerate(cins):
        if i == 0 and im2col_first:
            conv_slots.append(None)
            continue
        if cin not in slot_by_cin:
            slot_by_cin[cin] = len(scratch_shapes)
            scratch_shapes.append(pltpu.VMEM((H + 2, W + 2, cin), jnp.float32))
        conv_slots.append(slot_by_cin[cin])

    in_specs = [pl.BlockSpec((1, H, W, cin0), lambda b: (b, 0, 0, 0))]
    for wt in weights:
        in_specs.append(pl.BlockSpec(wt.shape, lambda b: (0, 0)))
    for s in shifts:
        in_specs.append(pl.BlockSpec(s.shape, lambda b: (0, 0)))

    kernel = functools.partial(_stage_kernel, H=H, W=W, n_convs=n,
                               conv_slots=tuple(conv_slots))
    return pl.pallas_call(
        kernel,
        out_shape=jax.ShapeDtypeStruct((B, H // 2, W // 2, cout), jnp.float32),
        grid=(B,),
        in_specs=in_specs,
        out_specs=pl.BlockSpec((1, H // 2, W // 2, cout), lambda b: (b, 0, 0, 0)),
        scratch_shapes=scratch_shapes,
        compiler_params=pltpu.CompilerParams(
            dimension_semantics=("parallel",),
            vmem_limit_bytes=_VMEM_LIMIT),
    )(x, *weights, *shifts)


# --------- fused head: 3 x (conv1x1 -> bilinear up -> sigmoid) + fusion ---------
def _head_kernel(scal_ref, x1_ref, x2_ref, x3_ref,
                 b1_ref, a1_ref, b2_ref, a2_ref, b3_ref, a3_ref,
                 o1_ref, o2_ref, o3_ref, of_ref, *, H, W):
    """All three decoders + weighted fusion for one batch element.

    scal_ref (SMEM f32[6]) = [bias1, bias2, bias3, w0, w1, w2]
    b*_ref : (Wf*C, W) bf16  1x1-conv weights folded into the width bilinear matrix
    a*_ref : (H, Hf)   bf16  height bilinear matrix (align_corners=True)
    Since bilinear rows sum to 1, the conv bias commutes with the upsample.
    """
    def dec(feat_ref, bcomb_ref, ah_ref, bias):
        f = feat_ref[0]                                      # (Hf, Wf, C) f32
        hf = f.shape[0]
        fr = f.reshape(hf, -1).astype(jnp.bfloat16)          # (Hf, Wf*C)
        t = jnp.dot(fr, bcomb_ref[...],
                    preferred_element_type=jnp.float32)      # (Hf, W)   conv1x1 + W-upsample
        up = jnp.dot(ah_ref[...], t.astype(jnp.bfloat16),
                     preferred_element_type=jnp.float32)     # (H, W)    H-upsample
        return jax.nn.sigmoid(up + bias)                     # sigmoid in f32

    y1 = dec(x1_ref, b1_ref, a1_ref, scal_ref[0])
    y2 = dec(x2_ref, b2_ref, a2_ref, scal_ref[1])
    y3 = dec(x3_ref, b3_ref, a3_ref, scal_ref[2])
    o1_ref[0] = y1
    o2_ref[0] = y2
    o3_ref[0] = y3
    of_ref[0] = scal_ref[3] * y1 + scal_ref[4] * y2 + scal_ref[5] * y3


def _bilinear_matrix(n_in, n_out):
    # align_corners=True: src = i * (n_in - 1) / (n_out - 1)
    i = np.arange(n_out)
    src = i * (n_in - 1) / max(n_out - 1, 1)
    lo = np.clip(np.floor(src).astype(np.int64), 0, max(n_in - 2, 0))
    frac = src - lo
    A = np.zeros((n_out, n_in), np.float32)
    A[i, lo] = 1.0 - frac
    if n_in > 1:
        A[i, lo + 1] = frac
    return jnp.asarray(A)


def _run_head(feats, dec_params, fuse_w, out_hw):
    B = feats[0].shape[0]
    H, W = out_hw
    mats = []
    biases = []
    for feat, (w1x1, bias) in zip(feats, dec_params):
        _, Hf, Wf, C = feat.shape
        ah = _bilinear_matrix(Hf, H)                         # (H, Hf)
        aw = _bilinear_matrix(Wf, W)                         # (W, Wf)
        # Fold the 1x1-conv weights into the width-upsample matrix so the whole
        # decoder is 2 MXU matmuls (no VPU/XLU channel reduction):
        #   Bcomb[wf*C + c, wo] = w1x1[c] * Aw[wo, wf]
        bcomb = (aw.T[:, None, :] * w1x1[None, :, None]).reshape(Wf * C, W)
        mats.append((bcomb.astype(jnp.bfloat16), ah.astype(jnp.bfloat16)))
        biases.append(bias)
    # Runtime scalars via SMEM -> no recompile when fusion weights/biases change.
    scal = jnp.concatenate([jnp.stack(biases),
                            jnp.asarray(fuse_w, jnp.float32)])      # (6,) f32

    in_specs = [pl.BlockSpec(memory_space=pltpu.MemorySpace.SMEM)]
    for feat in feats:
        shp = feat.shape
        in_specs.append(pl.BlockSpec((1,) + shp[1:], lambda b: (b, 0, 0, 0)))
    for bcomb, ah in mats:
        in_specs.append(pl.BlockSpec(bcomb.shape, lambda b: (0, 0)))
        in_specs.append(pl.BlockSpec(ah.shape, lambda b: (0, 0)))

    out_shape = tuple(jax.ShapeDtypeStruct((B, H, W), jnp.float32) for _ in range(4))
    out_specs = tuple(pl.BlockSpec((1, H, W), lambda b: (b, 0, 0)) for _ in range(4))

    args = [scal] + list(feats)
    for bcomb, ah in mats:
        args += [bcomb, ah]
    return pl.pallas_call(
        functools.partial(_head_kernel, H=H, W=W),
        out_shape=out_shape,
        grid=(B,),
        in_specs=in_specs,
        out_specs=out_specs,
        compiler_params=pltpu.CompilerParams(
            dimension_semantics=("parallel",),
            vmem_limit_bytes=_VMEM_LIMIT),
    )(*args)


# ------------------------------- Parameters -------------------------------
def _conv_bn_params(key, cin, cout, eps=1e-5):
    kw, kb, kg, kbe, km, kv = jax.random.split(key, 6)
    std = (2.0 / (9 * cin)) ** 0.5
    w = jax.random.normal(kw, (3, 3, cin, cout), jnp.float32) * std
    b = jax.random.normal(kb, (cout,), jnp.float32) * 0.01
    gamma = 1.0 + 0.1 * jax.random.normal(kg, (cout,), jnp.float32)
    beta = 0.05 * jax.random.normal(kbe, (cout,), jnp.float32)
    mean = 0.01 * jax.random.normal(km, (cout,), jnp.float32)
    var = 1.0 + 0.1 * jax.random.uniform(kv, (cout,), jnp.float32)
    scale = gamma * jax.lax.rsqrt(var + eps)
    shift = beta + (b - mean) * scale
    # Weights pre-flattened (tap-major, channel-minor), eval-mode BN scale folded
    # in (conv-BN folding), pre-cast to bf16 (MXU operands; accumulation stays f32).
    w_flat = (w.reshape(9 * cin, cout) * scale[None, :]).astype(jnp.bfloat16)
    return w_flat, shift.reshape(1, cout)


def _decoder_params(key, cin):
    kw, kb = jax.random.split(key)
    w = jax.random.normal(kw, (cin,), jnp.float32) * (1.0 / cin) ** 0.5
    b = jax.random.normal(kb, (), jnp.float32) * 0.01
    return w, b


def init_params(key):
    channel_plan = {
        "stage1": [(3, 64), (64, 64)],
        "stage2": [(64, 128), (128, 128)],
        "stage3": [(128, 256), (256, 256), (256, 256)],
    }
    params = {}
    keys = jax.random.split(key, 16)
    ki = 0
    for name, convs in channel_plan.items():
        ps = []
        for cin, cout in convs:
            ps.append(_conv_bn_params(keys[ki], cin, cout)); ki += 1
        params[name] = ps
    params["dec1"] = _decoder_params(keys[ki], 64); ki += 1
    params["dec2"] = _decoder_params(keys[ki], 128); ki += 1
    params["dec3"] = _decoder_params(keys[ki], 256); ki += 1
    return params


# ------------------------------- Forward ----------------------------------
def vgg_mil_forward(x_nchw, params, w=(0.3, 0.3, 0.4)):
    B, _, H, W = x_nchw.shape
    x = jnp.transpose(x_nchw, (0, 2, 3, 1)).astype(jnp.float32)     # NCHW -> NHWC

    # Special-case the Cin=3 first conv: im2col in the wrapper so the kernel's
    # first matmul has K=27 (no 3-lane VMEM waste, no K=3 MXU matmuls).  Tap
    # order matches the (3,3,Cin,Cout) -> (9*Cin,Cout) weight flattening.
    xp = jnp.pad(x, ((0, 0), (1, 1), (1, 1), (0, 0)))
    x27 = jnp.concatenate(
        [xp[:, dy:dy + H, dx:dx + W, :] for dy in range(3) for dx in range(3)],
        axis=-1)                                                    # (B, H, W, 27)

    x1f = _run_stage(x27, params["stage1"], im2col_first=True)      # (B, H/2, W/2, 64)
    x2f = _run_stage(x1f, params["stage2"], im2col_first=False)     # (B, H/4, W/4, 128)
    x3f = _run_stage(x2f, params["stage3"], im2col_first=False)     # (B, H/8, W/8, 256)

    x1, x2, x3, xf = _run_head(
        (x1f, x2f, x3f),
        (params["dec1"], params["dec2"], params["dec3"]),
        w, out_hw=(H, W))
    # F.interpolate(xi, size=x1.size()[2:], align_corners=True) is identity here.

    # Back to PyTorch NCHW with a singleton channel.
    x1o = x1[:, None, :, :]
    x2o = x2[:, None, :, :]
    x3o = x3[:, None, :, :]
    xo = xf[:, None, :, :]
    pixel_x = [xo, x1o, x2o, x3o]
    return x1o, x2o, x3o, xo, pixel_x


# --------------------------------- Main ------------------------------------
if __name__ == "__main__":
    key = jax.random.PRNGKey(0)
    kx, kp = jax.random.split(key)
    x = jax.random.normal(kx, (2, 3, 16, 16), jnp.float32)   # NCHW, like PyTorch
    params = init_params(kp)

    outs = vgg_mil_forward(x, params)
    outs = jax.block_until_ready(outs)

    x1o, x2o, x3o, xo, pixel_x = outs
    assert x1o.shape == (2, 1, 16, 16)
    assert x2o.shape == (2, 1, 16, 16)
    assert x3o.shape == (2, 1, 16, 16)
    assert xo.shape == (2, 1, 16, 16)
    assert len(pixel_x) == 4
    print("KERNEL_OK")
</pallas_src>

<mosaic_0001>
module attributes {stable_mosaic.version = 11 : i64} {
  func.func @_stage_kernel(%arg0: i32, %arg1: memref<1x16x16x27xf32, #tpu.memory_space<vmem>>, %arg2: memref<27x64xbf16, #tpu.memory_space<vmem>>, %arg3: memref<576x64xbf16, #tpu.memory_space<vmem>>, %arg4: memref<1x64xf32, #tpu.memory_space<vmem>>, %arg5: memref<1x64xf32, #tpu.memory_space<vmem>>, %arg6: memref<1x8x8x64xf32, #tpu.memory_space<vmem>>, %arg7: memref<18x18x64xf32, #tpu.memory_space<vmem>>) attributes {dimension_semantics = [#tpu.dimension_semantics<parallel>], iteration_bounds = array<i64: 2>, scalar_prefetch = 0 : i64, scratch_operands = 1 : i64, tpu.core_type = #tpu.core_type<tc>, window_params = [{transform_indices = @transform_0, window_bounds = array<i64: 1, 16, 16, 27>}, {pipeline_mode = #tpu.pipeline_mode<synchronous>, transform_indices = @transform_1, window_bounds = array<i64: 27, 64>}, {pipeline_mode = #tpu.pipeline_mode<synchronous>, transform_indices = @transform_2, window_bounds = array<i64: 576, 64>}, {pipeline_mode = #tpu.pipeline_mode<synchronous>, transform_indices = @transform_3, window_bounds = array<i64: 1, 64>}, {pipeline_mode = #tpu.pipeline_mode<synchronous>, transform_indices = @transform_4, window_bounds = array<i64: 1, 64>}, {transform_indices = @transform_5, window_bounds = array<i64: 1, 8, 8, 64>}]} {
    %cst = arith.constant 0.000000e+00 : f32
    %0 = vector.broadcast %cst : f32 to vector<18x18x64xf32>
    %c0 = arith.constant 0 : index
    %c0_0 = arith.constant 0 : index
    %c0_1 = arith.constant 0 : index
    %1 = vector.load %arg7[%c0, %c0_0, %c0_1] : memref<18x18x64xf32, #tpu.memory_space<vmem>>, vector<18x18x64xf32>
    tpu.vector_store %arg7[%c0, %c0_0, %c0_1], %0 {strides = array<i32>} : memref<18x18x64xf32, #tpu.memory_space<vmem>>, vector<18x18x64xf32>,
    %c0_2 = arith.constant 0 : index
    %c0_3 = arith.constant 0 : index
    %c0_4 = arith.constant 0 : index
    %c0_5 = arith.constant 0 : index
    %2 = vector.load %arg1[%c0_2, %c0_3, %c0_4, %c0_5] : memref<1x16x16x27xf32, #tpu.memory_space<vmem>>, vector<1x16x16x27xf32>
    %3 = vector.shape_cast %2 : vector<1x16x16x27xf32> to vector<16x16x27xf32>
    %4 = vector.shape_cast %3 : vector<16x16x27xf32> to vector<256x27xf32>
    %5 = arith.truncf %4 : vector<256x27xf32> to vector<256x27xbf16>
    %c0_6 = arith.constant 0 : index
    %c0_7 = arith.constant 0 : index
    %6 = vector.load %arg2[%c0_6, %c0_7] : memref<27x64xbf16, #tpu.memory_space<vmem>>, vector<27x64xbf16>
    %cst_8 = arith.constant dense<0.000000e+00> : vector<256x64xf32>
    %7 = tpu.matmul %5, %6, %cst_8 {dimension_numbers = #tpu.dot_dimension_numbers<[1], [0], [0], [1], [0, 0, 1, 1], [], []>} : vector<256x27xbf16>, vector<27x64xbf16>, vector<256x64xf32> -> vector<256x64xf32>
    %c0_9 = arith.constant 0 : index
    %c0_10 = arith.constant 0 : index
    %8 = vector.load %arg4[%c0_9, %c0_10] : memref<1x64xf32, #tpu.memory_space<vmem>>, vector<1x64xf32>
    %9 = vector.broadcast %8 : vector<1x64xf32> to vector<256x64xf32>
    %10 = arith.addf %7, %9 : vector<256x64xf32>
    %cst_11 = arith.constant 0.000000e+00 : f32
    %11 = vector.broadcast %cst_11 : f32 to vector<256x64xf32>
    %12 = arith.maximumf %10, %11 : vector<256x64xf32>
    %13 = vector.shape_cast %12 : vector<256x64xf32> to vector<16x16x64xf32>
    %c1 = arith.constant 1 : index
    %c1_12 = arith.constant 1 : index
    %c0_13 = arith.constant 0 : index
    %14 = vector.load %arg7[%c1, %c1_12, %c0_13] : memref<18x18x64xf32, #tpu.memory_space<vmem>>, vector<16x16x64xf32>
    tpu.vector_store %arg7[%c1, %c1_12, %c0_13], %13 {strides = array<i32>} : memref<18x18x64xf32, #tpu.memory_space<vmem>>, vector<16x16x64xf32>,
    %c0_14 = arith.constant 0 : index
    %c0_15 = arith.constant 0 : index
    %c0_16 = arith.constant 0 : index
    %15 = vector.load %arg7[%c0_14, %c0_15, %c0_16] : memref<18x18x64xf32, #tpu.memory_space<vmem>>, vector<16x16x64xf32>
    %16 = vector.shape_cast %15 : vector<16x16x64xf32> to vector<256x64xf32>
    %17 = arith.truncf %16 : vector<256x64xf32> to vector<256x64xbf16>
    %c0_17 = arith.constant 0 : index
    %c0_18 = arith.constant 0 : index
    %18 = vector.load %arg3[%c0_17, %c0_18] : memref<576x64xbf16, #tpu.memory_space<vmem>>, vector<64x64xbf16>
    %cst_19 = arith.constant dense<0.000000e+00> : vector<256x64xf32>
    %19 = tpu.matmul %17, %18, %cst_19 {dimension_numbers = #tpu.dot_dimension_numbers<[1], [0], [0], [1], [0, 0, 1, 1], [], []>} : vector<256x64xbf16>, vector<64x64xbf16>, vector<256x64xf32> -> vector<256x64xf32>
    %c0_20 = arith.constant 0 : index
    %c1_21 = arith.constant 1 : index
    %c0_22 = arith.constant 0 : index
    %20 = vector.load %arg7[%c0_20, %c1_21, %c0_22] : memref<18x18x64xf32, #tpu.memory_space<vmem>>, vector<16x16x64xf32>
    %21 = vector.shape_cast %20 : vector<16x16x64xf32> to vector<256x64xf32>
    %22 = arith.truncf %21 : vector<256x64xf32> to vector<256x64xbf16>
    %c64 = arith.constant 64 : index
    %c0_23 = arith.constant 0 : index
    %23 = vector.load %arg3[%c64, %c0_23] : memref<576x64xbf16, #tpu.memory_space<vmem>>, vector<64x64xbf16>
    %cst_24 = arith.constant dense<0.000000e+00> : vector<256x64xf32>
    %24 = tpu.matmul %22, %23, %cst_24 {dimension_numbers = #tpu.dot_dimension_numbers<[1], [0], [0], [1], [0, 0, 1, 1], [], []>} : vector<256x64xbf16>, vector<64x64xbf16>, vector<256x64xf32> -> vector<256x64xf32>
    %25 = arith.addf %19, %24 : vector<256x64xf32>
    %c0_25 = arith.constant 0 : index
    %c2 = arith.constant 2 : index
    %c0_26 = arith.constant 0 : index
    %26 = vector.load %arg7[%c0_25, %c2, %c0_26] : memref<18x18x64xf32, #tpu.memory_space<vmem>>, vector<16x16x64xf32>
    %27 = vector.shape_cast %26 : vector<16x16x64xf32> to vector<256x64xf32>
    %28 = arith.truncf %27 : vector<256x64xf32> to vector<256x64xbf16>
    %c128 = arith.constant 128 : index
    %c0_27 = arith.constant 0 : index
    %29 = vector.load %arg3[%c128, %c0_27] : memref<576x64xbf16, #tpu.memory_space<vmem>>, vector<64x64xbf16>
    %cst_28 = arith.constant dense<0.000000e+00> : vector<256x64xf32>
    %30 = tpu.matmul %28, %29, %cst_28 {dimension_numbers = #tpu.dot_dimension_numbers<[1], [0], [0], [1], [0, 0, 1, 1], [], []>} : vector<256x64xbf16>, vector<64x64xbf16>, vector<256x64xf32> -> vector<256x64xf32>
    %31 = arith.addf %25, %30 : vector<256x64xf32>
    %c1_29 = arith.constant 1 : index
    %c0_30 = arith.constant 0 : index
    %c0_31 = arith.constant 0 : index
    %32 = vector.load %arg7[%c1_29, %c0_30, %c0_31] : memref<18x18x64xf32, #tpu.memory_space<vmem>>, vector<16x16x64xf32>
    %33 = vector.shape_cast %32 : vector<16x16x64xf32> to vector<256x64xf32>
    %34 = arith.truncf %33 : vector<256x64xf32> to vector<256x64xbf16>
    %c192 = arith.constant 192 : index
    %c0_32 = arith.constant 0 : index
    %35 = vector.load %arg3[%c192, %c0_32] : memref<576x64xbf16, #tpu.memory_space<vmem>>, vector<64x64xbf16>
    %cst_33 = arith.constant dense<0.000000e+00> : vector<256x64xf32>
    %36 = tpu.matmul %34, %35, %cst_33 {dimension_numbers = #tpu.dot_dimension_numbers<[1], [0], [0], [1], [0, 0, 1, 1], [], []>} : vector<256x64xbf16>, vector<64x64xbf16>, vector<256x64xf32> -> vector<256x64xf32>
    %37 = arith.addf %31, %36 : vector<256x64xf32>
    %c1_34 = arith.constant 1 : index
    %c1_35 = arith.constant 1 : index
    %c0_36 = arith.constant 0 : index
    %38 = vector.load %arg7[%c1_34, %c1_35, %c0_36] : memref<18x18x64xf32, #tpu.memory_space<vmem>>, vector<16x16x64xf32>
    %39 = vector.shape_cast %38 : vector<16x16x64xf32> to vector<256x64xf32>
    %40 = arith.truncf %39 : vector<256x64xf32> to vector<256x64xbf16>
    %c256 = arith.constant 256 : index
    %c0_37 = arith.constant 0 : index
    %41 = vector.load %arg3[%c256, %c0_37] : memref<576x64xbf16, #tpu.memory_space<vmem>>, vector<64x64xbf16>
    %cst_38 = arith.constant dense<0.000000e+00> : vector<256x64xf32>
    %42 = tpu.matmul %40, %41, %cst_38 {dimension_numbers = #tpu.dot_dimension_numbers<[1], [0], [0], [1], [0, 0, 1, 1], [], []>} : vector<256x64xbf16>, vector<64x64xbf16>, vector<256x64xf32> -> vector<256x64xf32>
    %43 = arith.addf %37, %42 : vector<256x64xf32>
    %c1_39 = arith.constant 1 : index
    %c2_40 = arith.constant 2 : index
    %c0_41 = arith.constant 0 : index
    %44 = vector.load %arg7[%c1_39, %c2_40, %c0_41] : memref<18x18x64xf32, #tpu.memory_space<vmem>>, vector<16x16x64xf32>
    %45 = vector.shape_cast %44 : vector<16x16x64xf32> to vector<256x64xf32>
    %46 = arith.truncf %45 : vector<256x64xf32> to vector<256x64xbf16>
    %c320 = arith.constant 320 : index
    %c0_42 = arith.constant 0 : index
    %47 = vector.load %arg3[%c320, %c0_42] : memref<576x64xbf16, #tpu.memory_space<vmem>>, vector<64x64xbf16>
    %cst_43 = arith.constant dense<0.000000e+00> : vector<256x64xf32>
    %48 = tpu.matmul %46, %47, %cst_43 {dimension_numbers = #tpu.dot_dimension_numbers<[1], [0], [0], [1], [0, 0, 1, 1], [], []>} : vector<256x64xbf16>, vector<64x64xbf16>, vector<256x64xf32> -> vector<256x64xf32>
    %49 = arith.addf %43, %48 : vector<256x64xf32>
    %c2_44 = arith.constant 2 : index
    %c0_45 = arith.constant 0 : index
    %c0_46 = arith.constant 0 : index
    %50 = vector.load %arg7[%c2_44, %c0_45, %c0_46] : memref<18x18x64xf32, #tpu.memory_space<vmem>>, vector<16x16x64xf32>
    %51 = vector.shape_cast %50 : vector<16x16x64xf32> to vector<256x64xf32>
    %52 = arith.truncf %51 : vector<256x64xf32> to vector<256x64xbf16>
    %c384 = arith.constant 384 : index
    %c0_47 = arith.constant 0 : index
    %53 = vector.load %arg3[%c384, %c0_47] : memref<576x64xbf16, #tpu.memory_space<vmem>>, vector<64x64xbf16>
    %cst_48 = arith.constant dense<0.000000e+00> : vector<256x64xf32>
    %54 = tpu.matmul %52, %53, %cst_48 {dimension_numbers = #tpu.dot_dimension_numbers<[1], [0], [0], [1], [0, 0, 1, 1], [], []>} : vector<256x64xbf16>, vector<64x64xbf16>, vector<256x64xf32> -> vector<256x64xf32>
    %55 = arith.addf %49, %54 : vector<256x64xf32>
    %c2_49 = arith.constant 2 : index
    %c1_50 = arith.constant 1 : index
    %c0_51 = arith.constant 0 : index
    %56 = vector.load %arg7[%c2_49, %c1_50, %c0_51] : memref<18x18x64xf32, #tpu.memory_space<vmem>>, vector<16x16x64xf32>
    %57 = vector.shape_cast %56 : vector<16x16x64xf32> to vector<256x64xf32>
    %58 = arith.truncf %57 : vector<256x64xf32> to vector<256x64xbf16>
    %c448 = arith.constant 448 : index
    %c0_52 = arith.constant 0 : index
    %59 = vector.load %arg3[%c448, %c0_52] : memref<576x64xbf16, #tpu.memory_space<vmem>>, vector<64x64xbf16>
    %cst_53 = arith.constant dense<0.000000e+00> : vector<256x64xf32>
    %60 = tpu.matmul %58, %59, %cst_53 {dimension_numbers = #tpu.dot_dimension_numbers<[1], [0], [0], [1], [0, 0, 1, 1], [], []>} : vector<256x64xbf16>, vector<64x64xbf16>, vector<256x64xf32> -> vector<256x64xf32>
    %61 = arith.addf %55, %60 : vector<256x64xf32>
    %c2_54 = arith.constant 2 : index
    %c2_55 = arith.constant 2 : index
    %c0_56 = arith.constant 0 : index
    %62 = vector.load %arg7[%c2_54, %c2_55, %c0_56] : memref<18x18x64xf32, #tpu.memory_space<vmem>>, vector<16x16x64xf32>
    %63 = vector.shape_cast %62 : vector<16x16x64xf32> to vector<256x64xf32>
    %64 = arith.truncf %63 : vector<256x64xf32> to vector<256x64xbf16>
    %c512 = arith.constant 512 : index
    %c0_57 = arith.constant 0 : index
    %65 = vector.load %arg3[%c512, %c0_57] : memref<576x64xbf16, #tpu.memory_space<vmem>>, vector<64x64xbf16>
    %cst_58 = arith.constant dense<0.000000e+00> : vector<256x64xf32>
    %66 = tpu.matmul %64, %65, %cst_58 {dimension_numbers = #tpu.dot_dimension_numbers<[1], [0], [0], [1], [0, 0, 1, 1], [], []>} : vector<256x64xbf16>, vector<64x64xbf16>, vector<256x64xf32> -> vector<256x64xf32>
    %67 = arith.addf %61, %66 : vector<256x64xf32>
    %c0_59 = arith.constant 0 : index
    %c0_60 = arith.constant 0 : index
    %68 = vector.load %arg5[%c0_59, %c0_60] : memref<1x64xf32, #tpu.memory_space<vmem>>, vector<1x64xf32>
    %69 = vector.broadcast %68 : vector<1x64xf32> to vector<256x64xf32>
    %70 = arith.addf %67, %69 : vector<256x64xf32>
    %cst_61 = arith.constant 0.000000e+00 : f32
    %71 = vector.broadcast %cst_61 : f32 to vector<256x64xf32>
    %72 = arith.maximumf %70, %71 : vector<256x64xf32>
    %73 = vector.shape_cast %72 : vector<256x64xf32> to vector<16x16x64xf32>
    %74 = vector.shape_cast %73 : vector<16x16x64xf32> to vector<8x2x8x2x64xf32>
    %cst_62 = arith.constant dense<0xFF800000> : vector<8x2x8x64xf32>
    %75 = vector.multi_reduction <maximumf>, %74, %cst_62 [3] : vector<8x2x8x2x64xf32> to vector<8x2x8x64xf32>
    %cst_63 = arith.constant dense<0xFF800000> : vector<8x8x64xf32>
    %76 = vector.multi_reduction <maximumf>, %75, %cst_63 [1] : vector<8x2x8x64xf32> to vector<8x8x64xf32>
    %c0_64 = arith.constant 0 : index
    %c0_65 = arith.constant 0 : index
    %c0_66 = arith.constant 0 : index
    %c0_67 = arith.constant 0 : index
    %77 = vector.load %arg6[%c0_64, %c0_65, %c0_66, %c0_67] : memref<1x8x8x64xf32, #tpu.memory_space<vmem>>, vector<1x8x8x64xf32>
    %78 = vector.shape_cast %77 : vector<1x8x8x64xf32> to vector<8x8x64xf32>
    %79 = vector.shape_cast %76 : vector<8x8x64xf32> to vector<1x8x8x64xf32>
    tpu.vector_store %arg6[%c0_64, %c0_65, %c0_66, %c0_67], %79 {strides = array<i32>} : memref<1x8x8x64xf32, #tpu.memory_space<vmem>>, vector<1x8x8x64xf32>,
    return
  }
  func.func @transform_0(%arg0: i32) -> (i32, i32, i32, i32) {
    %c0_i32 = arith.constant 0 : i32
    %c0_i32_0 = arith.constant 0 : i32
    %c0_i32_1 = arith.constant 0 : i32
    %c0_i32_2 = arith.constant 0 : i32
    return %arg0, %c0_i32, %c0_i32_0, %c0_i32_1 : i32, i32, i32, i32
  }
  func.func @transform_1(%arg0: i32) -> (i32, i32) {
    %c0_i32 = arith.constant 0 : i32
    %c0_i32_0 = arith.constant 0 : i32
    %c0_i32_1 = arith.constant 0 : i32
    return %c0_i32, %c0_i32_0 : i32, i32
  }
  func.func @transform_2(%arg0: i32) -> (i32, i32) {
    %c0_i32 = arith.constant 0 : i32
    %c0_i32_0 = arith.constant 0 : i32
    %c0_i32_1 = arith.constant 0 : i32
    return %c0_i32, %c0_i32_0 : i32, i32
  }
  func.func @transform_3(%arg0: i32) -> (i32, i32) {
    %c0_i32 = arith.constant 0 : i32
    %c0_i32_0 = arith.constant 0 : i32
    %c0_i32_1 = arith.constant 0 : i32
    return %c0_i32, %c0_i32_0 : i32, i32
  }
  func.func @transform_4(%arg0: i32) -> (i32, i32) {
    %c0_i32 = arith.constant 0 : i32
    %c0_i32_0 = arith.constant 0 : i32
    %c0_i32_1 = arith.constant 0 : i32
    return %c0_i32, %c0_i32_0 : i32, i32
  }
  func.func @transform_5(%arg0: i32) -> (i32, i32, i32, i32) {
    %c0_i32 = arith.constant 0 : i32
    %c0_i32_0 = arith.constant 0 : i32
    %c0_i32_1 = arith.constant 0 : i32
    %c0_i32_2 = arith.constant 0 : i32
    return %arg0, %c0_i32, %c0_i32_0, %c0_i32_1 : i32, i32, i32, i32
  }
}

</mosaic_0001>

<llo_original>
// kernel: tpu_custom_call.1
$region0: #{tpu_custom_call.1}
  #allocation0 [shape = 'u32[]', space=smem, size = 0x4, offset = 0x4, fixed_abs, tag = 'smem constant byte address 0x4 - core index']
  #allocation1 [shape = 'u32[144,128]{1,0:T(1,128)}', space=vmem, size = 0x12000, scoped, tag = 'internal scratch']
  #allocation2 [shape = 'f32[18,18,64]{2,1,0:T(8,128)}', space=vmem, size = 0x36000, scoped, tag = 'scratch operand']
  %s0 = inlined_call_operand.hbm [shape: f32[2,16,16,27], index: 0, kind: input, shape index: {}]
  %s1 = inlined_call_operand.vmem [shape: bf16[27,64], index: 1, kind: input, shape index: {}]
  %s2 = inlined_call_operand.vmem [shape: bf16[576,64], index: 2, kind: input, shape index: {}]
  %s3 = inlined_call_operand.vmem [shape: f32[1,64], index: 3, kind: input, shape index: {}]
  %s4 = inlined_call_operand.vmem [shape: f32[1,64], index: 4, kind: input, shape index: {}]
  %s5 = inlined_call_operand.hbm [shape: f32[2,8,8,64], index: 5, kind: output, shape index: {}]
  %s6 = sld [smem:[#allocation0]]
  $region57: #{tpu_custom_call.1} parent=0
    _
  %s8 = ssub.s32 1, %s6
  %s9 = scalar_select 0, %s8, %s6
  $region1: #{tpu_custom_call.1} parent=0
    #allocation3 [shape = 'u8[262144]{0}', space=vmem, size = 0x40000, scoped, tag = 'input window, operand 0']
    #allocation4 [shape = 's32[2]{0}', space=sflag, size = 0x8, scoped, tag = 'scoped memory for tpu_custom_call.1']
    #allocation5 [shape = 's32[2]{0}', space=sflag, size = 0x8, scoped, tag = 'scoped memory for tpu_custom_call.1']
    #allocation6 [shape = 'u8[65536]{0}', space=vmem, size = 0x10000, scoped, tag = 'output window, operand 0']
    %10 = vsyncpa [#allocation4], 0
    %s11 = scalar_lea.sflag [#allocation4], 1
    %12 = vsyncpa %s11, 0
    %13 = vsyncpa [#allocation5], 0
    %s14 = scalar_lea.sflag [#allocation5], 1
    %15 = vsyncpa %s14, 0
    loop: start=0, step=1, limit=4
    $region2: #{tpu_custom_call.1} parent=1 // loop_pre_header
      _
    $region3: #{tpu_custom_call.1} parent=1 // loop_header
      %s17 = sphi 0, %s21
      %p18 = scmp.ge.s32.totalorder %s17, 4
      %s27 = sphi 0, %s29
      %s30 = sphi 0, %s27
      %s31 = sphi 0, %s30
      %s47 = sphi 0, %s31
      %s51 = sphi 0, %s51
      %s53 = sphi 0, %s51
      %s54 = sphi 0, %s53
      %s68 = sphi 0, %s54
      %s72 = sphi 0, %s72
      %s74 = sphi 0, %s72
      %s75 = sphi 0, %s74
      %s89 = sphi 0, %s75
      %s93 = sphi 0, %s93
      %s95 = sphi 0, %s93
      %s96 = sphi 0, %s95
      %s110 = sphi 0, %s96
      %s114 = sphi 0, %s114
      %s116 = sphi 0, %s114
      %s117 = sphi 0, %s116
      %s131 = sphi 0, %s117
      %s137 = sphi 0, %s139
      %s140 = sphi 0, %s137
      %s141 = sphi 0, %s140
      %s157 = sphi 0, %s141
    $region4: #{tpu_custom_call.1} parent=1 // loop_header_branch
      %20 = sbr.rel (%p18) target = $region8
    $region5: #{tpu_custom_call.1} parent=1 // loop_body
      %s22 = ssub.s32 %s17, 1
      %s23 = ssub.s32 %s17, 2
      %s24 = sadd.s32 %s17, 1
      %s25 = ssub.s32 %s17, %s24
      %p26 = scmp.eq.s32.totalorder %s25, 0
      %s28 = sadd.s32 %s27, 1
      %s29 = scalar_select %p26, %s27, %s28
      %p32 = pneg %p26
      %p33 = scmp.eq.s32.totalorder %s17, 1
      %p34 = por %p32, %p33
      %p35 = scmp.ne.s32.totalorder %s27, %s30
      %p36 = scmp.eq.s32.totalorder %s17, 0
      %p37 = por %p35, %p36
      %p38 = scmp.ne.s32.totalorder %s27, %s30
      %p39 = scmp.eq.s32.totalorder %s22, 1
      %p40 = por %p38, %p39
      %p41 = scmp.ne.s32.totalorder %s30, %s31
      %p42 = scmp.eq.s32.totalorder %s22, 0
      %p43 = por %p41, %p42
      %p44 = scmp.ne.s32.totalorder %s30, %s31
      %p45 = scmp.eq.s32.totalorder %s23, 1
      %p46 = por %p44, %p45
      %p48 = scmp.ne.s32.totalorder %s31, %s47
      %p49 = scmp.eq.s32.totalorder %s23, 0
      %p50 = por %p48, %p49
      %s52 = sadd.s32 %s51, 1
      %p55 = scmp.eq.s32.totalorder %s17, 1
      %p56 = scmp.ne.s32.totalorder %s51, %s53
      %p57 = scmp.eq.s32.totalorder %s17, 0
      %p58 = por %p56, %p57
      %p59 = scmp.ne.s32.totalorder %s51, %s53
      %p60 = scmp.eq.s32.totalorder %s22, 1
      %p61 = por %p59, %p60
      %p62 = scmp.ne.s32.totalorder %s53, %s54
      %p63 = scmp.eq.s32.totalorder %s22, 0
      %p64 = por %p62, %p63
      %p65 = scmp.ne.s32.totalorder %s53, %s54
      %p66 = scmp.eq.s32.totalorder %s23, 1
      %p67 = por %p65, %p66
      %p69 = scmp.ne.s32.totalorder %s54, %s68
      %p70 = scmp.eq.s32.totalorder %s23, 0
      %p71 = por %p69, %p70
      %s73 = sadd.s32 %s72, 1
      %p76 = scmp.eq.s32.totalorder %s17, 1
      %p77 = scmp.ne.s32.totalorder %s72, %s74
      %p78 = scmp.eq.s32.totalorder %s17, 0
      %p79 = por %p77, %p78
      %p80 = scmp.ne.s32.totalorder %s72, %s74
      %p81 = scmp.eq.s32.totalorder %s22, 1
      %p82 = por %p80, %p81
      %p83 = scmp.ne.s32.totalorder %s74, %s75
      %p84 = scmp.eq.s32.totalorder %s22, 0
      %p85 = por %p83, %p84
      %p86 = scmp.ne.s32.totalorder %s74, %s75
      %p87 = scmp.eq.s32.totalorder %s23, 1
      %p88 = por %p86, %p87
      %p90 = scmp.ne.s32.totalorder %s75, %s89
      %p91 = scmp.eq.s32.totalorder %s23, 0
      %p92 = por %p90, %p91
      %s94 = sadd.s32 %s93, 1
      %p97 = scmp.eq.s32.totalorder %s17, 1
      %p98 = scmp.ne.s32.totalorder %s93, %s95
      %p99 = scmp.eq.s32.totalorder %s17, 0
      %p100 = por %p98, %p99
      %p101 = scmp.ne.s32.totalorder %s93, %s95
      %p102 = scmp.eq.s32.totalorder %s22, 1
      %p103 = por %p101, %p102
      %p104 = scmp.ne.s32.totalorder %s95, %s96
      %p105 = scmp.eq.s32.totalorder %s22, 0
      %p106 = por %p104, %p105
      %p107 = scmp.ne.s32.totalorder %s95, %s96
      %p108 = scmp.eq.s32.totalorder %s23, 1
      %p109 = por %p107, %p108
      %p111 = scmp.ne.s32.totalorder %s96, %s110
      %p112 = scmp.eq.s32.totalorder %s23, 0
      %p113 = por %p111, %p112
      %s115 = sadd.s32 %s114, 1
      %p118 = scmp.eq.s32.totalorder %s17, 1
      %p119 = scmp.ne.s32.totalorder %s114, %s116
      %p120 = scmp.eq.s32.totalorder %s17, 0
      %p121 = por %p119, %p120
      %p122 = scmp.ne.s32.totalorder %s114, %s116
      %p123 = scmp.eq.s32.totalorder %s22, 1
      %p124 = por %p122, %p123
      %p125 = scmp.ne.s32.totalorder %s116, %s117
      %p126 = scmp.eq.s32.totalorder %s22, 0
      %p127 = por %p125, %p126
      %p128 = scmp.ne.s32.totalorder %s116, %s117
      %p129 = scmp.eq.s32.totalorder %s23, 1
      %p130 = por %p128, %p129
      %p132 = scmp.ne.s32.totalorder %s117, %s131
      %p133 = scmp.eq.s32.totalorder %s23, 0
      %p134 = por %p132, %p133
      %s135 = ssub.s32 %s17, %s24
      %p136 = scmp.eq.s32.totalorder %s135, 0
      %s138 = sadd.s32 %s137, 1
      %s139 = scalar_select %p136, %s137, %s138
      %p142 = pneg %p136
      %p143 = scmp.eq.s32.totalorder %s17, 1
      %p144 = por %p142, %p143
      %p145 = scmp.ne.s32.totalorder %s137, %s140
      %p146 = scmp.eq.s32.totalorder %s17, 0
      %p147 = por %p145, %p146
      %p148 = scmp.ne.s32.totalorder %s137, %s140
      %p149 = scmp.eq.s32.totalorder %s22, 1
      %p150 = por %p148, %p149
      %p151 = scmp.ne.s32.totalorder %s140, %s141
      %p152 = scmp.eq.s32.totalorder %s22, 0
      %p153 = por %p151, %p152
      %p154 = scmp.ne.s32.totalorder %s140, %s141
      %p155 = scmp.eq.s32.totalorder %s23, 1
      %p156 = por %p154, %p155
      %p158 = scmp.ne.s32.totalorder %s141, %s157
      %p159 = scmp.eq.s32.totalorder %s23, 0
      %p160 = por %p158, %p159
      %p161 = scmp.le.s32.totalorder 1, %s17
      %p162 = scmp.lt.s32.totalorder %s17, 3
      %p163 = pnand %p161, %p162
      %p164 = pneg %p163
      // Predicated region
      $region9: #{tpu_custom_call.1} parent=5 // pred_check
        _
      $region10: #{tpu_custom_call.1} parent=5 // pred_check_branch
        %166 = sbr.rel (%p163) target = $region12
      $region11: #{tpu_custom_call.1} parent=5 // pred_region
        %s167 = ssub.s32 %s17, 1
        // Predicated region
        $region13: #{tpu_custom_call.1} parent=11 // pred_check
          %p168 = pneg %p64
        $region14: #{tpu_custom_call.1} parent=11 // pred_check_branch
          %170 = sbr.rel (%p168) target = $region16
        $region15: #{tpu_custom_call.1} parent=11 // pred_region
          _
        $region16: #{tpu_custom_call.1} parent=11 // pred_fallthru
          _
        // Predicated region
        $region17: #{tpu_custom_call.1} parent=11 // pred_check
          %p171 = pneg %p85
        $region18: #{tpu_custom_call.1} parent=11 // pred_check_branch
          %173 = sbr.rel (%p171) target = $region20
        $region19: #{tpu_custom_call.1} parent=11 // pred_region
          _
        $region20: #{tpu_custom_call.1} parent=11 // pred_fallthru
          _
        // Predicated region
        $region21: #{tpu_custom_call.1} parent=11 // pred_check
          %p174 = pneg %p106
        $region22: #{tpu_custom_call.1} parent=11 // pred_check_branch
          %176 = sbr.rel (%p174) target = $region24
        $region23: #{tpu_custom_call.1} parent=11 // pred_region
          _
        $region24: #{tpu_custom_call.1} parent=11 // pred_fallthru
          _
        // Predicated region
        $region25: #{tpu_custom_call.1} parent=11 // pred_check
          %p177 = pneg %p127
        $region26: #{tpu_custom_call.1} parent=11 // pred_check_branch
          %179 = sbr.rel (%p177) target = $region28
        $region27: #{tpu_custom_call.1} parent=11 // pred_region
          _
        $region28: #{tpu_custom_call.1} parent=11 // pred_fallthru
          _
      $region12: #{tpu_custom_call.1} parent=5 // pred_fallthru
        _
      %p180 = scmp.lt.s32.totalorder %s17, 2
      // Predicated region
      $region29: #{tpu_custom_call.1} parent=5 // pred_check
        %p181 = pneg %p180
      $region30: #{tpu_custom_call.1} parent=5 // pred_check_branch
        %183 = sbr.rel (%p181) target = $region32
      $region31: #{tpu_custom_call.1} parent=5 // pred_region
        // Predicated region
        $region33: #{tpu_custom_call.1} parent=31 // pred_check
          %p184 = pneg %p37
        $region34: #{tpu_custom_call.1} parent=31 // pred_check_branch
          %186 = sbr.rel (%p184) target = $region36
        $region35: #{tpu_custom_call.1} parent=31 // pred_region
          %s187 = sand.u32 %s27, 1
          %s188 = scalar_lea.sflag [#allocation4], %s187
          %s189 = sand.u32 %s27, 1
          %s190 = smul.addr %s189, 256
          %s191 = scalar_lea.vmem [#allocation3], %s190
          %s193 = ssub.s32 4096, 4096
          %194 = vsyncadd %s188, %s193
          %s195 = smul.addr %s17, 32
          %s196 = smul.addr %s195, 128
          %s197 = scalar_lea.hbm %s0, %s196
          %s198 = sshll.u32 %s191, 4
          %s199 = int_to_ptr.vmem [resolvable:$true] %s198
          %204 = dma.hbm_to_vmem [thread:$0]  %s197, 4096, %s199, %s188, 128, 128, 8
        $region36: #{tpu_custom_call.1} parent=31 // pred_fallthru
          _
      $region32: #{tpu_custom_call.1} parent=5 // pred_fallthru
        _
      %p205 = scmp.le.s32.totalorder 1, %s17
      %p206 = scmp.lt.s32.totalorder %s17, 3
      %p207 = pnand %p205, %p206
      %p208 = pneg %p207
      // Predicated region
      $region37: #{tpu_custom_call.1} parent=5 // pred_check
        _
      $region38: #{tpu_custom_call.1} parent=5 // pred_check_branch
        %210 = sbr.rel (%p207) target = $region40
      $region39: #{tpu_custom_call.1} parent=5 // pred_region
        %s211 = ssub.s32 %s17, 1
        %s212 = sand.u32 %s30, 1
        %s213 = scalar_lea.sflag [#allocation4], %s212
        %s214 = sand.u32 %s30, 1
        %s215 = smul.addr %s214, 256
        %s216 = scalar_lea.vmem [#allocation3], %s215
        // Predicated region
        $region41: #{tpu_custom_call.1} parent=39 // pred_check
          %p217 = pneg %p43
        $region42: #{tpu_custom_call.1} parent=39 // pred_check_branch
          %219 = sbr.rel (%p217) target = $region44
        $region43: #{tpu_custom_call.1} parent=39 // pred_region
          %220 = dma.done %s213, 4096
        $region44: #{tpu_custom_call.1} parent=39 // pred_fallthru
          _
        %s221 = sand.u32 %s30, 1
        %s222 = scalar_lea.sflag [#allocation4], %s221
        %s223 = sand.u32 %s30, 1
        %s224 = smul.addr %s223, 256
        %s225 = scalar_lea.vmem [#allocation3], %s224
        %p226 = pneg %p43
        %p227 = pneg %p40
        %p228 = pneg %p64
        %p229 = pneg %p61
        %p230 = pneg %p85
        %p231 = pneg %p82
        %p232 = pneg %p106
        %p233 = pneg %p103
        %p234 = pneg %p127
        %p235 = pneg %p124
        %p236 = pneg %p153
        %p237 = pneg %p150
        %s238 = sand.u32 %s140, 1
        %s239 = scalar_lea.sflag [#allocation5], %s238
        %s240 = sand.u32 %s140, 1
        %s241 = smul.addr %s240, 64
        %s242 = scalar_lea.vmem [#allocation6], %s241
        %vm244 = vcmask 523264
        %245 = vst.msk [vmem:[#allocation2] sm:$0xff] %vm244, 0.0
        %246 = vst.msk [vmem:[#allocation2 + $0x8] sm:$0xff] %vm244, 0.0
        %vm247 = vcmask 517120
        %248 = vst.msk [vmem:[#allocation2 + $0x10] sm:$0x3] %vm247, 0.0
        %249 = vst.msk [vmem:[#allocation2 + $0x18] sm:$0xff] %vm244, 0.0
        %250 = vst.msk [vmem:[#allocation2 + $0x20] sm:$0xff] %vm244, 0.0
        %251 = vst.msk [vmem:[#allocation2 + $0x28] sm:$0x3] %vm247, 0.0
        %252 = vst.msk [vmem:[#allocation2 + $0x30] sm:$0xff] %vm244, 0.0
        %253 = vst.msk [vmem:[#allocation2 + $0x38] sm:$0xff] %vm244, 0.0
        %254 = vst.msk [vmem:[#allocation2 + $0x40] sm:$0x3] %vm247, 0.0
        %255 = vst.msk [vmem:[#allocation2 + $0x48] sm:$0xff] %vm244, 0.0
        %256 = vst.msk [vmem:[#allocation2 + $0x50] sm:$0xff] %vm244, 0.0
        %257 = vst.msk [vmem:[#allocation2 + $0x58] sm:$0x3] %vm247, 0.0
        %258 = vst.msk [vmem:[#allocation2 + $0x60] sm:$0xff] %vm244, 0.0
        %259 = vst.msk [vmem:[#allocation2 + $0x68] sm:$0xff] %vm244, 0.0
        %260 = vst.msk [vmem:[#allocation2 + $0x70] sm:$0x3] %vm247, 0.0
        %261 = vst.msk [vmem:[#allocation2 + $0x78] sm:$0xff] %vm244, 0.0
        %262 = vst.msk [vmem:[#allocation2 + $0x80] sm:$0xff] %vm244, 0.0
        %263 = vst.msk [vmem:[#allocation2 + $0x88] sm:$0x3] %vm247, 0.0
        %264 = vst.msk [vmem:[#allocation2 + $0x90] sm:$0xff] %vm244, 0.0
        %265 = vst.msk [vmem:[#allocation2 + $0x98] sm:$0xff] %vm244, 0.0
        %266 = vst.msk [vmem:[#allocation2 + $0xa0] sm:$0x3] %vm247, 0.0
        %267 = vst.msk [vmem:[#allocation2 + $0xa8] sm:$0xff] %vm244, 0.0
        %268 = vst.msk [vmem:[#allocation2 + $0xb0] sm:$0xff] %vm244, 0.0
        %269 = vst.msk [vmem:[#allocation2 + $0xb8] sm:$0x3] %vm247, 0.0
        %270 = vst.msk [vmem:[#allocation2 + $0xc0] sm:$0xff] %vm244, 0.0
        %271 = vst.msk [vmem:[#allocation2 + $0xc8] sm:$0xff] %vm244, 0.0
        %272 = vst.msk [vmem:[#allocation2 + $0xd0] sm:$0x3] %vm247, 0.0
        %273 = vst.msk [vmem:[#allocation2 + $0xd8] sm:$0xff] %vm244, 0.0
        %274 = vst.msk [vmem:[#allocation2 + $0xe0] sm:$0xff] %vm244, 0.0
        %275 = vst.msk [vmem:[#allocation2 + $0xe8] sm:$0x3] %vm247, 0.0
        %276 = vst.msk [vmem:[#allocation2 + $0xf0] sm:$0xff] %vm244, 0.0
        %277 = vst.msk [vmem:[#allocation2 + $0xf8] sm:$0xff] %vm244, 0.0
        %278 = vst.msk [vmem:[#allocation2 + $0x100] sm:$0x3] %vm247, 0.0
        %279 = vst.msk [vmem:[#allocation2 + $0x108] sm:$0xff] %vm244, 0.0
        %280 = vst.msk [vmem:[#allocation2 + $0x110] sm:$0xff] %vm244, 0.0
        %281 = vst.msk [vmem:[#allocation2 + $0x118] sm:$0x3] %vm247, 0.0
        %282 = vst.msk [vmem:[#allocation2 + $0x120] sm:$0xff] %vm244, 0.0
        %283 = vst.msk [vmem:[#allocation2 + $0x128] sm:$0xff] %vm244, 0.0
        %284 = vst.msk [vmem:[#allocation2 + $0x130] sm:$0x3] %vm247, 0.0
        %285 = vst.msk [vmem:[#allocation2 + $0x138] sm:$0xff] %vm244, 0.0
        %286 = vst.msk [vmem:[#allocation2 + $0x140] sm:$0xff] %vm244, 0.0
        %287 = vst.msk [vmem:[#allocation2 + $0x148] sm:$0x3] %vm247, 0.0
        %288 = vst.msk [vmem:[#allocation2 + $0x150] sm:$0xff] %vm244, 0.0
        %289 = vst.msk [vmem:[#allocation2 + $0x158] sm:$0xff] %vm244, 0.0
        %290 = vst.msk [vmem:[#allocation2 + $0x160] sm:$0x3] %vm247, 0.0
        %291 = vst.msk [vmem:[#allocation2 + $0x168] sm:$0xff] %vm244, 0.0
        %292 = vst.msk [vmem:[#allocation2 + $0x170] sm:$0xff] %vm244, 0.0
        %293 = vst.msk [vmem:[#allocation2 + $0x178] sm:$0x3] %vm247, 0.0
        %294 = vst.msk [vmem:[#allocation2 + $0x180] sm:$0xff] %vm244, 0.0
        %295 = vst.msk [vmem:[#allocation2 + $0x188] sm:$0xff] %vm244, 0.0
        %296 = vst.msk [vmem:[#allocation2 + $0x190] sm:$0x3] %vm247, 0.0
        %297 = vst.msk [vmem:[#allocation2 + $0x198] sm:$0xff] %vm244, 0.0
        %298 = vst.msk [vmem:[#allocation2 + $0x1a0] sm:$0xff] %vm244, 0.0
        %299 = vst.msk [vmem:[#allocation2 + $0x1a8] sm:$0x3] %vm247, 0.0
        %v300 = vld [vmem:[%s216] sm:$0xff]
        %v301 = vld [vmem:[%s216 + $0x8] sm:$0xff]
        %v302 = vld [vmem:[%s216 + $0x10] sm:$0xff]
        %v303 = vld [vmem:[%s216 + $0x18] sm:$0xff]
        %v304 = vld [vmem:[%s216 + $0x20] sm:$0xff]
        %v305 = vld [vmem:[%s216 + $0x28] sm:$0xff]
        %v306 = vld [vmem:[%s216 + $0x30] sm:$0xff]
        %v307 = vld [vmem:[%s216 + $0x38] sm:$0xff]
        %v308 = vld [vmem:[%s216 + $0x40] sm:$0xff]
        %v309 = vld [vmem:[%s216 + $0x48] sm:$0xff]
        %v310 = vld [vmem:[%s216 + $0x50] sm:$0xff]
        %v311 = vld [vmem:[%s216 + $0x58] sm:$0xff]
        %v312 = vld [vmem:[%s216 + $0x60] sm:$0xff]
        %v313 = vld [vmem:[%s216 + $0x68] sm:$0xff]
        %v314 = vld [vmem:[%s216 + $0x70] sm:$0xff]
        %v315 = vld [vmem:[%s216 + $0x78] sm:$0xff]
        %v316 = vld [vmem:[%s216 + $0x80] sm:$0xff]
        %v317 = vld [vmem:[%s216 + $0x88] sm:$0xff]
        %v318 = vld [vmem:[%s216 + $0x90] sm:$0xff]
        %v319 = vld [vmem:[%s216 + $0x98] sm:$0xff]
        %v320 = vld [vmem:[%s216 + $0xa0] sm:$0xff]
        %v321 = vld [vmem:[%s216 + $0xa8] sm:$0xff]
        %v322 = vld [vmem:[%s216 + $0xb0] sm:$0xff]
        %v323 = vld [vmem:[%s216 + $0xb8] sm:$0xff]
        %v324 = vld [vmem:[%s216 + $0xc0] sm:$0xff]
        %v325 = vld [vmem:[%s216 + $0xc8] sm:$0xff]
        %v326 = vld [vmem:[%s216 + $0xd0] sm:$0xff]
        %v327 = vld [vmem:[%s216 + $0xd8] sm:$0xff]
        %v328 = vld [vmem:[%s216 + $0xe0] sm:$0xff]
        %v329 = vld [vmem:[%s216 + $0xe8] sm:$0xff]
        %v330 = vld [vmem:[%s216 + $0xf0] sm:$0xff]
        %v331 = vld [vmem:[%s216 + $0xf8] sm:$0xff]
        %v332 = vpack.c.bf16 %v301, %v300
        %v333 = vpack.c.bf16 %v303, %v302
        %v334 = vpack.c.bf16 %v305, %v304
        %v335 = vpack.c.bf16 %v307, %v306
        %v336 = vpack.c.bf16 %v309, %v308
        %v337 = vpack.c.bf16 %v311, %v310
        %v338 = vpack.c.bf16 %v313, %v312
        %v339 = vpack.c.bf16 %v315, %v314
        %v340 = vpack.c.bf16 %v317, %v316
        %v341 = vpack.c.bf16 %v319, %v318
        %v342 = vpack.c.bf16 %v321, %v320
        %v343 = vpack.c.bf16 %v323, %v322
        %v344 = vpack.c.bf16 %v325, %v324
        %v345 = vpack.c.bf16 %v327, %v326
        %v346 = vpack.c.bf16 %v329, %v328
        %v347 = vpack.c.bf16 %v331, %v330
        %v348 = vld [vmem:[%s1] sm:$0xf]
        %v349 = vld [vmem:[%s1 + $0x4] sm:$0xf]
        %v350 = vld [vmem:[%s1 + $0x8] sm:$0xf]
        %v351 = vld [vmem:[%s1 + $0xc] sm:$0x3]
        %v352 = vld [vmem:[%s3] sm:$0x1]
        %v354 = vlaneseq
        %v355 = vshrl.u32 %v354, 7
        %v356 = vsub.s32 0, %v355
        %v357 = vrot.slane %v352, %v356
        %v363 = vunpack.c.l.b16 %v348
        %v364 = vunpack.c.l.b16 %v349
        %v365 = vunpack.c.l.b16 %v350
        %v366 = vunpack.c.l.b16 %v351
        %v367 = vpack.c.b16 %v364, %v363
        %v368 = vpack.c.b16 %v366, %v365
        %vm370 = vcmask 220160
        %v372 = vsel %vm370, %v332, 0
        %v375 = vsel %vm370, %v333, 0
        %v378 = vsel %vm370, %v334, 0
        %v381 = vsel %vm370, %v335, 0
        %v384 = vsel %vm370, %v336, 0
        %v387 = vsel %vm370, %v337, 0
        %v390 = vsel %vm370, %v338, 0
        %v393 = vsel %vm370, %v339, 0
        %v396 = vsel %vm370, %v340, 0
        %v399 = vsel %vm370, %v341, 0
        %v402 = vsel %vm370, %v342, 0
        %v405 = vsel %vm370, %v343, 0
        %v408 = vsel %vm370, %v344, 0
        %v411 = vsel %vm370, %v345, 0
        %v414 = vsel %vm370, %v346, 0
        %v417 = vsel %vm370, %v347, 0
        %vm419 = vcmask 1044480
        %vm420 = vcmask 1045504
        %v421 = vsel %vm419, 4294967295, 65535
        %v422 = vsel %vm420, %v421, 0
        %v424 = vand.u32 %v368, %v422
        %426 = vmatprep.subr.bf16.mxu0 0
        %427 = vmatpush1.bf16.msra.mxu0 %v367
        %428 = vmatprep.subr.bf16.mxu0 0
        %429 = vmatpush1.bf16.msra.mxu0 %v424
        %430 = vmatprep.subr.bf16.mxu0 0
        %431 = vmatpush1.bf16.msra.mxu0 0
        %432 = vmatprep.subr.bf16.mxu0 0
        %433 = vmatpush1.bf16.msra.mxu0 0
        %434 = vmatprep.subr.bf16.mxu0 0
        %435 = vmatpush1.bf16.msra.mxu0 0
        %436 = vmatprep.subr.bf16.mxu0 0
        %437 = vmatpush1.bf16.msra.mxu0 0
        %438 = vmatprep.subr.bf16.mxu0 0
        %439 = vmatpush1.bf16.msra.mxu0 0
        %440 = vmatprep.subr.bf16.mxu0 0
        %441 = vmatpush1.bf16.msra.mxu0 0
        %442 = vmatprep.subr.bf16.mxu0 0
        %443 = vmatpush1.bf16.msra.mxu0 0
        %444 = vmatprep.subr.bf16.mxu0 0
        %445 = vmatpush1.bf16.msra.mxu0 0
        %446 = vmatprep.subr.bf16.mxu0 0
        %447 = vmatpush1.bf16.msra.mxu0 0
        %448 = vmatprep.subr.bf16.mxu0 0
        %449 = vmatpush1.bf16.msra.mxu0 0
        %450 = vmatprep.subr.bf16.mxu0 0
        %451 = vmatpush1.bf16.msra.mxu0 0
        %452 = vmatprep.subr.bf16.mxu0 0
        %453 = vmatpush1.bf16.msra.mxu0 0
        %454 = vmatprep.subr.bf16.mxu0 0
        %455 = vmatpush1.bf16.msra.mxu0 0
        %456 = vmatprep.subr.bf16.mxu0 0
        %457 = vmatpush1.bf16.msra.mxu0 0
        %458 = vmatprep.mubr.bf16.mxu0 0
        %459 = vmatmul.mubr.bf16.gmra.mrb[0].mxu0 %v372
        %v460 = vpop.f32.mrb[0].mxu0
        %v461 = vadd.f32 %v357, %v460
        %v462 = vpop.f32.mrb[0].mxu0
        %v463 = vpop.f32.mrb[0].mxu0
        %v464 = vadd.f32 %v357, %v463
        %v465 = vpop.f32.mrb[0].mxu0
        %466 = vmatprep.mubr.bf16.mxu0 0
        %467 = vmatmul.mubr.bf16.gmra.mrb[0].mxu0 %v375
        %v468 = vpop.f32.mrb[0].mxu0
        %v469 = vadd.f32 %v357, %v468
        %v470 = vpop.f32.mrb[0].mxu0
        %v471 = vpop.f32.mrb[0].mxu0
        %v472 = vadd.f32 %v357, %v471
        %v473 = vpop.f32.mrb[0].mxu0
        %474 = vmatprep.mubr.bf16.mxu0 0
        %475 = vmatmul.mubr.bf16.gmra.mrb[0].mxu0 %v378
        %v476 = vpop.f32.mrb[0].mxu0
        %v477 = vadd.f32 %v357, %v476
        %v478 = vpop.f32.mrb[0].mxu0
        %v479 = vpop.f32.mrb[0].mxu0
        %v480 = vadd.f32 %v357, %v479
        %v481 = vpop.f32.mrb[0].mxu0
        %482 = vmatprep.mubr.bf16.mxu0 0
        %483 = vmatmul.mubr.bf16.gmra.mrb[0].mxu0 %v381
        %v484 = vpop.f32.mrb[0].mxu0
        %v485 = vadd.f32 %v357, %v484
        %v486 = vpop.f32.mrb[0].mxu0
        %v487 = vpop.f32.mrb[0].mxu0
        %v488 = vadd.f32 %v357, %v487
        %v489 = vpop.f32.mrb[0].mxu0
        %490 = vmatprep.mubr.bf16.mxu0 0
        %491 = vmatmul.mubr.bf16.gmra.mrb[0].mxu0 %v384
        %v492 = vpop.f32.mrb[0].mxu0
        %v493 = vadd.f32 %v357, %v492
        %v494 = vpop.f32.mrb[0].mxu0
        %v495 = vpop.f32.mrb[0].mxu0
        %v496 = vadd.f32 %v357, %v495
        %v497 = vpop.f32.mrb[0].mxu0
        %498 = vmatprep.mubr.bf16.mxu0 0
        %499 = vmatmul.mubr.bf16.gmra.mrb[0].mxu0 %v387
        %v500 = vpop.f32.mrb[0].mxu0
        %v501 = vadd.f32 %v357, %v500
        %v502 = vpop.f32.mrb[0].mxu0
        %v503 = vpop.f32.mrb[0].mxu0
        %v504 = vadd.f32 %v357, %v503
        %v505 = vpop.f32.mrb[0].mxu0
        %506 = vmatprep.mubr.bf16.mxu0 0
        %507 = vmatmul.mubr.bf16.gmra.mrb[0].mxu0 %v390
        %v508 = vpop.f32.mrb[0].mxu0
        %v509 = vadd.f32 %v357, %v508
        %v510 = vpop.f32.mrb[0].mxu0
        %v511 = vpop.f32.mrb[0].mxu0
        %v512 = vadd.f32 %v357, %v511
        %v513 = vpop.f32.mrb[0].mxu0
        %514 = vmatprep.mubr.bf16.mxu0 0
        %515 = vmatmul.mubr.bf16.gmra.mrb[0].mxu0 %v393
        %v516 = vpop.f32.mrb[0].mxu0
        %v517 = vadd.f32 %v357, %v516
        %v518 = vpop.f32.mrb[0].mxu0
        %v519 = vpop.f32.mrb[0].mxu0
        %v520 = vadd.f32 %v357, %v519
        %v521 = vpop.f32.mrb[0].mxu0
        %522 = vmatprep.mubr.bf16.mxu0 0
        %523 = vmatmul.mubr.bf16.gmra.mrb[0].mxu0 %v396
        %v524 = vpop.f32.mrb[0].mxu0
        %v525 = vadd.f32 %v357, %v524
        %v526 = vpop.f32.mrb[0].mxu0
        %v527 = vpop.f32.mrb[0].mxu0
        %v528 = vadd.f32 %v357, %v527
        %v529 = vpop.f32.mrb[0].mxu0
        %530 = vmatprep.mubr.bf16.mxu0 0
        %531 = vmatmul.mubr.bf16.gmra.mrb[0].mxu0 %v399
        %v532 = vpop.f32.mrb[0].mxu0
        %v533 = vadd.f32 %v357, %v532
        %v534 = vpop.f32.mrb[0].mxu0
        %v535 = vpop.f32.mrb[0].mxu0
        %v536 = vadd.f32 %v357, %v535
        %v537 = vpop.f32.mrb[0].mxu0
        %538 = vmatprep.mubr.bf16.mxu0 0
        %539 = vmatmul.mubr.bf16.gmra.mrb[0].mxu0 %v402
        %v540 = vpop.f32.mrb[0].mxu0
        %v541 = vadd.f32 %v357, %v540
        %v542 = vpop.f32.mrb[0].mxu0
        %v543 = vpop.f32.mrb[0].mxu0
        %v544 = vadd.f32 %v357, %v543
        %v545 = vpop.f32.mrb[0].mxu0
        %546 = vmatprep.mubr.bf16.mxu0 0
        %547 = vmatmul.mubr.bf16.gmra.mrb[0].mxu0 %v405
        %v548 = vpop.f32.mrb[0].mxu0
        %v549 = vadd.f32 %v357, %v548
        %v550 = vpop.f32.mrb[0].mxu0
        %v551 = vpop.f32.mrb[0].mxu0
        %v552 = vadd.f32 %v357, %v551
        %v553 = vpop.f32.mrb[0].mxu0
        %554 = vmatprep.mubr.bf16.mxu0 0
        %555 = vmatmul.mubr.bf16.gmra.mrb[0].mxu0 %v408
        %v556 = vpop.f32.mrb[0].mxu0
        %v557 = vadd.f32 %v357, %v556
        %v558 = vpop.f32.mrb[0].mxu0
        %v559 = vpop.f32.mrb[0].mxu0
        %v560 = vadd.f32 %v357, %v559
        %v561 = vpop.f32.mrb[0].mxu0
        %562 = vmatprep.mubr.bf16.mxu0 0
        %563 = vmatmul.mubr.bf16.gmra.mrb[0].mxu0 %v411
        %v564 = vpop.f32.mrb[0].mxu0
        %v565 = vadd.f32 %v357, %v564
        %v566 = vpop.f32.mrb[0].mxu0
        %v567 = vpop.f32.mrb[0].mxu0
        %v568 = vadd.f32 %v357, %v567
        %v569 = vpop.f32.mrb[0].mxu0
        %570 = vmatprep.mubr.bf16.mxu0 0
        %571 = vmatmul.mubr.bf16.gmra.mrb[0].mxu0 %v414
        %v572 = vpop.f32.mrb[0].mxu0
        %v573 = vadd.f32 %v357, %v572
        %v574 = vpop.f32.mrb[0].mxu0
        %v575 = vpop.f32.mrb[0].mxu0
        %v576 = vadd.f32 %v357, %v575
        %v577 = vpop.f32.mrb[0].mxu0
        %578 = vmatprep.mubr.bf16.mxu0 0
        %579 = vmatmul.mubr.bf16.gmra.mrb[0].mxu0 %v417
        %v580 = vpop.f32.mrb[0].mxu0
        %v581 = vadd.f32 %v357, %v580
        %v582 = vpop.f32.mrb[0].mxu0
        %v583 = vpop.f32.mrb[0].mxu0
        %v584 = vadd.f32 %v357, %v583
        %v585 = vpop.f32.mrb[0].mxu0
        %586 = vdwg.mxu0
        %v587 = vmax.f32 %v461, 0.0
        %v588 = vmax.f32 %v464, 0.0
        %v589 = vmax.f32 %v469, 0.0
        %v590 = vmax.f32 %v472, 0.0
        %v591 = vmax.f32 %v477, 0.0
        %v592 = vmax.f32 %v480, 0.0
        %v593 = vmax.f32 %v485, 0.0
        %v594 = vmax.f32 %v488, 0.0
        %v595 = vmax.f32 %v493, 0.0
        %v596 = vmax.f32 %v496, 0.0
        %v597 = vmax.f32 %v501, 0.0
        %v598 = vmax.f32 %v504, 0.0
        %v599 = vmax.f32 %v509, 0.0
        %v600 = vmax.f32 %v512, 0.0
        %v601 = vmax.f32 %v517, 0.0
        %v602 = vmax.f32 %v520, 0.0
        %v603 = vmax.f32 %v525, 0.0
        %v604 = vmax.f32 %v528, 0.0
        %v605 = vmax.f32 %v533, 0.0
        %v606 = vmax.f32 %v536, 0.0
        %v607 = vmax.f32 %v541, 0.0
        %v608 = vmax.f32 %v544, 0.0
        %v609 = vmax.f32 %v549, 0.0
        %v610 = vmax.f32 %v552, 0.0
        %v611 = vmax.f32 %v557, 0.0
        %v612 = vmax.f32 %v560, 0.0
        %v613 = vmax.f32 %v565, 0.0
        %v614 = vmax.f32 %v568, 0.0
        %v615 = vmax.f32 %v573, 0.0
        %v616 = vmax.f32 %v576, 0.0
        %v617 = vmax.f32 %v581, 0.0
        %v618 = vmax.f32 %v584, 0.0
        %s619 = scalar_lea.vmem [#allocation2], 24
        %620 = vst.msk [vmem:[%s619 + $0x1] sm:$0xff] %vm244, %v587
        %621 = vst.msk [vmem:[%s619 + $0x9] sm:$0xff] %vm244, %v588
        %622 = vst.msk [vmem:[%s619 + $0x19] sm:$0xff] %vm244, %v589
        %623 = vst.msk [vmem:[%s619 + $0x21] sm:$0xff] %vm244, %v590
        %624 = vst.msk [vmem:[%s619 + $0x31] sm:$0xff] %vm244, %v591
        %625 = vst.msk [vmem:[%s619 + $0x39] sm:$0xff] %vm244, %v592
        %626 = vst.msk [vmem:[%s619 + $0x49] sm:$0xff] %vm244, %v593
        %627 = vst.msk [vmem:[%s619 + $0x51] sm:$0xff] %vm244, %v594
        %628 = vst.msk [vmem:[%s619 + $0x61] sm:$0xff] %vm244, %v595
        %629 = vst.msk [vmem:[%s619 + $0x69] sm:$0xff] %vm244, %v596
        %630 = vst.msk [vmem:[%s619 + $0x79] sm:$0xff] %vm244, %v597
        %631 = vst.msk [vmem:[%s619 + $0x81] sm:$0xff] %vm244, %v598
        %632 = vst.msk [vmem:[%s619 + $0x91] sm:$0xff] %vm244, %v599
        %633 = vst.msk [vmem:[%s619 + $0x99] sm:$0xff] %vm244, %v600
        %634 = vst.msk [vmem:[%s619 + $0xa9] sm:$0xff] %vm244, %v601
        %635 = vst.msk [vmem:[%s619 + $0xb1] sm:$0xff] %vm244, %v602
        %636 = vst.msk [vmem:[%s619 + $0xc1] sm:$0xff] %vm244, %v603
        %637 = vst.msk [vmem:[%s619 + $0xc9] sm:$0xff] %vm244, %v604
        %638 = vst.msk [vmem:[%s619 + $0xd9] sm:$0xff] %vm244, %v605
        %639 = vst.msk [vmem:[%s619 + $0xe1] sm:$0xff] %vm244, %v606
        %640 = vst.msk [vmem:[%s619 + $0xf1] sm:$0xff] %vm244, %v607
        %641 = vst.msk [vmem:[%s619 + $0xf9] sm:$0xff] %vm244, %v608
        %642 = vst.msk [vmem:[%s619 + $0x109] sm:$0xff] %vm244, %v609
        %643 = vst.msk [vmem:[%s619 + $0x111] sm:$0xff] %vm244, %v610
        %644 = vst.msk [vmem:[%s619 + $0x121] sm:$0xff] %vm244, %v611
        %645 = vst.msk [vmem:[%s619 + $0x129] sm:$0xff] %vm244, %v612
        %646 = vst.msk [vmem:[%s619 + $0x139] sm:$0xff] %vm244, %v613
        %647 = vst.msk [vmem:[%s619 + $0x141] sm:$0xff] %vm244, %v614
        %648 = vst.msk [vmem:[%s619 + $0x151] sm:$0xff] %vm244, %v615
        %649 = vst.msk [vmem:[%s619 + $0x159] sm:$0xff] %vm244, %v616
        %650 = vst.msk [vmem:[%s619 + $0x169] sm:$0xff] %vm244, %v617
        %651 = vst.msk [vmem:[%s619 + $0x171] sm:$0xff] %vm244, %v618
        %v652 = vld [vmem:[#allocation2] sm:$0xff]
        %v653 = vld [vmem:[#allocation2 + $0x8] sm:$0xff]
        %v654 = vld [vmem:[#allocation2 + $0x18] sm:$0xff]
        %v655 = vld [vmem:[#allocation2 + $0x20] sm:$0xff]
        %v656 = vld [vmem:[#allocation2 + $0x30] sm:$0xff]
        %v657 = vld [vmem:[#allocation2 + $0x38] sm:$0xff]
        %v658 = vld [vmem:[#allocation2 + $0x48] sm:$0xff]
        %v659 = vld [vmem:[#allocation2 + $0x50] sm:$0xff]
        %v660 = vld [vmem:[#allocation2 + $0x60] sm:$0xff]
        %v661 = vld [vmem:[#allocation2 + $0x68] sm:$0xff]
        %v662 = vld [vmem:[#allocation2 + $0x78] sm:$0xff]
        %v663 = vld [vmem:[#allocation2 + $0x80] sm:$0xff]
        %v664 = vld [vmem:[#allocation2 + $0x90] sm:$0xff]
        %v665 = vld [vmem:[#allocation2 + $0x98] sm:$0xff]
        %v666 = vld [vmem:[#allocation2 + $0xa8] sm:$0xff]
        %v667 = vld [vmem:[#allocation2 + $0xb0] sm:$0xff]
        %v668 = vld [vmem:[#allocation2 + $0xc0] sm:$0xff]
        %v669 = vld [vmem:[#allocation2 + $0xc8] sm:$0xff]
        %v670 = vld [vmem:[#allocation2 + $0xd8] sm:$0xff]
        %v671 = vld [vmem:[#allocation2 + $0xe0] sm:$0xff]
        %v672 = vld [vmem:[#allocation2 + $0xf0] sm:$0xff]
        %v673 = vld [vmem:[#allocation2 + $0xf8] sm:$0xff]
        %v674 = vld [vmem:[#allocation2 + $0x108] sm:$0xff]
        %v675 = vld [vmem:[#allocation2 + $0x110] sm:$0xff]
        %v676 = vld [vmem:[#allocation2 + $0x120] sm:$0xff]
        %v677 = vld [vmem:[#allocation2 + $0x128] sm:$0xff]
        %v678 = vld [vmem:[#allocation2 + $0x138] sm:$0xff]
        %v679 = vld [vmem:[#allocation2 + $0x140] sm:$0xff]
        %v680 = vld [vmem:[#allocation2 + $0x150] sm:$0xff]
        %v681 = vld [vmem:[#allocation2 + $0x158] sm:$0xff]
        %v682 = vld [vmem:[#allocation2 + $0x168] sm:$0xff]
        %v683 = vld [vmem:[#allocation2 + $0x170] sm:$0xff]
        %v684 = vpack.c.bf16 %v653, %v652
        %v685 = vpack.c.bf16 %v655, %v654
        %v686 = vpack.c.bf16 %v657, %v656
        %v687 = vpack.c.bf16 %v659, %v658
        %v688 = vpack.c.bf16 %v661, %v660
        %v689 = vpack.c.bf16 %v663, %v662
        %v690 = vpack.c.bf16 %v665, %v664
        %v691 = vpack.c.bf16 %v667, %v666
        %v692 = vpack.c.bf16 %v669, %v668
        %v693 = vpack.c.bf16 %v671, %v670
        %v694 = vpack.c.bf16 %v673, %v672
        %v695 = vpack.c.bf16 %v675, %v674
        %v696 = vpack.c.bf16 %v677, %v676
        %v697 = vpack.c.bf16 %v679, %v678
        %v698 = vpack.c.bf16 %v681, %v680
        %v699 = vpack.c.bf16 %v683, %v682
        %v700 = vld [vmem:[%s2] sm:$0xf]
        %v701 = vld [vmem:[%s2 + $0x4] sm:$0xf]
        %v702 = vld [vmem:[%s2 + $0x8] sm:$0xf]
        %v703 = vld [vmem:[%s2 + $0xc] sm:$0xf]
        %v704 = vld [vmem:[%s2 + $0x10] sm:$0xf]
        %v705 = vld [vmem:[%s2 + $0x14] sm:$0xf]
        %v706 = vld [vmem:[%s2 + $0x18] sm:$0xf]
        %v707 = vld [vmem:[%s2 + $0x1c] sm:$0xf]
        %v708 = vld [vmem:[#allocation2 + $0x1] sm:$0xff]
        %v709 = vld [vmem:[#allocation2 + $0x9] sm:$0xff]
        %v710 = vld [vmem:[#allocation2 + $0x19] sm:$0xff]
        %v711 = vld [vmem:[#allocation2 + $0x21] sm:$0xff]
        %v712 = vld [vmem:[#allocation2 + $0x31] sm:$0xff]
        %v713 = vld [vmem:[#allocation2 + $0x39] sm:$0xff]
        %v714 = vld [vmem:[#allocation2 + $0x49] sm:$0xff]
        %v715 = vld [vmem:[#allocation2 + $0x51] sm:$0xff]
        %v716 = vld [vmem:[#allocation2 + $0x61] sm:$0xff]
        %v717 = vld [vmem:[#allocation2 + $0x69] sm:$0xff]
        %v718 = vld [vmem:[#allocation2 + $0x79] sm:$0xff]
        %v719 = vld [vmem:[#allocation2 + $0x81] sm:$0xff]
        %v720 = vld [vmem:[#allocation2 + $0x91] sm:$0xff]
        %v721 = vld [vmem:[#allocation2 + $0x99] sm:$0xff]
        %v722 = vld [vmem:[#allocation2 + $0xa9] sm:$0xff]
        %v723 = vld [vmem:[#allocation2 + $0xb1] sm:$0xff]
        %v724 = vld [vmem:[#allocation2 + $0xc1] sm:$0xff]
        %v725 = vld [vmem:[#allocation2 + $0xc9] sm:$0xff]
        %v726 = vld [vmem:[#allocation2 + $0xd9] sm:$0xff]
        %v727 = vld [vmem:[#allocation2 + $0xe1] sm:$0xff]
        %v728 = vld [vmem:[#allocation2 + $0xf1] sm:$0xff]
        %v729 = vld [vmem:[#allocation2 + $0xf9] sm:$0xff]
        %v730 = vld [vmem:[#allocation2 + $0x109] sm:$0xff]
        %v731 = vld [vmem:[#allocation2 + $0x111] sm:$0xff]
        %v732 = vld [vmem:[#allocation2 + $0x121] sm:$0xff]
        %v733 = vld [vmem:[#allocation2 + $0x129] sm:$0xff]
        %v734 = vld [vmem:[#allocation2 + $0x139] sm:$0xff]
        %v735 = vld [vmem:[#allocation2 + $0x141] sm:$0xff]
        %v736 = vld [vmem:[#allocation2 + $0x151] sm:$0xff]
        %v737 = vld [vmem:[#allocation2 + $0x159] sm:$0xff]
        %v738 = vld [vmem:[#allocation2 + $0x169] sm:$0xff]
        %v739 = vld [vmem:[#allocation2 + $0x171] sm:$0xff]
        %v740 = vpack.c.bf16 %v709, %v708
        %v741 = vpack.c.bf16 %v711, %v710
        %v742 = vpack.c.bf16 %v713, %v712
        %v743 = vpack.c.bf16 %v715, %v714
        %v744 = vpack.c.bf16 %v717, %v716
        %v745 = vpack.c.bf16 %v719, %v718
        %v746 = vpack.c.bf16 %v721, %v720
        %v747 = vpack.c.bf16 %v723, %v722
        %v748 = vpack.c.bf16 %v725, %v724
        %v749 = vpack.c.bf16 %v727, %v726
        %v750 = vpack.c.bf16 %v729, %v728
        %v751 = vpack.c.bf16 %v731, %v730
        %v752 = vpack.c.bf16 %v733, %v732
        %v753 = vpack.c.bf16 %v735, %v734
        %v754 = vpack.c.bf16 %v737, %v736
        %v755 = vpack.c.bf16 %v739, %v738
        %v756 = vld [vmem:[%s2 + $0x20] sm:$0xf]
        %v757 = vld [vmem:[%s2 + $0x24] sm:$0xf]
        %v758 = vld [vmem:[%s2 + $0x28] sm:$0xf]
        %v759 = vld [vmem:[%s2 + $0x2c] sm:$0xf]
        %v760 = vld [vmem:[%s2 + $0x30] sm:$0xf]
        %v761 = vld [vmem:[%s2 + $0x34] sm:$0xf]
        %v762 = vld [vmem:[%s2 + $0x38] sm:$0xf]
        %v763 = vld [vmem:[%s2 + $0x3c] sm:$0xf]
        %v772 = vunpack.c.l.b16 %v756
        %v773 = vunpack.c.l.b16 %v757
        %v774 = vunpack.c.l.b16 %v758
        %v775 = vunpack.c.l.b16 %v759
        %v776 = vunpack.c.l.b16 %v760
        %v777 = vunpack.c.l.b16 %v761
        %v778 = vunpack.c.l.b16 %v762
        %v779 = vunpack.c.l.b16 %v763
        %v780 = vpack.c.b16 %v773, %v772
        %v781 = vpack.c.b16 %v775, %v774
        %v782 = vpack.c.b16 %v777, %v776
        %v783 = vpack.c.b16 %v779, %v778
        %v789 = vsel %vm244, %v740, 0
        %v792 = vsel %vm244, %v741, 0
        %v795 = vsel %vm244, %v742, 0
        %v798 = vsel %vm244, %v743, 0
        %v801 = vsel %vm244, %v744, 0
        %v804 = vsel %vm244, %v745, 0
        %v807 = vsel %vm244, %v746, 0
        %v810 = vsel %vm244, %v747, 0
        %v813 = vsel %vm244, %v748, 0
        %v816 = vsel %vm244, %v749, 0
        %v819 = vsel %vm244, %v750, 0
        %v822 = vsel %vm244, %v751, 0
        %v825 = vsel %vm244, %v752, 0
        %v828 = vsel %vm244, %v753, 0
        %v831 = vsel %vm244, %v754, 0
        %v834 = vsel %vm244, %v755, 0
        %836 = vmatprep.subr.bf16.mxu0 0
        %837 = vmatpush1.bf16.msra.mxu0 %v780
        %838 = vmatprep.subr.bf16.mxu0 0
        %839 = vmatpush1.bf16.msra.mxu0 %v781
        %840 = vmatprep.subr.bf16.mxu0 0
        %841 = vmatpush1.bf16.msra.mxu0 %v782
        %842 = vmatprep.subr.bf16.mxu0 0
        %843 = vmatpush1.bf16.msra.mxu0 %v783
        %844 = vmatprep.subr.bf16.mxu0 0
        %845 = vmatpush1.bf16.msra.mxu0 0
        %846 = vmatprep.subr.bf16.mxu0 0
        %847 = vmatpush1.bf16.msra.mxu0 0
        %848 = vmatprep.subr.bf16.mxu0 0
        %849 = vmatpush1.bf16.msra.mxu0 0
        %850 = vmatprep.subr.bf16.mxu0 0
        %851 = vmatpush1.bf16.msra.mxu0 0
        %852 = vmatprep.subr.bf16.mxu0 0
        %853 = vmatpush1.bf16.msra.mxu0 0
        %854 = vmatprep.subr.bf16.mxu0 0
        %855 = vmatpush1.bf16.msra.mxu0 0
        %856 = vmatprep.subr.bf16.mxu0 0
        %857 = vmatpush1.bf16.msra.mxu0 0
        %858 = vmatprep.subr.bf16.mxu0 0
        %859 = vmatpush1.bf16.msra.mxu0 0
        %860 = vmatprep.subr.bf16.mxu0 0
        %861 = vmatpush1.bf16.msra.mxu0 0
        %862 = vmatprep.subr.bf16.mxu0 0
        %863 = vmatpush1.bf16.msra.mxu0 0
        %864 = vmatprep.subr.bf16.mxu0 0
        %865 = vmatpush1.bf16.msra.mxu0 0
        %866 = vmatprep.subr.bf16.mxu0 0
        %867 = vmatpush1.bf16.msra.mxu0 0
        %868 = vmatprep.mubr.bf16.mxu0 0
        %869 = vmatmul.mubr.bf16.gmra.mrb[0].mxu0 %v789
        %v870 = vpop.f32.mrb[0].mxu0
        %v871 = vadd.f32 0.0, %v870
        %v872 = vpop.f32.mrb[0].mxu0
        %v873 = vpop.f32.mrb[0].mxu0
        %v874 = vadd.f32 0.0, %v873
        %v875 = vpop.f32.mrb[0].mxu0
        %876 = vmatprep.mubr.bf16.mxu0 0
        %877 = vmatmul.mubr.bf16.gmra.mrb[0].mxu0 %v792
        %v878 = vpop.f32.mrb[0].mxu0
        %v879 = vadd.f32 0.0, %v878
        %v880 = vpop.f32.mrb[0].mxu0
        %v881 = vpop.f32.mrb[0].mxu0
        %v882 = vadd.f32 0.0, %v881
        %v883 = vpop.f32.mrb[0].mxu0
        %884 = vmatprep.mubr.bf16.mxu0 0
        %885 = vmatmul.mubr.bf16.gmra.mrb[0].mxu0 %v795
        %v886 = vpop.f32.mrb[0].mxu0
        %v887 = vadd.f32 0.0, %v886
        %v888 = vpop.f32.mrb[0].mxu0
        %v889 = vpop.f32.mrb[0].mxu0
        %v890 = vadd.f32 0.0, %v889
        %v891 = vpop.f32.mrb[0].mxu0
        %892 = vmatprep.mubr.bf16.mxu0 0
        %893 = vmatmul.mubr.bf16.gmra.mrb[0].mxu0 %v798
        %v894 = vpop.f32.mrb[0].mxu0
        %v895 = vadd.f32 0.0, %v894
        %v896 = vpop.f32.mrb[0].mxu0
        %v897 = vpop.f32.mrb[0].mxu0
        %v898 = vadd.f32 0.0, %v897
        %v899 = vpop.f32.mrb[0].mxu0
        %900 = vmatprep.mubr.bf16.mxu0 0
        %901 = vmatmul.mubr.bf16.gmra.mrb[0].mxu0 %v801
        %v902 = vpop.f32.mrb[0].mxu0
        %v903 = vadd.f32 0.0, %v902
        %v904 = vpop.f32.mrb[0].mxu0
        %v905 = vpop.f32.mrb[0].mxu0
        %v906 = vadd.f32 0.0, %v905
        %v907 = vpop.f32.mrb[0].mxu0
        %908 = vmatprep.mubr.bf16.mxu0 0
        %909 = vmatmul.mubr.bf16.gmra.mrb[0].mxu0 %v804
        %v910 = vpop.f32.mrb[0].mxu0
        %v911 = vadd.f32 0.0, %v910
        %v912 = vpop.f32.mrb[0].mxu0
        %v913 = vpop.f32.mrb[0].mxu0
        %v914 = vadd.f32 0.0, %v913
        %v915 = vpop.f32.mrb[0].mxu0
        %916 = vmatprep.mubr.bf16.mxu0 0
        %917 = vmatmul.mubr.bf16.gmra.mrb[0].mxu0 %v807
        %v918 = vpop.f32.mrb[0].mxu0
        %v919 = vadd.f32 0.0, %v918
        %v920 = vpop.f32.mrb[0].mxu0
        %v921 = vpop.f32.mrb[0].mxu0
        %v922 = vadd.f32 0.0, %v921
        %v923 = vpop.f32.mrb[0].mxu0
        %924 = vmatprep.mubr.bf16.mxu0 0
        %925 = vmatmul.mubr.bf16.gmra.mrb[0].mxu0 %v810
        %v926 = vpop.f32.mrb[0].mxu0
        %v927 = vadd.f32 0.0, %v926
        %v928 = vpop.f32.mrb[0].mxu0
        %v929 = vpop.f32.mrb[0].mxu0
        %v930 = vadd.f32 0.0, %v929
        %v931 = vpop.f32.mrb[0].mxu0
        %932 = vmatprep.mubr.bf16.mxu0 0
        %933 = vmatmul.mubr.bf16.gmra.mrb[0].mxu0 %v813
        %v934 = vpop.f32.mrb[0].mxu0
        %v935 = vadd.f32 0.0, %v934
        %v936 = vpop.f32.mrb[0].mxu0
        %v937 = vpop.f32.mrb[0].mxu0
        %v938 = vadd.f32 0.0, %v937
        %v939 = vpop.f32.mrb[0].mxu0
        %940 = vmatprep.mubr.bf16.mxu0 0
        %941 = vmatmul.mubr.bf16.gmra.mrb[0].mxu0 %v816
        %v942 = vpop.f32.mrb[0].mxu0
        %v943 = vadd.f32 0.0, %v942
        %v944 = vpop.f32.mrb[0].mxu0
        %v945 = vpop.f32.mrb[0].mxu0
        %v946 = vadd.f32 0.0, %v945
        %v947 = vpop.f32.mrb[0].mxu0
        %948 = vmatprep.mubr.bf16.mxu0 0
        %949 = vmatmul.mubr.bf16.gmra.mrb[0].mxu0 %v819
        %v950 = vpop.f32.mrb[0].mxu0
        %v951 = vadd.f32 0.0, %v950
        %v952 = vpop.f32.mrb[0].mxu0
        %v953 = vpop.f32.mrb[0].mxu0
        %v954 = vadd.f32 0.0, %v953
        %v955 = vpop.f32.mrb[0].mxu0
        %956 = vmatprep.mubr.bf16.mxu0 0
        %957 = vmatmul.mubr.bf16.gmra.mrb[0].mxu0 %v822
        %v958 = vpop.f32.mrb[0].mxu0
        %v959 = vadd.f32 0.0, %v958
        %v960 = vpop.f32.mrb[0].mxu0
        %v961 = vpop.f32.mrb[0].mxu0
        %v962 = vadd.f32 0.0, %v961
        %v963 = vpop.f32.mrb[0].mxu0
        %964 = vmatprep.mubr.bf16.mxu0 0
        %965 = vmatmul.mubr.bf16.gmra.mrb[0].mxu0 %v825
        %v966 = vpop.f32.mrb[0].mxu0
        %v967 = vadd.f32 0.0, %v966
        %v968 = vpop.f32.mrb[0].mxu0
        %v969 = vpop.f32.mrb[0].mxu0
        %v970 = vadd.f32 0.0, %v969
        %v971 = vpop.f32.mrb[0].mxu0
        %972 = vmatprep.mubr.bf16.mxu0 0
        %973 = vmatmul.mubr.bf16.gmra.mrb[0].mxu0 %v828
        %v974 = vpop.f32.mrb[0].mxu0
        %v975 = vadd.f32 0.0, %v974
        %v976 = vpop.f32.mrb[0].mxu0
        %v977 = vpop.f32.mrb[0].mxu0
        %v978 = vadd.f32 0.0, %v977
        %v979 = vpop.f32.mrb[0].mxu0
        %980 = vmatprep.mubr.bf16.mxu0 0
        %981 = vmatmul.mubr.bf16.gmra.mrb[0].mxu0 %v831
        %v982 = vpop.f32.mrb[0].mxu0
        %v983 = vadd.f32 0.0, %v982
        %v984 = vpop.f32.mrb[0].mxu0
        %v985 = vpop.f32.mrb[0].mxu0
        %v986 = vadd.f32 0.0, %v985
        %v987 = vpop.f32.mrb[0].mxu0
        %988 = vmatprep.mubr.bf16.mxu0 0
        %989 = vmatmul.mubr.bf16.gmra.mrb[0].mxu0 %v834
        %v990 = vpop.f32.mrb[0].mxu0
        %v991 = vadd.f32 0.0, %v990
        %v992 = vpop.f32.mrb[0].mxu0
        %v993 = vpop.f32.mrb[0].mxu0
        %v994 = vadd.f32 0.0, %v993
        %v995 = vpop.f32.mrb[0].mxu0
        %996 = vdwg.mxu0
        %v1005 = vunpack.c.l.b16 %v700
        %v1006 = vunpack.c.l.b16 %v701
        %v1007 = vunpack.c.l.b16 %v702
        %v1008 = vunpack.c.l.b16 %v703
        %v1009 = vunpack.c.l.b16 %v704
        %v1010 = vunpack.c.l.b16 %v705
        %v1011 = vunpack.c.l.b16 %v706
        %v1012 = vunpack.c.l.b16 %v707
        %v1013 = vpack.c.b16 %v1006, %v1005
        %v1014 = vpack.c.b16 %v1008, %v1007
        %v1015 = vpack.c.b16 %v1010, %v1009
        %v1016 = vpack.c.b16 %v1012, %v1011
        %v1022 = vsel %vm244, %v684, 0
        %v1025 = vsel %vm244, %v685, 0
        %v1028 = vsel %vm244, %v686, 0
        %v1031 = vsel %vm244, %v687, 0
        %v1034 = vsel %vm244, %v688, 0
        %v1037 = vsel %vm244, %v689, 0
        %v1040 = vsel %vm244, %v690, 0
        %v1043 = vsel %vm244, %v691, 0
        %v1046 = vsel %vm244, %v692, 0
        %v1049 = vsel %vm244, %v693, 0
        %v1052 = vsel %vm244, %v694, 0
        %v1055 = vsel %vm244, %v695, 0
        %v1058 = vsel %vm244, %v696, 0
        %v1061 = vsel %vm244, %v697, 0
        %v1064 = vsel %vm244, %v698, 0
        %v1067 = vsel %vm244, %v699, 0
        %1069 = vmatprep.subr.bf16.mxu0 0
        %1070 = vmatpush1.bf16.msra.mxu0 %v1013
        %1071 = vmatprep.subr.bf16.mxu0 0
        %1072 = vmatpush1.bf16.msra.mxu0 %v1014
        %1073 = vmatprep.subr.bf16.mxu0 0
        %1074 = vmatpush1.bf16.msra.mxu0 %v1015
        %1075 = vmatprep.subr.bf16.mxu0 0
        %1076 = vmatpush1.bf16.msra.mxu0 %v1016
        %1077 = vmatprep.subr.bf16.mxu0 0
        %1078 = vmatpush1.bf16.msra.mxu0 0
        %1079 = vmatprep.subr.bf16.mxu0 0
        %1080 = vmatpush1.bf16.msra.mxu0 0
        %1081 = vmatprep.subr.bf16.mxu0 0
        %1082 = vmatpush1.bf16.msra.mxu0 0
        %1083 = vmatprep.subr.bf16.mxu0 0
        %1084 = vmatpush1.bf16.msra.mxu0 0
        %1085 = vmatprep.subr.bf16.mxu0 0
        %1086 = vmatpush1.bf16.msra.mxu0 0
        %1087 = vmatprep.subr.bf16.mxu0 0
        %1088 = vmatpush1.bf16.msra.mxu0 0
        %1089 = vmatprep.subr.bf16.mxu0 0
        %1090 = vmatpush1.bf16.msra.mxu0 0
        %1091 = vmatprep.subr.bf16.mxu0 0
        %1092 = vmatpush1.bf16.msra.mxu0 0
        %1093 = vmatprep.subr.bf16.mxu0 0
        %1094 = vmatpush1.bf16.msra.mxu0 0
        %1095 = vmatprep.subr.bf16.mxu0 0
        %1096 = vmatpush1.bf16.msra.mxu0 0
        %1097 = vmatprep.subr.bf16.mxu0 0
        %1098 = vmatpush1.bf16.msra.mxu0 0
        %1099 = vmatprep.subr.bf16.mxu0 0
        %1100 = vmatpush1.bf16.msra.mxu0 0
        %1101 = vmatprep.mubr.bf16.mxu0 0
        %1102 = vmatmul.mubr.bf16.gmra.mrb[0].mxu0 %v1022
        %v1103 = vpop.f32.mrb[0].mxu0
        %v1104 = vadd.f32 %v871, %v1103
        %v1105 = vpop.f32.mrb[0].mxu0
        %v1106 = vpop.f32.mrb[0].mxu0
        %v1107 = vadd.f32 %v874, %v1106
        %v1108 = vpop.f32.mrb[0].mxu0
        %1109 = vmatprep.mubr.bf16.mxu0 0
        %1110 = vmatmul.mubr.bf16.gmra.mrb[0].mxu0 %v1025
        %v1111 = vpop.f32.mrb[0].mxu0
        %v1112 = vadd.f32 %v879, %v1111
        %v1113 = vpop.f32.mrb[0].mxu0
        %v1114 = vpop.f32.mrb[0].mxu0
        %v1115 = vadd.f32 %v882, %v1114
        %v1116 = vpop.f32.mrb[0].mxu0
        %1117 = vmatprep.mubr.bf16.mxu0 0
        %1118 = vmatmul.mubr.bf16.gmra.mrb[0].mxu0 %v1028
        %v1119 = vpop.f32.mrb[0].mxu0
        %v1120 = vadd.f32 %v887, %v1119
        %v1121 = vpop.f32.mrb[0].mxu0
        %v1122 = vpop.f32.mrb[0].mxu0
        %v1123 = vadd.f32 %v890, %v1122
        %v1124 = vpop.f32.mrb[0].mxu0
        %1125 = vmatprep.mubr.bf16.mxu0 0
        %1126 = vmatmul.mubr.bf16.gmra.mrb[0].mxu0 %v1031
        %v1127 = vpop.f32.mrb[0].mxu0
        %v1128 = vadd.f32 %v895, %v1127
        %v1129 = vpop.f32.mrb[0].mxu0
        %v1130 = vpop.f32.mrb[0].mxu0
        %v1131 = vadd.f32 %v898, %v1130
        %v1132 = vpop.f32.mrb[0].mxu0
        %1133 = vmatprep.mubr.bf16.mxu0 0
        %1134 = vmatmul.mubr.bf16.gmra.mrb[0].mxu0 %v1034
        %v1135 = vpop.f32.mrb[0].mxu0
        %v1136 = vadd.f32 %v903, %v1135
        %v1137 = vpop.f32.mrb[0].mxu0
        %v1138 = vpop.f32.mrb[0].mxu0
        %v1139 = vadd.f32 %v906, %v1138
        %v1140 = vpop.f32.mrb[0].mxu0
        %1141 = vmatprep.mubr.bf16.mxu0 0
        %1142 = vmatmul.mubr.bf16.gmra.mrb[0].mxu0 %v1037
        %v1143 = vpop.f32.mrb[0].mxu0
        %v1144 = vadd.f32 %v911, %v1143
        %v1145 = vpop.f32.mrb[0].mxu0
        %v1146 = vpop.f32.mrb[0].mxu0
        %v1147 = vadd.f32 %v914, %v1146
        %v1148 = vpop.f32.mrb[0].mxu0
        %1149 = vmatprep.mubr.bf16.mxu0 0
        %1150 = vmatmul.mubr.bf16.gmra.mrb[0].mxu0 %v1040
        %v1151 = vpop.f32.mrb[0].mxu0
        %v1152 = vadd.f32 %v919, %v1151
        %v1153 = vpop.f32.mrb[0].mxu0
        %v1154 = vpop.f32.mrb[0].mxu0
        %v1155 = vadd.f32 %v922, %v1154
        %v1156 = vpop.f32.mrb[0].mxu0
        %1157 = vmatprep.mubr.bf16.mxu0 0
        %1158 = vmatmul.mubr.bf16.gmra.mrb[0].mxu0 %v1043
        %v1159 = vpop.f32.mrb[0].mxu0
        %v1160 = vadd.f32 %v927, %v1159
        %v1161 = vpop.f32.mrb[0].mxu0
        %v1162 = vpop.f32.mrb[0].mxu0
        %v1163 = vadd.f32 %v930, %v1162
        %v1164 = vpop.f32.mrb[0].mxu0
        %1165 = vmatprep.mubr.bf16.mxu0 0
        %1166 = vmatmul.mubr.bf16.gmra.mrb[0].mxu0 %v1046
        %v1167 = vpop.f32.mrb[0].mxu0
        %v1168 = vadd.f32 %v935, %v1167
        %v1169 = vpop.f32.mrb[0].mxu0
        %v1170 = vpop.f32.mrb[0].mxu0
        %v1171 = vadd.f32 %v938, %v1170
        %v1172 = vpop.f32.mrb[0].mxu0
        %1173 = vmatprep.mubr.bf16.mxu0 0
        %1174 = vmatmul.mubr.bf16.gmra.mrb[0].mxu0 %v1049
        %v1175 = vpop.f32.mrb[0].mxu0
        %v1176 = vadd.f32 %v943, %v1175
        %v1177 = vpop.f32.mrb[0].mxu0
        %v1178 = vpop.f32.mrb[0].mxu0
        %v1179 = vadd.f32 %v946, %v1178
        %v1180 = vpop.f32.mrb[0].mxu0
        %1181 = vmatprep.mubr.bf16.mxu0 0
        %1182 = vmatmul.mubr.bf16.gmra.mrb[0].mxu0 %v1052
        %v1183 = vpop.f32.mrb[0].mxu0
        %v1184 = vadd.f32 %v951, %v1183
        %v1185 = vpop.f32.mrb[0].mxu0
        %v1186 = vpop.f32.mrb[0].mxu0
        %v1187 = vadd.f32 %v954, %v1186
        %v1188 = vpop.f32.mrb[0].mxu0
        %1189 = vmatprep.mubr.bf16.mxu0 0
        %1190 = vmatmul.mubr.bf16.gmra.mrb[0].mxu0 %v1055
        %v1191 = vpop.f32.mrb[0].mxu0
        %v1192 = vadd.f32 %v959, %v1191
        %v1193 = vpop.f32.mrb[0].mxu0
        %v1194 = vpop.f32.mrb[0].mxu0
        %v1195 = vadd.f32 %v962, %v1194
        %v1196 = vpop.f32.mrb[0].mxu0
        %1197 = vmatprep.mubr.bf16.mxu0 0
        %1198 = vmatmul.mubr.bf16.gmra.mrb[0].mxu0 %v1058
        %v1199 = vpop.f32.mrb[0].mxu0
        %v1200 = vadd.f32 %v967, %v1199
        %v1201 = vpop.f32.mrb[0].mxu0
        %v1202 = vpop.f32.mrb[0].mxu0
        %v1203 = vadd.f32 %v970, %v1202
        %v1204 = vpop.f32.mrb[0].mxu0
        %1205 = vmatprep.mubr.bf16.mxu0 0
        %1206 = vmatmul.mubr.bf16.gmra.mrb[0].mxu0 %v1061
        %v1207 = vpop.f32.mrb[0].mxu0
        %v1208 = vadd.f32 %v975, %v1207
        %v1209 = vpop.f32.mrb[0].mxu0
        %v1210 = vpop.f32.mrb[0].mxu0
        %v1211 = vadd.f32 %v978, %v1210
        %v1212 = vpop.f32.mrb[0].mxu0
        %1213 = vmatprep.mubr.bf16.mxu0 0
        %1214 = vmatmul.mubr.bf16.gmra.mrb[0].mxu0 %v1064
        %v1215 = vpop.f32.mrb[0].mxu0
        %v1216 = vadd.f32 %v983, %v1215
        %v1217 = vpop.f32.mrb[0].mxu0
        %v1218 = vpop.f32.mrb[0].mxu0
        %v1219 = vadd.f32 %v986, %v1218
        %v1220 = vpop.f32.mrb[0].mxu0
        %1221 = vmatprep.mubr.bf16.mxu0 0
        %1222 = vmatmul.mubr.bf16.gmra.mrb[0].mxu0 %v1067
        %v1223 = vpop.f32.mrb[0].mxu0
        %v1224 = vadd.f32 %v991, %v1223
        %v1225 = vpop.f32.mrb[0].mxu0
        %v1226 = vpop.f32.mrb[0].mxu0
        %v1227 = vadd.f32 %v994, %v1226
        %v1228 = vpop.f32.mrb[0].mxu0
        %1229 = vdwg.mxu0
        %v1230 = vld [vmem:[#allocation2 + $0x2] sm:$0xff]
        %v1231 = vld [vmem:[#allocation2 + $0xa] sm:$0xff]
        %v1232 = vld [vmem:[#allocation2 + $0x1a] sm:$0xff]
        %v1233 = vld [vmem:[#allocation2 + $0x22] sm:$0xff]
        %v1234 = vld [vmem:[#allocation2 + $0x32] sm:$0xff]
        %v1235 = vld [vmem:[#allocation2 + $0x3a] sm:$0xff]
        %v1236 = vld [vmem:[#allocation2 + $0x4a] sm:$0xff]
        %v1237 = vld [vmem:[#allocation2 + $0x52] sm:$0xff]
        %v1238 = vld [vmem:[#allocation2 + $0x62] sm:$0xff]
        %v1239 = vld [vmem:[#allocation2 + $0x6a] sm:$0xff]
        %v1240 = vld [vmem:[#allocation2 + $0x7a] sm:$0xff]
        %v1241 = vld [vmem:[#allocation2 + $0x82] sm:$0xff]
        %v1242 = vld [vmem:[#allocation2 + $0x92] sm:$0xff]
        %v1243 = vld [vmem:[#allocation2 + $0x9a] sm:$0xff]
        %v1244 = vld [vmem:[#allocation2 + $0xaa] sm:$0xff]
        %v1245 = vld [vmem:[#allocation2 + $0xb2] sm:$0xff]
        %v1246 = vld [vmem:[#allocation2 + $0xc2] sm:$0xff]
        %v1247 = vld [vmem:[#allocation2 + $0xca] sm:$0xff]
        %v1248 = vld [vmem:[#allocation2 + $0xda] sm:$0xff]
        %v1249 = vld [vmem:[#allocation2 + $0xe2] sm:$0xff]
        %v1250 = vld [vmem:[#allocation2 + $0xf2] sm:$0xff]
        %v1251 = vld [vmem:[#allocation2 + $0xfa] sm:$0xff]
        %v1252 = vld [vmem:[#allocation2 + $0x10a] sm:$0xff]
        %v1253 = vld [vmem:[#allocation2 + $0x112] sm:$0xff]
        %v1254 = vld [vmem:[#allocation2 + $0x122] sm:$0xff]
        %v1255 = vld [vmem:[#allocation2 + $0x12a] sm:$0xff]
        %v1256 = vld [vmem:[#allocation2 + $0x13a] sm:$0xff]
        %v1257 = vld [vmem:[#allocation2 + $0x142] sm:$0xff]
        %v1258 = vld [vmem:[#allocation2 + $0x152] sm:$0xff]
        %v1259 = vld [vmem:[#allocation2 + $0x15a] sm:$0xff]
        %v1260 = vld [vmem:[#allocation2 + $0x16a] sm:$0xff]
        %v1261 = vld [vmem:[#allocation2 + $0x172] sm:$0xff]
        %v1262 = vpack.c.bf16 %v1231, %v1230
        %v1263 = vpack.c.bf16 %v1233, %v1232
        %v1264 = vpack.c.bf16 %v1235, %v1234
        %v1265 = vpack.c.bf16 %v1237, %v1236
        %v1266 = vpack.c.bf16 %v1239, %v1238
        %v1267 = vpack.c.bf16 %v1241, %v1240
        %v1268 = vpack.c.bf16 %v1243, %v1242
        %v1269 = vpack.c.bf16 %v1245, %v1244
        %v1270 = vpack.c.bf16 %v1247, %v1246
        %v1271 = vpack.c.bf16 %v1249, %v1248
        %v1272 = vpack.c.bf16 %v1251, %v1250
        %v1273 = vpack.c.bf16 %v1253, %v1252
        %v1274 = vpack.c.bf16 %v1255, %v1254
        %v1275 = vpack.c.bf16 %v1257, %v1256
        %v1276 = vpack.c.bf16 %v1259, %v1258
        %v1277 = vpack.c.bf16 %v1261, %v1260
        %v1278 = vld [vmem:[%s2 + $0x40] sm:$0xf]
        %v1279 = vld [vmem:[%s2 + $0x44] sm:$0xf]
        %v1280 = vld [vmem:[%s2 + $0x48] sm:$0xf]
        %v1281 = vld [vmem:[%s2 + $0x4c] sm:$0xf]
        %v1282 = vld [vmem:[%s2 + $0x50] sm:$0xf]
        %v1283 = vld [vmem:[%s2 + $0x54] sm:$0xf]
        %v1284 = vld [vmem:[%s2 + $0x58] sm:$0xf]
        %v1285 = vld [vmem:[%s2 + $0x5c] sm:$0xf]
        %v1294 = vunpack.c.l.b16 %v1278
        %v1295 = vunpack.c.l.b16 %v1279
        %v1296 = vunpack.c.l.b16 %v1280
        %v1297 = vunpack.c.l.b16 %v1281
        %v1298 = vunpack.c.l.b16 %v1282
        %v1299 = vunpack.c.l.b16 %v1283
        %v1300 = vunpack.c.l.b16 %v1284
        %v1301 = vunpack.c.l.b16 %v1285
        %v1302 = vpack.c.b16 %v1295, %v1294
        %v1303 = vpack.c.b16 %v1297, %v1296
        %v1304 = vpack.c.b16 %v1299, %v1298
        %v1305 = vpack.c.b16 %v1301, %v1300
        %v1311 = vsel %vm244, %v1262, 0
        %v1314 = vsel %vm244, %v1263, 0
        %v1317 = vsel %vm244, %v1264, 0
        %v1320 = vsel %vm244, %v1265, 0
        %v1323 = vsel %vm244, %v1266, 0
        %v1326 = vsel %vm244, %v1267, 0
        %v1329 = vsel %vm244, %v1268, 0
        %v1332 = vsel %vm244, %v1269, 0
        %v1335 = vsel %vm244, %v1270, 0
        %v1338 = vsel %vm244, %v1271, 0
        %v1341 = vsel %vm244, %v1272, 0
        %v1344 = vsel %vm244, %v1273, 0
        %v1347 = vsel %vm244, %v1274, 0
        %v1350 = vsel %vm244, %v1275, 0
        %v1353 = vsel %vm244, %v1276, 0
        %v1356 = vsel %vm244, %v1277, 0
        %1358 = vmatprep.subr.bf16.mxu0 0
        %1359 = vmatpush1.bf16.msra.mxu0 %v1302
        %1360 = vmatprep.subr.bf16.mxu0 0
        %1361 = vmatpush1.bf16.msra.mxu0 %v1303
        %1362 = vmatprep.subr.bf16.mxu0 0
        %1363 = vmatpush1.bf16.msra.mxu0 %v1304
        %1364 = vmatprep.subr.bf16.mxu0 0
        %1365 = vmatpush1.bf16.msra.mxu0 %v1305
        %1366 = vmatprep.subr.bf16.mxu0 0
        %1367 = vmatpush1.bf16.msra.mxu0 0
        %1368 = vmatprep.subr.bf16.mxu0 0
        %1369 = vmatpush1.bf16.msra.mxu0 0
        %1370 = vmatprep.subr.bf16.mxu0 0
        %1371 = vmatpush1.bf16.msra.mxu0 0
        %1372 = vmatprep.subr.bf16.mxu0 0
        %1373 = vmatpush1.bf16.msra.mxu0 0
        %1374 = vmatprep.subr.bf16.mxu0 0
        %1375 = vmatpush1.bf16.msra.mxu0 0
        %1376 = vmatprep.subr.bf16.mxu0 0
        %1377 = vmatpush1.bf16.msra.mxu0 0
        %1378 = vmatprep.subr.bf16.mxu0 0
        %1379 = vmatpush1.bf16.msra.mxu0 0
        %1380 = vmatprep.subr.bf16.mxu0 0
        %1381 = vmatpush1.bf16.msra.mxu0 0
        %1382 = vmatprep.subr.bf16.mxu0 0
        %1383 = vmatpush1.bf16.msra.mxu0 0
        %1384 = vmatprep.subr.bf16.mxu0 0
        %1385 = vmatpush1.bf16.msra.mxu0 0
        %1386 = vmatprep.subr.bf16.mxu0 0
        %1387 = vmatpush1.bf16.msra.mxu0 0
        %1388 = vmatprep.subr.bf16.mxu0 0
        %1389 = vmatpush1.bf16.msra.mxu0 0
        %1390 = vmatprep.mubr.bf16.mxu0 0
        %1391 = vmatmul.mubr.bf16.gmra.mrb[0].mxu0 %v1311
        %v1392 = vpop.f32.mrb[0].mxu0
        %v1393 = vadd.f32 0.0, %v1392
        %v1394 = vpop.f32.mrb[0].mxu0
        %v1395 = vpop.f32.mrb[0].mxu0
        %v1396 = vadd.f32 0.0, %v1395
        %v1397 = vpop.f32.mrb[0].mxu0
        %1398 = vmatprep.mubr.bf16.mxu0 0
        %1399 = vmatmul.mubr.bf16.gmra.mrb[0].mxu0 %v1314
        %v1400 = vpop.f32.mrb[0].mxu0
        %v1401 = vadd.f32 0.0, %v1400
        %v1402 = vpop.f32.mrb[0].mxu0
        %v1403 = vpop.f32.mrb[0].mxu0
        %v1404 = vadd.f32 0.0, %v1403
        %v1405 = vpop.f32.mrb[0].mxu0
        %1406 = vmatprep.mubr.bf16.mxu0 0
        %1407 = vmatmul.mubr.bf16.gmra.mrb[0].mxu0 %v1317
        %v1408 = vpop.f32.mrb[0].mxu0
        %v1409 = vadd.f32 0.0, %v1408
        %v1410 = vpop.f32.mrb[0].mxu0
        %v1411 = vpop.f32.mrb[0].mxu0
        %v1412 = vadd.f32 0.0, %v1411
        %v1413 = vpop.f32.mrb[0].mxu0
        %1414 = vmatprep.mubr.bf16.mxu0 0
        %1415 = vmatmul.mubr.bf16.gmra.mrb[0].mxu0 %v1320
        %v1416 = vpop.f32.mrb[0].mxu0
        %v1417 = vadd.f32 0.0, %v1416
        %v1418 = vpop.f32.mrb[0].mxu0
        %v1419 = vpop.f32.mrb[0].mxu0
        %v1420 = vadd.f32 0.0, %v1419
        %v1421 = vpop.f32.mrb[0].mxu0
        %1422 = vmatprep.mubr.bf16.mxu0 0
        %1423 = vmatmul.mubr.bf16.gmra.mrb[0].mxu0 %v1323
        %v1424 = vpop.f32.mrb[0].mxu0
        %v1425 = vadd.f32 0.0, %v1424
        %v1426 = vpop.f32.mrb[0].mxu0
        %v1427 = vpop.f32.mrb[0].mxu0
        %v1428 = vadd.f32 0.0, %v1427
        %v1429 = vpop.f32.mrb[0].mxu0
        %1430 = vmatprep.mubr.bf16.mxu0 0
        %1431 = vmatmul.mubr.bf16.gmra.mrb[0].mxu0 %v1326
        %v1432 = vpop.f32.mrb[0].mxu0
        %v1433 = vadd.f32 0.0, %v1432
        %v1434 = vpop.f32.mrb[0].mxu0
        %v1435 = vpop.f32.mrb[0].mxu0
        %v1436 = vadd.f32 0.0, %v1435
        %v1437 = vpop.f32.mrb[0].mxu0
        %1438 = vmatprep.mubr.bf16.mxu0 0
        %1439 = vmatmul.mubr.bf16.gmra.mrb[0].mxu0 %v1329
        %v1440 = vpop.f32.mrb[0].mxu0
        %v1441 = vadd.f32 0.0, %v1440
        %v1442 = vpop.f32.mrb[0].mxu0
        %v1443 = vpop.f32.mrb[0].mxu0
        %v1444 = vadd.f32 0.0, %v1443
        %v1445 = vpop.f32.mrb[0].mxu0
        %1446 = vmatprep.mubr.bf16.mxu0 0
        %1447 = vmatmul.mubr.bf16.gmra.mrb[0].mxu0 %v1332
        %v1448 = vpop.f32.mrb[0].mxu0
        %v1449 = vadd.f32 0.0, %v1448
        %v1450 = vpop.f32.mrb[0].mxu0
        %v1451 = vpop.f32.mrb[0].mxu0
        %v1452 = vadd.f32 0.0, %v1451
        %v1453 = vpop.f32.mrb[0].mxu0
        %1454 = vmatprep.mubr.bf16.mxu0 0
        %1455 = vmatmul.mubr.bf16.gmra.mrb[0].mxu0 %v1335
        %v1456 = vpop.f32.mrb[0].mxu0
        %v1457 = vadd.f32 0.0, %v1456
        %v1458 = vpop.f32.mrb[0].mxu0
        %v1459 = vpop.f32.mrb[0].mxu0
        %v1460 = vadd.f32 0.0, %v1459
        %v1461 = vpop.f32.mrb[0].mxu0
        %1462 = vmatprep.mubr.bf16.mxu0 0
        %1463 = vmatmul.mubr.bf16.gmra.mrb[0].mxu0 %v1338
        %v1464 = vpop.f32.mrb[0].mxu0
        %v1465 = vadd.f32 0.0, %v1464
        %v1466 = vpop.f32.mrb[0].mxu0
        %v1467 = vpop.f32.mrb[0].mxu0
        %v1468 = vadd.f32 0.0, %v1467
        %v1469 = vpop.f32.mrb[0].mxu0
        %1470 = vmatprep.mubr.bf16.mxu0 0
        %1471 = vmatmul.mubr.bf16.gmra.mrb[0].mxu0 %v1341
        %v1472 = vpop.f32.mrb[0].mxu0
        %v1473 = vadd.f32 0.0, %v1472
        %v1474 = vpop.f32.mrb[0].mxu0
        %v1475 = vpop.f32.mrb[0].mxu0
        %v1476 = vadd.f32 0.0, %v1475
        %v1477 = vpop.f32.mrb[0].mxu0
        %1478 = vmatprep.mubr.bf16.mxu0 0
        %1479 = vmatmul.mubr.bf16.gmra.mrb[0].mxu0 %v1344
        %v1480 = vpop.f32.mrb[0].mxu0
        %v1481 = vadd.f32 0.0, %v1480
        %v1482 = vpop.f32.mrb[0].mxu0
        %v1483 = vpop.f32.mrb[0].mxu0
        %v1484 = vadd.f32 0.0, %v1483
        %v1485 = vpop.f32.mrb[0].mxu0
        %1486 = vmatprep.mubr.bf16.mxu0 0
        %1487 = vmatmul.mubr.bf16.gmra.mrb[0].mxu0 %v1347
        %v1488 = vpop.f32.mrb[0].mxu0
        %v1489 = vadd.f32 0.0, %v1488
        %v1490 = vpop.f32.mrb[0].mxu0
        %v1491 = vpop.f32.mrb[0].mxu0
        %v1492 = vadd.f32 0.0, %v1491
        %v1493 = vpop.f32.mrb[0].mxu0
        %1494 = vmatprep.mubr.bf16.mxu0 0
        %1495 = vmatmul.mubr.bf16.gmra.mrb[0].mxu0 %v1350
        %v1496 = vpop.f32.mrb[0].mxu0
        %v1497 = vadd.f32 0.0, %v1496
        %v1498 = vpop.f32.mrb[0].mxu0
        %v1499 = vpop.f32.mrb[0].mxu0
        %v1500 = vadd.f32 0.0, %v1499
        %v1501 = vpop.f32.mrb[0].mxu0
        %1502 = vmatprep.mubr.bf16.mxu0 0
        %1503 = vmatmul.mubr.bf16.gmra.mrb[0].mxu0 %v1353
        %v1504 = vpop.f32.mrb[0].mxu0
        %v1505 = vadd.f32 0.0, %v1504
        %v1506 = vpop.f32.mrb[0].mxu0
        %v1507 = vpop.f32.mrb[0].mxu0
        %v1508 = vadd.f32 0.0, %v1507
        %v1509 = vpop.f32.mrb[0].mxu0
        %1510 = vmatprep.mubr.bf16.mxu0 0
        %1511 = vmatmul.mubr.bf16.gmra.mrb[0].mxu0 %v1356
        %v1512 = vpop.f32.mrb[0].mxu0
        %v1513 = vadd.f32 0.0, %v1512
        %v1514 = vpop.f32.mrb[0].mxu0
        %v1515 = vpop.f32.mrb[0].mxu0
        %v1516 = vadd.f32 0.0, %v1515
        %v1517 = vpop.f32.mrb[0].mxu0
        %1518 = vdwg.mxu0
        %v1519 = vadd.f32 %v1104, %v1393
        %v1520 = vadd.f32 %v1107, %v1396
        %v1521 = vadd.f32 %v1112, %v1401
        %v1522 = vadd.f32 %v1115, %v1404
        %v1523 = vadd.f32 %v1120, %v1409
        %v1524 = vadd.f32 %v1123, %v1412
        %v1525 = vadd.f32 %v1128, %v1417
        %v1526 = vadd.f32 %v1131, %v1420
        %v1527 = vadd.f32 %v1136, %v1425
        %v1528 = vadd.f32 %v1139, %v1428
        %v1529 = vadd.f32 %v1144, %v1433
        %v1530 = vadd.f32 %v1147, %v1436
        %v1531 = vadd.f32 %v1152, %v1441
        %v1532 = vadd.f32 %v1155, %v1444
        %v1533 = vadd.f32 %v1160, %v1449
        %v1534 = vadd.f32 %v1163, %v1452
        %v1535 = vadd.f32 %v1168, %v1457
        %v1536 = vadd.f32 %v1171, %v1460
        %v1537 = vadd.f32 %v1176, %v1465
        %v1538 = vadd.f32 %v1179, %v1468
        %v1539 = vadd.f32 %v1184, %v1473
        %v1540 = vadd.f32 %v1187, %v1476
        %v1541 = vadd.f32 %v1192, %v1481
        %v1542 = vadd.f32 %v1195, %v1484
        %v1543 = vadd.f32 %v1200, %v1489
        %v1544 = vadd.f32 %v1203, %v1492
        %v1545 = vadd.f32 %v1208, %v1497
        %v1546 = vadd.f32 %v1211, %v1500
        %v1547 = vadd.f32 %v1216, %v1505
        %v1548 = vadd.f32 %v1219, %v1508
        %v1549 = vadd.f32 %v1224, %v1513
        %v1550 = vadd.f32 %v1227, %v1516
        %v1551 = vld [vmem:[%s619] sm:$0xff]
        %v1552 = vld [vmem:[%s619 + $0x8] sm:$0xff]
        %v1553 = vld [vmem:[%s619 + $0x18] sm:$0xff]
        %v1554 = vld [vmem:[%s619 + $0x20] sm:$0xff]
        %v1555 = vld [vmem:[%s619 + $0x30] sm:$0xff]
        %v1556 = vld [vmem:[%s619 + $0x38] sm:$0xff]
        %v1557 = vld [vmem:[%s619 + $0x48] sm:$0xff]
        %v1558 = vld [vmem:[%s619 + $0x50] sm:$0xff]
        %v1559 = vld [vmem:[%s619 + $0x60] sm:$0xff]
        %v1560 = vld [vmem:[%s619 + $0x68] sm:$0xff]
        %v1561 = vld [vmem:[%s619 + $0x78] sm:$0xff]
        %v1562 = vld [vmem:[%s619 + $0x80] sm:$0xff]
        %v1563 = vld [vmem:[%s619 + $0x90] sm:$0xff]
        %v1564 = vld [vmem:[%s619 + $0x98] sm:$0xff]
        %v1565 = vld [vmem:[%s619 + $0xa8] sm:$0xff]
        %v1566 = vld [vmem:[%s619 + $0xb0] sm:$0xff]
        %v1567 = vld [vmem:[%s619 + $0xc0] sm:$0xff]
        %v1568 = vld [vmem:[%s619 + $0xc8] sm:$0xff]
        %v1569 = vld [vmem:[%s619 + $0xd8] sm:$0xff]
        %v1570 = vld [vmem:[%s619 + $0xe0] sm:$0xff]
        %v1571 = vld [vmem:[%s619 + $0xf0] sm:$0xff]
        %v1572 = vld [vmem:[%s619 + $0xf8] sm:$0xff]
        %v1573 = vld [vmem:[%s619 + $0x108] sm:$0xff]
        %v1574 = vld [vmem:[%s619 + $0x110] sm:$0xff]
        %v1575 = vld [vmem:[%s619 + $0x120] sm:$0xff]
        %v1576 = vld [vmem:[%s619 + $0x128] sm:$0xff]
        %v1577 = vld [vmem:[%s619 + $0x138] sm:$0xff]
        %v1578 = vld [vmem:[%s619 + $0x140] sm:$0xff]
        %v1579 = vld [vmem:[%s619 + $0x150] sm:$0xff]
        %v1580 = vld [vmem:[%s619 + $0x158] sm:$0xff]
        %v1581 = vld [vmem:[%s619 + $0x168] sm:$0xff]
        %v1582 = vld [vmem:[%s619 + $0x170] sm:$0xff]
        %v1583 = vpack.c.bf16 %v1552, %v1551
        %v1584 = vpack.c.bf16 %v1554, %v1553
        %v1585 = vpack.c.bf16 %v1556, %v1555
        %v1586 = vpack.c.bf16 %v1558, %v1557
        %v1587 = vpack.c.bf16 %v1560, %v1559
        %v1588 = vpack.c.bf16 %v1562, %v1561
        %v1589 = vpack.c.bf16 %v1564, %v1563
        %v1590 = vpack.c.bf16 %v1566, %v1565
        %v1591 = vpack.c.bf16 %v1568, %v1567
        %v1592 = vpack.c.bf16 %v1570, %v1569
        %v1593 = vpack.c.bf16 %v1572, %v1571
        %v1594 = vpack.c.bf16 %v1574, %v1573
        %v1595 = vpack.c.bf16 %v1576, %v1575
        %v1596 = vpack.c.bf16 %v1578, %v1577
        %v1597 = vpack.c.bf16 %v1580, %v1579
        %v1598 = vpack.c.bf16 %v1582, %v1581
        %v1599 = vld [vmem:[%s2 + $0x60] sm:$0xf]
        %v1600 = vld [vmem:[%s2 + $0x64] sm:$0xf]
        %v1601 = vld [vmem:[%s2 + $0x68] sm:$0xf]
        %v1602 = vld [vmem:[%s2 + $0x6c] sm:$0xf]
        %v1603 = vld [vmem:[%s2 + $0x70] sm:$0xf]
        %v1604 = vld [vmem:[%s2 + $0x74] sm:$0xf]
        %v1605 = vld [vmem:[%s2 + $0x78] sm:$0xf]
        %v1606 = vld [vmem:[%s2 + $0x7c] sm:$0xf]
        %v1615 = vunpack.c.l.b16 %v1599
        %v1616 = vunpack.c.l.b16 %v1600
        %v1617 = vunpack.c.l.b16 %v1601
        %v1618 = vunpack.c.l.b16 %v1602
        %v1619 = vunpack.c.l.b16 %v1603
        %v1620 = vunpack.c.l.b16 %v1604
        %v1621 = vunpack.c.l.b16 %v1605
        %v1622 = vunpack.c.l.b16 %v1606
        %v1623 = vpack.c.b16 %v1616, %v1615
        %v1624 = vpack.c.b16 %v1618, %v1617
        %v1625 = vpack.c.b16 %v1620, %v1619
        %v1626 = vpack.c.b16 %v1622, %v1621
        %v1632 = vsel %vm244, %v1583, 0
        %v1635 = vsel %vm244, %v1584, 0
        %v1638 = vsel %vm244, %v1585, 0
        %v1641 = vsel %vm244, %v1586, 0
        %v1644 = vsel %vm244, %v1587, 0
        %v1647 = vsel %vm244, %v1588, 0
        %v1650 = vsel %vm244, %v1589, 0
        %v1653 = vsel %vm244, %v1590, 0
        %v1656 = vsel %vm244, %v1591, 0
        %v1659 = vsel %vm244, %v1592, 0
        %v1662 = vsel %vm244, %v1593, 0
        %v1665 = vsel %vm244, %v1594, 0
        %v1668 = vsel %vm244, %v1595, 0
        %v1671 = vsel %vm244, %v1596, 0
        %v1674 = vsel %vm244, %v1597, 0
        %v1677 = vsel %vm244, %v1598, 0
        %1679 = vmatprep.subr.bf16.mxu0 0
        %1680 = vmatpush1.bf16.msra.mxu0 %v1623
        %1681 = vmatprep.subr.bf16.mxu0 0
        %1682 = vmatpush1.bf16.msra.mxu0 %v1624
        %1683 = vmatprep.subr.bf16.mxu0 0
        %1684 = vmatpush1.bf16.msra.mxu0 %v1625
        %1685 = vmatprep.subr.bf16.mxu0 0
        %1686 = vmatpush1.bf16.msra.mxu0 %v1626
        %1687 = vmatprep.subr.bf16.mxu0 0
        %1688 = vmatpush1.bf16.msra.mxu0 0
        %1689 = vmatprep.subr.bf16.mxu0 0
        %1690 = vmatpush1.bf16.msra.mxu0 0
        %1691 = vmatprep.subr.bf16.mxu0 0
        %1692 = vmatpush1.bf16.msra.mxu0 0
        %1693 = vmatprep.subr.bf16.mxu0 0
        %1694 = vmatpush1.bf16.msra.mxu0 0
        %1695 = vmatprep.subr.bf16.mxu0 0
        %1696 = vmatpush1.bf16.msra.mxu0 0
        %1697 = vmatprep.subr.bf16.mxu0 0
        %1698 = vmatpush1.bf16.msra.mxu0 0
        %1699 = vmatprep.subr.bf16.mxu0 0
        %1700 = vmatpush1.bf16.msra.mxu0 0
        %1701 = vmatprep.subr.bf16.mxu0 0
        %1702 = vmatpush1.bf16.msra.mxu0 0
        %1703 = vmatprep.subr.bf16.mxu0 0
        %1704 = vmatpush1.bf16.msra.mxu0 0
        %1705 = vmatprep.subr.bf16.mxu0 0
        %1706 = vmatpush1.bf16.msra.mxu0 0
        %1707 = vmatprep.subr.bf16.mxu0 0
        %1708 = vmatpush1.bf16.msra.mxu0 0
        %1709 = vmatprep.subr.bf16.mxu0 0
        %1710 = vmatpush1.bf16.msra.mxu0 0
        %1711 = vmatprep.mubr.bf16.mxu0 0
        %1712 = vmatmul.mubr.bf16.gmra.mrb[0].mxu0 %v1632
        %v1713 = vpop.f32.mrb[0].mxu0
        %v1714 = vadd.f32 0.0, %v1713
        %v1715 = vpop.f32.mrb[0].mxu0
        %v1716 = vpop.f32.mrb[0].mxu0
        %v1717 = vadd.f32 0.0, %v1716
        %v1718 = vpop.f32.mrb[0].mxu0
        %1719 = vmatprep.mubr.bf16.mxu0 0
        %1720 = vmatmul.mubr.bf16.gmra.mrb[0].mxu0 %v1635
        %v1721 = vpop.f32.mrb[0].mxu0
        %v1722 = vadd.f32 0.0, %v1721
        %v1723 = vpop.f32.mrb[0].mxu0
        %v1724 = vpop.f32.mrb[0].mxu0
        %v1725 = vadd.f32 0.0, %v1724
        %v1726 = vpop.f32.mrb[0].mxu0
        %1727 = vmatprep.mubr.bf16.mxu0 0
        %1728 = vmatmul.mubr.bf16.gmra.mrb[0].mxu0 %v1638
        %v1729 = vpop.f32.mrb[0].mxu0
        %v1730 = vadd.f32 0.0, %v1729
        %v1731 = vpop.f32.mrb[0].mxu0
        %v1732 = vpop.f32.mrb[0].mxu0
        %v1733 = vadd.f32 0.0, %v1732
        %v1734 = vpop.f32.mrb[0].mxu0
        %1735 = vmatprep.mubr.bf16.mxu0 0
        %1736 = vmatmul.mubr.bf16.gmra.mrb[0].mxu0 %v1641
        %v1737 = vpop.f32.mrb[0].mxu0
        %v1738 = vadd.f32 0.0, %v1737
        %v1739 = vpop.f32.mrb[0].mxu0
        %v1740 = vpop.f32.mrb[0].mxu0
        %v1741 = vadd.f32 0.0, %v1740
        %v1742 = vpop.f32.mrb[0].mxu0
        %1743 = vmatprep.mubr.bf16.mxu0 0
        %1744 = vmatmul.mubr.bf16.gmra.mrb[0].mxu0 %v1644
        %v1745 = vpop.f32.mrb[0].mxu0
        %v1746 = vadd.f32 0.0, %v1745
        %v1747 = vpop.f32.mrb[0].mxu0
        %v1748 = vpop.f32.mrb[0].mxu0
        %v1749 = vadd.f32 0.0, %v1748
        %v1750 = vpop.f32.mrb[0].mxu0
        %1751 = vmatprep.mubr.bf16.mxu0 0
        %1752 = vmatmul.mubr.bf16.gmra.mrb[0].mxu0 %v1647
        %v1753 = vpop.f32.mrb[0].mxu0
        %v1754 = vadd.f32 0.0, %v1753
        %v1755 = vpop.f32.mrb[0].mxu0
        %v1756 = vpop.f32.mrb[0].mxu0
        %v1757 = vadd.f32 0.0, %v1756
        %v1758 = vpop.f32.mrb[0].mxu0
        %1759 = vmatprep.mubr.bf16.mxu0 0
        %1760 = vmatmul.mubr.bf16.gmra.mrb[0].mxu0 %v1650
        %v1761 = vpop.f32.mrb[0].mxu0
        %v1762 = vadd.f32 0.0, %v1761
        %v1763 = vpop.f32.mrb[0].mxu0
        %v1764 = vpop.f32.mrb[0].mxu0
        %v1765 = vadd.f32 0.0, %v1764
        %v1766 = vpop.f32.mrb[0].mxu0
        %1767 = vmatprep.mubr.bf16.mxu0 0
        %1768 = vmatmul.mubr.bf16.gmra.mrb[0].mxu0 %v1653
        %v1769 = vpop.f32.mrb[0].mxu0
        %v1770 = vadd.f32 0.0, %v1769
        %v1771 = vpop.f32.mrb[0].mxu0
        %v1772 = vpop.f32.mrb[0].mxu0
        %v1773 = vadd.f32 0.0, %v1772
        %v1774 = vpop.f32.mrb[0].mxu0
        %1775 = vmatprep.mubr.bf16.mxu0 0
        %1776 = vmatmul.mubr.bf16.gmra.mrb[0].mxu0 %v1656
        %v1777 = vpop.f32.mrb[0].mxu0
        %v1778 = vadd.f32 0.0, %v1777
        %v1779 = vpop.f32.mrb[0].mxu0
        %v1780 = vpop.f32.mrb[0].mxu0
        %v1781 = vadd.f32 0.0, %v1780
        %v1782 = vpop.f32.mrb[0].mxu0
        %1783 = vmatprep.mubr.bf16.mxu0 0
        %1784 = vmatmul.mubr.bf16.gmra.mrb[0].mxu0 %v1659
        %v1785 = vpop.f32.mrb[0].mxu0
        %v1786 = vadd.f32 0.0, %v1785
        %v1787 = vpop.f32.mrb[0].mxu0
        %v1788 = vpop.f32.mrb[0].mxu0
        %v1789 = vadd.f32 0.0, %v1788
        %v1790 = vpop.f32.mrb[0].mxu0
        %1791 = vmatprep.mubr.bf16.mxu0 0
        %1792 = vmatmul.mubr.bf16.gmra.mrb[0].mxu0 %v1662
        %v1793 = vpop.f32.mrb[0].mxu0
        %v1794 = vadd.f32 0.0, %v1793
        %v1795 = vpop.f32.mrb[0].mxu0
        %v1796 = vpop.f32.mrb[0].mxu0
        %v1797 = vadd.f32 0.0, %v1796
        %v1798 = vpop.f32.mrb[0].mxu0
        %1799 = vmatprep.mubr.bf16.mxu0 0
        %1800 = vmatmul.mubr.bf16.gmra.mrb[0].mxu0 %v1665
        %v1801 = vpop.f32.mrb[0].mxu0
        %v1802 = vadd.f32 0.0, %v1801
        %v1803 = vpop.f32.mrb[0].mxu0
        %v1804 = vpop.f32.mrb[0].mxu0
        %v1805 = vadd.f32 0.0, %v1804
        %v1806 = vpop.f32.mrb[0].mxu0
        %1807 = vmatprep.mubr.bf16.mxu0 0
        %1808 = vmatmul.mubr.bf16.gmra.mrb[0].mxu0 %v1668
        %v1809 = vpop.f32.mrb[0].mxu0
        %v1810 = vadd.f32 0.0, %v1809
        %v1811 = vpop.f32.mrb[0].mxu0
        %v1812 = vpop.f32.mrb[0].mxu0
        %v1813 = vadd.f32 0.0, %v1812
        %v1814 = vpop.f32.mrb[0].mxu0
        %1815 = vmatprep.mubr.bf16.mxu0 0
        %1816 = vmatmul.mubr.bf16.gmra.mrb[0].mxu0 %v1671
        %v1817 = vpop.f32.mrb[0].mxu0
        %v1818 = vadd.f32 0.0, %v1817
        %v1819 = vpop.f32.mrb[0].mxu0
        %v1820 = vpop.f32.mrb[0].mxu0
        %v1821 = vadd.f32 0.0, %v1820
        %v1822 = vpop.f32.mrb[0].mxu0
        %1823 = vmatprep.mubr.bf16.mxu0 0
        %1824 = vmatmul.mubr.bf16.gmra.mrb[0].mxu0 %v1674
        %v1825 = vpop.f32.mrb[0].mxu0
        %v1826 = vadd.f32 0.0, %v1825
        %v1827 = vpop.f32.mrb[0].mxu0
        %v1828 = vpop.f32.mrb[0].mxu0
        %v1829 = vadd.f32 0.0, %v1828
        %v1830 = vpop.f32.mrb[0].mxu0
        %1831 = vmatprep.mubr.bf16.mxu0 0
        %1832 = vmatmul.mubr.bf16.gmra.mrb[0].mxu0 %v1677
        %v1833 = vpop.f32.mrb[0].mxu0
        %v1834 = vadd.f32 0.0, %v1833
        %v1835 = vpop.f32.mrb[0].mxu0
        %v1836 = vpop.f32.mrb[0].mxu0
        %v1837 = vadd.f32 0.0, %v1836
        %v1838 = vpop.f32.mrb[0].mxu0
        %1839 = vdwg.mxu0
        %v1840 = vadd.f32 %v1519, %v1714
        %v1841 = vadd.f32 %v1520, %v1717
        %v1842 = vadd.f32 %v1521, %v1722
        %v1843 = vadd.f32 %v1522, %v1725
        %v1844 = vadd.f32 %v1523, %v1730
        %v1845 = vadd.f32 %v1524, %v1733
        %v1846 = vadd.f32 %v1525, %v1738
        %v1847 = vadd.f32 %v1526, %v1741
        %v1848 = vadd.f32 %v1527, %v1746
        %v1849 = vadd.f32 %v1528, %v1749
        %v1850 = vadd.f32 %v1529, %v1754
        %v1851 = vadd.f32 %v1530, %v1757
        %v1852 = vadd.f32 %v1531, %v1762
        %v1853 = vadd.f32 %v1532, %v1765
        %v1854 = vadd.f32 %v1533, %v1770
        %v1855 = vadd.f32 %v1534, %v1773
        %v1856 = vadd.f32 %v1535, %v1778
        %v1857 = vadd.f32 %v1536, %v1781
        %v1858 = vadd.f32 %v1537, %v1786
        %v1859 = vadd.f32 %v1538, %v1789
        %v1860 = vadd.f32 %v1539, %v1794
        %v1861 = vadd.f32 %v1540, %v1797
        %v1862 = vadd.f32 %v1541, %v1802
        %v1863 = vadd.f32 %v1542, %v1805
        %v1864 = vadd.f32 %v1543, %v1810
        %v1865 = vadd.f32 %v1544, %v1813
        %v1866 = vadd.f32 %v1545, %v1818
        %v1867 = vadd.f32 %v1546, %v1821
        %v1868 = vadd.f32 %v1547, %v1826
        %v1869 = vadd.f32 %v1548, %v1829
        %v1870 = vadd.f32 %v1549, %v1834
        %v1871 = vadd.f32 %v1550, %v1837
        %v1872 = vld [vmem:[%s619 + $0x1] sm:$0xff]
        %v1873 = vld [vmem:[%s619 + $0x9] sm:$0xff]
        %v1874 = vld [vmem:[%s619 + $0x19] sm:$0xff]
        %v1875 = vld [vmem:[%s619 + $0x21] sm:$0xff]
        %v1876 = vld [vmem:[%s619 + $0x31] sm:$0xff]
        %v1877 = vld [vmem:[%s619 + $0x39] sm:$0xff]
        %v1878 = vld [vmem:[%s619 + $0x49] sm:$0xff]
        %v1879 = vld [vmem:[%s619 + $0x51] sm:$0xff]
        %v1880 = vld [vmem:[%s619 + $0x61] sm:$0xff]
        %v1881 = vld [vmem:[%s619 + $0x69] sm:$0xff]
        %v1882 = vld [vmem:[%s619 + $0x79] sm:$0xff]
        %v1883 = vld [vmem:[%s619 + $0x81] sm:$0xff]
        %v1884 = vld [vmem:[%s619 + $0x91] sm:$0xff]
        %v1885 = vld [vmem:[%s619 + $0x99] sm:$0xff]
        %v1886 = vld [vmem:[%s619 + $0xa9] sm:$0xff]
        %v1887 = vld [vmem:[%s619 + $0xb1] sm:$0xff]
        %v1888 = vld [vmem:[%s619 + $0xc1] sm:$0xff]
        %v1889 = vld [vmem:[%s619 + $0xc9] sm:$0xff]
        %v1890 = vld [vmem:[%s619 + $0xd9] sm:$0xff]
        %v1891 = vld [vmem:[%s619 + $0xe1] sm:$0xff]
        %v1892 = vld [vmem:[%s619 + $0xf1] sm:$0xff]
        %v1893 = vld [vmem:[%s619 + $0xf9] sm:$0xff]
        %v1894 = vld [vmem:[%s619 + $0x109] sm:$0xff]
        %v1895 = vld [vmem:[%s619 + $0x111] sm:$0xff]
        %v1896 = vld [vmem:[%s619 + $0x121] sm:$0xff]
        %v1897 = vld [vmem:[%s619 + $0x129] sm:$0xff]
        %v1898 = vld [vmem:[%s619 + $0x139] sm:$0xff]
        %v1899 = vld [vmem:[%s619 + $0x141] sm:$0xff]
        %v1900 = vld [vmem:[%s619 + $0x151] sm:$0xff]
        %v1901 = vld [vmem:[%s619 + $0x159] sm:$0xff]
        %v1902 = vld [vmem:[%s619 + $0x169] sm:$0xff]
        %v1903 = vld [vmem:[%s619 + $0x171] sm:$0xff]
        %v1904 = vpack.c.bf16 %v1873, %v1872
        %v1905 = vpack.c.bf16 %v1875, %v1874
        %v1906 = vpack.c.bf16 %v1877, %v1876
        %v1907 = vpack.c.bf16 %v1879, %v1878
        %v1908 = vpack.c.bf16 %v1881, %v1880
        %v1909 = vpack.c.bf16 %v1883, %v1882
        %v1910 = vpack.c.bf16 %v1885, %v1884
        %v1911 = vpack.c.bf16 %v1887, %v1886
        %v1912 = vpack.c.bf16 %v1889, %v1888
        %v1913 = vpack.c.bf16 %v1891, %v1890
        %v1914 = vpack.c.bf16 %v1893, %v1892
        %v1915 = vpack.c.bf16 %v1895, %v1894
        %v1916 = vpack.c.bf16 %v1897, %v1896
        %v1917 = vpack.c.bf16 %v1899, %v1898
        %v1918 = vpack.c.bf16 %v1901, %v1900
        %v1919 = vpack.c.bf16 %v1903, %v1902
        %v1920 = vld [vmem:[%s2 + $0x80] sm:$0xf]
        %v1921 = vld [vmem:[%s2 + $0x84] sm:$0xf]
        %v1922 = vld [vmem:[%s2 + $0x88] sm:$0xf]
        %v1923 = vld [vmem:[%s2 + $0x8c] sm:$0xf]
        %v1924 = vld [vmem:[%s2 + $0x90] sm:$0xf]
        %v1925 = vld [vmem:[%s2 + $0x94] sm:$0xf]
        %v1926 = vld [vmem:[%s2 + $0x98] sm:$0xf]
        %v1927 = vld [vmem:[%s2 + $0x9c] sm:$0xf]
        %v1936 = vunpack.c.l.b16 %v1920
        %v1937 = vunpack.c.l.b16 %v1921
        %v1938 = vunpack.c.l.b16 %v1922
        %v1939 = vunpack.c.l.b16 %v1923
        %v1940 = vunpack.c.l.b16 %v1924
        %v1941 = vunpack.c.l.b16 %v1925
        %v1942 = vunpack.c.l.b16 %v1926
        %v1943 = vunpack.c.l.b16 %v1927
        %v1944 = vpack.c.b16 %v1937, %v1936
        %v1945 = vpack.c.b16 %v1939, %v1938
        %v1946 = vpack.c.b16 %v1941, %v1940
        %v1947 = vpack.c.b16 %v1943, %v1942
        %v1953 = vsel %vm244, %v1904, 0
        %v1956 = vsel %vm244, %v1905, 0
        %v1959 = vsel %vm244, %v1906, 0
        %v1962 = vsel %vm244, %v1907, 0
        %v1965 = vsel %vm244, %v1908, 0
        %v1968 = vsel %vm244, %v1909, 0
        %v1971 = vsel %vm244, %v1910, 0
        %v1974 = vsel %vm244, %v1911, 0
        %v1977 = vsel %vm244, %v1912, 0
        %v1980 = vsel %vm244, %v1913, 0
        %v1983 = vsel %vm244, %v1914, 0
        %v1986 = vsel %vm244, %v1915, 0
        %v1989 = vsel %vm244, %v1916, 0
        %v1992 = vsel %vm244, %v1917, 0
        %v1995 = vsel %vm244, %v1918, 0
        %v1998 = vsel %vm244, %v1919, 0
        %2000 = vmatprep.subr.bf16.mxu0 0
        %2001 = vmatpush1.bf16.msra.mxu0 %v1944
        %2002 = vmatprep.subr.bf16.mxu0 0
        %2003 = vmatpush1.bf16.msra.mxu0 %v1945
        %2004 = vmatprep.subr.bf16.mxu0 0
        %2005 = vmatpush1.bf16.msra.mxu0 %v1946
        %2006 = vmatprep.subr.bf16.mxu0 0
        %2007 = vmatpush1.bf16.msra.mxu0 %v1947
        %2008 = vmatprep.subr.bf16.mxu0 0
        %2009 = vmatpush1.bf16.msra.mxu0 0
        %2010 = vmatprep.subr.bf16.mxu0 0
        %2011 = vmatpush1.bf16.msra.mxu0 0
        %2012 = vmatprep.subr.bf16.mxu0 0
        %2013 = vmatpush1.bf16.msra.mxu0 0
        %2014 = vmatprep.subr.bf16.mxu0 0
        %2015 = vmatpush1.bf16.msra.mxu0 0
        %2016 = vmatprep.subr.bf16.mxu0 0
        %2017 = vmatpush1.bf16.msra.mxu0 0
        %2018 = vmatprep.subr.bf16.mxu0 0
        %2019 = vmatpush1.bf16.msra.mxu0 0
        %2020 = vmatprep.subr.bf16.mxu0 0
        %2021 = vmatpush1.bf16.msra.mxu0 0
        %2022 = vmatprep.subr.bf16.mxu0 0
        %2023 = vmatpush1.bf16.msra.mxu0 0
        %2024 = vmatprep.subr.bf16.mxu0 0
        %2025 = vmatpush1.bf16.msra.mxu0 0
        %2026 = vmatprep.subr.bf16.mxu0 0
        %2027 = vmatpush1.bf16.msra.mxu0 0
        %2028 = vmatprep.subr.bf16.mxu0 0
        %2029 = vmatpush1.bf16.msra.mxu0 0
        %2030 = vmatprep.subr.bf16.mxu0 0
        %2031 = vmatpush1.bf16.msra.mxu0 0
        %2032 = vmatprep.mubr.bf16.mxu0 0
        %2033 = vmatmul.mubr.bf16.gmra.mrb[0].mxu0 %v1953
        %v2034 = vpop.f32.mrb[0].mxu0
        %v2035 = vadd.f32 0.0, %v2034
        %v2036 = vpop.f32.mrb[0].mxu0
        %v2037 = vpop.f32.mrb[0].mxu0
        %v2038 = vadd.f32 0.0, %v2037
        %v2039 = vpop.f32.mrb[0].mxu0
        %2040 = vmatprep.mubr.bf16.mxu0 0
        %2041 = vmatmul.mubr.bf16.gmra.mrb[0].mxu0 %v1956
        %v2042 = vpop.f32.mrb[0].mxu0
        %v2043 = vadd.f32 0.0, %v2042
        %v2044 = vpop.f32.mrb[0].mxu0
        %v2045 = vpop.f32.mrb[0].mxu0
        %v2046 = vadd.f32 0.0, %v2045
        %v2047 = vpop.f32.mrb[0].mxu0
        %2048 = vmatprep.mubr.bf16.mxu0 0
        %2049 = vmatmul.mubr.bf16.gmra.mrb[0].mxu0 %v1959
        %v2050 = vpop.f32.mrb[0].mxu0
        %v2051 = vadd.f32 0.0, %v2050
        %v2052 = vpop.f32.mrb[0].mxu0
        %v2053 = vpop.f32.mrb[0].mxu0
        %v2054 = vadd.f32 0.0, %v2053
        %v2055 = vpop.f32.mrb[0].mxu0
        %2056 = vmatprep.mubr.bf16.mxu0 0
        %2057 = vmatmul.mubr.bf16.gmra.mrb[0].mxu0 %v1962
        %v2058 = vpop.f32.mrb[0].mxu0
        %v2059 = vadd.f32 0.0, %v2058
        %v2060 = vpop.f32.mrb[0].mxu0
        %v2061 = vpop.f32.mrb[0].mxu0
        %v2062 = vadd.f32 0.0, %v2061
        %v2063 = vpop.f32.mrb[0].mxu0
        %2064 = vmatprep.mubr.bf16.mxu0 0
        %2065 = vmatmul.mubr.bf16.gmra.mrb[0].mxu0 %v1965
        %v2066 = vpop.f32.mrb[0].mxu0
        %v2067 = vadd.f32 0.0, %v2066
        %v2068 = vpop.f32.mrb[0].mxu0
        %v2069 = vpop.f32.mrb[0].mxu0
        %v2070 = vadd.f32 0.0, %v2069
        %v2071 = vpop.f32.mrb[0].mxu0
        %2072 = vmatprep.mubr.bf16.mxu0 0
        %2073 = vmatmul.mubr.bf16.gmra.mrb[0].mxu0 %v1968
        %v2074 = vpop.f32.mrb[0].mxu0
        %v2075 = vadd.f32 0.0, %v2074
        %v2076 = vpop.f32.mrb[0].mxu0
        %v2077 = vpop.f32.mrb[0].mxu0
        %v2078 = vadd.f32 0.0, %v2077
        %v2079 = vpop.f32.mrb[0].mxu0
        %2080 = vmatprep.mubr.bf16.mxu0 0
        %2081 = vmatmul.mubr.bf16.gmra.mrb[0].mxu0 %v1971
        %v2082 = vpop.f32.mrb[0].mxu0
        %v2083 = vadd.f32 0.0, %v2082
        %v2084 = vpop.f32.mrb[0].mxu0
        %v2085 = vpop.f32.mrb[0].mxu0
        %v2086 = vadd.f32 0.0, %v2085
        %v2087 = vpop.f32.mrb[0].mxu0
        %2088 = vmatprep.mubr.bf16.mxu0 0
        %2089 = vmatmul.mubr.bf16.gmra.mrb[0].mxu0 %v1974
        %v2090 = vpop.f32.mrb[0].mxu0
        %v2091 = vadd.f32 0.0, %v2090
        %v2092 = vpop.f32.mrb[0].mxu0
        %v2093 = vpop.f32.mrb[0].mxu0
        %v2094 = vadd.f32 0.0, %v2093
        %v2095 = vpop.f32.mrb[0].mxu0
        %2096 = vmatprep.mubr.bf16.mxu0 0
        %2097 = vmatmul.mubr.bf16.gmra.mrb[0].mxu0 %v1977
        %v2098 = vpop.f32.mrb[0].mxu0
        %v2099 = vadd.f32 0.0, %v2098
        %v2100 = vpop.f32.mrb[0].mxu0
        %v2101 = vpop.f32.mrb[0].mxu0
        %v2102 = vadd.f32 0.0, %v2101
        %v2103 = vpop.f32.mrb[0].mxu0
        %2104 = vmatprep.mubr.bf16.mxu0 0
        %2105 = vmatmul.mubr.bf16.gmra.mrb[0].mxu0 %v1980
        %v2106 = vpop.f32.mrb[0].mxu0
        %v2107 = vadd.f32 0.0, %v2106
        %v2108 = vpop.f32.mrb[0].mxu0
        %v2109 = vpop.f32.mrb[0].mxu0
        %v2110 = vadd.f32 0.0, %v2109
        %v2111 = vpop.f32.mrb[0].mxu0
        %2112 = vmatprep.mubr.bf16.mxu0 0
        %2113 = vmatmul.mubr.bf16.gmra.mrb[0].mxu0 %v1983
        %v2114 = vpop.f32.mrb[0].mxu0
        %v2115 = vadd.f32 0.0, %v2114
        %v2116 = vpop.f32.mrb[0].mxu0
        %v2117 = vpop.f32.mrb[0].mxu0
        %v2118 = vadd.f32 0.0, %v2117
        %v2119 = vpop.f32.mrb[0].mxu0
        %2120 = vmatprep.mubr.bf16.mxu0 0
        %2121 = vmatmul.mubr.bf16.gmra.mrb[0].mxu0 %v1986
        %v2122 = vpop.f32.mrb[0].mxu0
        %v2123 = vadd.f32 0.0, %v2122
        %v2124 = vpop.f32.mrb[0].mxu0
        %v2125 = vpop.f32.mrb[0].mxu0
        %v2126 = vadd.f32 0.0, %v2125
        %v2127 = vpop.f32.mrb[0].mxu0
        %2128 = vmatprep.mubr.bf16.mxu0 0
        %2129 = vmatmul.mubr.bf16.gmra.mrb[0].mxu0 %v1989
        %v2130 = vpop.f32.mrb[0].mxu0
        %v2131 = vadd.f32 0.0, %v2130
        %v2132 = vpop.f32.mrb[0].mxu0
        %v2133 = vpop.f32.mrb[0].mxu0
        %v2134 = vadd.f32 0.0, %v2133
        %v2135 = vpop.f32.mrb[0].mxu0
        %2136 = vmatprep.mubr.bf16.mxu0 0
        %2137 = vmatmul.mubr.bf16.gmra.mrb[0].mxu0 %v1992
        %v2138 = vpop.f32.mrb[0].mxu0
        %v2139 = vadd.f32 0.0, %v2138
        %v2140 = vpop.f32.mrb[0].mxu0
        %v2141 = vpop.f32.mrb[0].mxu0
        %v2142 = vadd.f32 0.0, %v2141
        %v2143 = vpop.f32.mrb[0].mxu0
        %2144 = vmatprep.mubr.bf16.mxu0 0
        %2145 = vmatmul.mubr.bf16.gmra.mrb[0].mxu0 %v1995
        %v2146 = vpop.f32.mrb[0].mxu0
        %v2147 = vadd.f32 0.0, %v2146
        %v2148 = vpop.f32.mrb[0].mxu0
        %v2149 = vpop.f32.mrb[0].mxu0
        %v2150 = vadd.f32 0.0, %v2149
        %v2151 = vpop.f32.mrb[0].mxu0
        %2152 = vmatprep.mubr.bf16.mxu0 0
        %2153 = vmatmul.mubr.bf16.gmra.mrb[0].mxu0 %v1998
        %v2154 = vpop.f32.mrb[0].mxu0
        %v2155 = vadd.f32 0.0, %v2154
        %v2156 = vpop.f32.mrb[0].mxu0
        %v2157 = vpop.f32.mrb[0].mxu0
        %v2158 = vadd.f32 0.0, %v2157
        %v2159 = vpop.f32.mrb[0].mxu0
        %2160 = vdwg.mxu0
        %v2161 = vadd.f32 %v1840, %v2035
        %v2162 = vadd.f32 %v1841, %v2038
        %v2163 = vadd.f32 %v1842, %v2043
        %v2164 = vadd.f32 %v1843, %v2046
        %v2165 = vadd.f32 %v1844, %v2051
        %v2166 = vadd.f32 %v1845, %v2054
        %v2167 = vadd.f32 %v1846, %v2059
        %v2168 = vadd.f32 %v1847, %v2062
        %v2169 = vadd.f32 %v1848, %v2067
        %v2170 = vadd.f32 %v1849, %v2070
        %v2171 = vadd.f32 %v1850, %v2075
        %v2172 = vadd.f32 %v1851, %v2078
        %v2173 = vadd.f32 %v1852, %v2083
        %v2174 = vadd.f32 %v1853, %v2086
        %v2175 = vadd.f32 %v1854, %v2091
        %v2176 = vadd.f32 %v1855, %v2094
        %v2177 = vadd.f32 %v1856, %v2099
        %v2178 = vadd.f32 %v1857, %v2102
        %v2179 = vadd.f32 %v1858, %v2107
        %v2180 = vadd.f32 %v1859, %v2110
        %v2181 = vadd.f32 %v1860, %v2115
        %v2182 = vadd.f32 %v1861, %v2118
        %v2183 = vadd.f32 %v1862, %v2123
        %v2184 = vadd.f32 %v1863, %v2126
        %v2185 = vadd.f32 %v1864, %v2131
        %v2186 = vadd.f32 %v1865, %v2134
        %v2187 = vadd.f32 %v1866, %v2139
        %v2188 = vadd.f32 %v1867, %v2142
        %v2189 = vadd.f32 %v1868, %v2147
        %v2190 = vadd.f32 %v1869, %v2150
        %v2191 = vadd.f32 %v1870, %v2155
        %v2192 = vadd.f32 %v1871, %v2158
        %v2193 = vld [vmem:[%s619 + $0x2] sm:$0xff]
        %v2194 = vld [vmem:[%s619 + $0xa] sm:$0xff]
        %v2195 = vld [vmem:[%s619 + $0x1a] sm:$0xff]
        %v2196 = vld [vmem:[%s619 + $0x22] sm:$0xff]
        %v2197 = vld [vmem:[%s619 + $0x32] sm:$0xff]
        %v2198 = vld [vmem:[%s619 + $0x3a] sm:$0xff]
        %v2199 = vld [vmem:[%s619 + $0x4a] sm:$0xff]
        %v2200 = vld [vmem:[%s619 + $0x52] sm:$0xff]
        %v2201 = vld [vmem:[%s619 + $0x62] sm:$0xff]
        %v2202 = vld [vmem:[%s619 + $0x6a] sm:$0xff]
        %v2203 = vld [vmem:[%s619 + $0x7a] sm:$0xff]
        %v2204 = vld [vmem:[%s619 + $0x82] sm:$0xff]
        %v2205 = vld [vmem:[%s619 + $0x92] sm:$0xff]
        %v2206 = vld [vmem:[%s619 + $0x9a] sm:$0xff]
        %v2207 = vld [vmem:[%s619 + $0xaa] sm:$0xff]
        %v2208 = vld [vmem:[%s619 + $0xb2] sm:$0xff]
        %v2209 = vld [vmem:[%s619 + $0xc2] sm:$0xff]
        %v2210 = vld [vmem:[%s619 + $0xca] sm:$0xff]
        %v2211 = vld [vmem:[%s619 + $0xda] sm:$0xff]
        %v2212 = vld [vmem:[%s619 + $0xe2] sm:$0xff]
        %v2213 = vld [vmem:[%s619 + $0xf2] sm:$0xff]
        %v2214 = vld [vmem:[%s619 + $0xfa] sm:$0xff]
        %v2215 = vld [vmem:[%s619 + $0x10a] sm:$0xff]
        %v2216 = vld [vmem:[%s619 + $0x112] sm:$0xff]
        %v2217 = vld [vmem:[%s619 + $0x122] sm:$0xff]
        %v2218 = vld [vmem:[%s619 + $0x12a] sm:$0xff]
        %v2219 = vld [vmem:[%s619 + $0x13a] sm:$0xff]
        %v2220 = vld [vmem:[%s619 + $0x142] sm:$0xff]
        %v2221 = vld [vmem:[%s619 + $0x152] sm:$0xff]
        %v2222 = vld [vmem:[%s619 + $0x15a] sm:$0xff]
        %v2223 = vld [vmem:[%s619 + $0x16a] sm:$0xff]
        %v2224 = vld [vmem:[%s619 + $0x172] sm:$0xff]
        %v2225 = vpack.c.bf16 %v2194, %v2193
        %v2226 = vpack.c.bf16 %v2196, %v2195
        %v2227 = vpack.c.bf16 %v2198, %v2197
        %v2228 = vpack.c.bf16 %v2200, %v2199
        %v2229 = vpack.c.bf16 %v2202, %v2201
        %v2230 = vpack.c.bf16 %v2204, %v2203
        %v2231 = vpack.c.bf16 %v2206, %v2205
        %v2232 = vpack.c.bf16 %v2208, %v2207
        %v2233 = vpack.c.bf16 %v2210, %v2209
        %v2234 = vpack.c.bf16 %v2212, %v2211
        %v2235 = vpack.c.bf16 %v2214, %v2213
        %v2236 = vpack.c.bf16 %v2216, %v2215
        %v2237 = vpack.c.bf16 %v2218, %v2217
        %v2238 = vpack.c.bf16 %v2220, %v2219
        %v2239 = vpack.c.bf16 %v2222, %v2221
        %v2240 = vpack.c.bf16 %v2224, %v2223
        %v2241 = vld [vmem:[%s2 + $0xa0] sm:$0xf]
        %v2242 = vld [vmem:[%s2 + $0xa4] sm:$0xf]
        %v2243 = vld [vmem:[%s2 + $0xa8] sm:$0xf]
        %v2244 = vld [vmem:[%s2 + $0xac] sm:$0xf]
        %v2245 = vld [vmem:[%s2 + $0xb0] sm:$0xf]
        %v2246 = vld [vmem:[%s2 + $0xb4] sm:$0xf]
        %v2247 = vld [vmem:[%s2 + $0xb8] sm:$0xf]
        %v2248 = vld [vmem:[%s2 + $0xbc] sm:$0xf]
        %v2257 = vunpack.c.l.b16 %v2241
        %v2258 = vunpack.c.l.b16 %v2242
        %v2259 = vunpack.c.l.b16 %v2243
        %v2260 = vunpack.c.l.b16 %v2244
        %v2261 = vunpack.c.l.b16 %v2245
        %v2262 = vunpack.c.l.b16 %v2246
        %v2263 = vunpack.c.l.b16 %v2247
        %v2264 = vunpack.c.l.b16 %v2248
        %v2265 = vpack.c.b16 %v2258, %v2257
        %v2266 = vpack.c.b16 %v2260, %v2259
        %v2267 = vpack.c.b16 %v2262, %v2261
        %v2268 = vpack.c.b16 %v2264, %v2263
        %v2274 = vsel %vm244, %v2225, 0
        %v2277 = vsel %vm244, %v2226, 0
        %v2280 = vsel %vm244, %v2227, 0
        %v2283 = vsel %vm244, %v2228, 0
        %v2286 = vsel %vm244, %v2229, 0
        %v2289 = vsel %vm244, %v2230, 0
        %v2292 = vsel %vm244, %v2231, 0
        %v2295 = vsel %vm244, %v2232, 0
        %v2298 = vsel %vm244, %v2233, 0
        %v2301 = vsel %vm244, %v2234, 0
        %v2304 = vsel %vm244, %v2235, 0
        %v2307 = vsel %vm244, %v2236, 0
        %v2310 = vsel %vm244, %v2237, 0
        %v2313 = vsel %vm244, %v2238, 0
        %v2316 = vsel %vm244, %v2239, 0
        %v2319 = vsel %vm244, %v2240, 0
        %2321 = vmatprep.subr.bf16.mxu0 0
        %2322 = vmatpush1.bf16.msra.mxu0 %v2265
        %2323 = vmatprep.subr.bf16.mxu0 0
        %2324 = vmatpush1.bf16.msra.mxu0 %v2266
        %2325 = vmatprep.subr.bf16.mxu0 0
        %2326 = vmatpush1.bf16.msra.mxu0 %v2267
        %2327 = vmatprep.subr.bf16.mxu0 0
        %2328 = vmatpush1.bf16.msra.mxu0 %v2268
        %2329 = vmatprep.subr.bf16.mxu0 0
        %2330 = vmatpush1.bf16.msra.mxu0 0
        %2331 = vmatprep.subr.bf16.mxu0 0
        %2332 = vmatpush1.bf16.msra.mxu0 0
        %2333 = vmatprep.subr.bf16.mxu0 0
        %2334 = vmatpush1.bf16.msra.mxu0 0
        %2335 = vmatprep.subr.bf16.mxu0 0
        %2336 = vmatpush1.bf16.msra.mxu0 0
        %2337 = vmatprep.subr.bf16.mxu0 0
        %2338 = vmatpush1.bf16.msra.mxu0 0
        %2339 = vmatprep.subr.bf16.mxu0 0
        %2340 = vmatpush1.bf16.msra.mxu0 0
        %2341 = vmatprep.subr.bf16.mxu0 0
        %2342 = vmatpush1.bf16.msra.mxu0 0
        %2343 = vmatprep.subr.bf16.mxu0 0
        %2344 = vmatpush1.bf16.msra.mxu0 0
        %2345 = vmatprep.subr.bf16.mxu0 0
        %2346 = vmatpush1.bf16.msra.mxu0 0
        %2347 = vmatprep.subr.bf16.mxu0 0
        %2348 = vmatpush1.bf16.msra.mxu0 0
        %2349 = vmatprep.subr.bf16.mxu0 0
        %2350 = vmatpush1.bf16.msra.mxu0 0
        %2351 = vmatprep.subr.bf16.mxu0 0
        %2352 = vmatpush1.bf16.msra.mxu0 0
        %2353 = vmatprep.mubr.bf16.mxu0 0
        %2354 = vmatmul.mubr.bf16.gmra.mrb[0].mxu0 %v2274
        %v2355 = vpop.f32.mrb[0].mxu0
        %v2356 = vadd.f32 0.0, %v2355
        %v2357 = vpop.f32.mrb[0].mxu0
        %v2358 = vpop.f32.mrb[0].mxu0
        %v2359 = vadd.f32 0.0, %v2358
        %v2360 = vpop.f32.mrb[0].mxu0
        %2361 = vmatprep.mubr.bf16.mxu0 0
        %2362 = vmatmul.mubr.bf16.gmra.mrb[0].mxu0 %v2277
        %v2363 = vpop.f32.mrb[0].mxu0
        %v2364 = vadd.f32 0.0, %v2363
        %v2365 = vpop.f32.mrb[0].mxu0
        %v2366 = vpop.f32.mrb[0].mxu0
        %v2367 = vadd.f32 0.0, %v2366
        %v2368 = vpop.f32.mrb[0].mxu0
        %2369 = vmatprep.mubr.bf16.mxu0 0
        %2370 = vmatmul.mubr.bf16.gmra.mrb[0].mxu0 %v2280
        %v2371 = vpop.f32.mrb[0].mxu0
        %v2372 = vadd.f32 0.0, %v2371
        %v2373 = vpop.f32.mrb[0].mxu0
        %v2374 = vpop.f32.mrb[0].mxu0
        %v2375 = vadd.f32 0.0, %v2374
        %v2376 = vpop.f32.mrb[0].mxu0
        %2377 = vmatprep.mubr.bf16.mxu0 0
        %2378 = vmatmul.mubr.bf16.gmra.mrb[0].mxu0 %v2283
        %v2379 = vpop.f32.mrb[0].mxu0
        %v2380 = vadd.f32 0.0, %v2379
        %v2381 = vpop.f32.mrb[0].mxu0
        %v2382 = vpop.f32.mrb[0].mxu0
        %v2383 = vadd.f32 0.0, %v2382
        %v2384 = vpop.f32.mrb[0].mxu0
        %2385 = vmatprep.mubr.bf16.mxu0 0
        %2386 = vmatmul.mubr.bf16.gmra.mrb[0].mxu0 %v2286
        %v2387 = vpop.f32.mrb[0].mxu0
        %v2388 = vadd.f32 0.0, %v2387
        %v2389 = vpop.f32.mrb[0].mxu0
        %v2390 = vpop.f32.mrb[0].mxu0
        %v2391 = vadd.f32 0.0, %v2390
        %v2392 = vpop.f32.mrb[0].mxu0
        %2393 = vmatprep.mubr.bf16.mxu0 0
        %2394 = vmatmul.mubr.bf16.gmra.mrb[0].mxu0 %v2289
        %v2395 = vpop.f32.mrb[0].mxu0
        %v2396 = vadd.f32 0.0, %v2395
        %v2397 = vpop.f32.mrb[0].mxu0
        %v2398 = vpop.f32.mrb[0].mxu0
        %v2399 = vadd.f32 0.0, %v2398
        %v2400 = vpop.f32.mrb[0].mxu0
        %2401 = vmatprep.mubr.bf16.mxu0 0
        %2402 = vmatmul.mubr.bf16.gmra.mrb[0].mxu0 %v2292
        %v2403 = vpop.f32.mrb[0].mxu0
        %v2404 = vadd.f32 0.0, %v2403
        %v2405 = vpop.f32.mrb[0].mxu0
        %v2406 = vpop.f32.mrb[0].mxu0
        %v2407 = vadd.f32 0.0, %v2406
        %v2408 = vpop.f32.mrb[0].mxu0
        %2409 = vmatprep.mubr.bf16.mxu0 0
        %2410 = vmatmul.mubr.bf16.gmra.mrb[0].mxu0 %v2295
        %v2411 = vpop.f32.mrb[0].mxu0
        %v2412 = vadd.f32 0.0, %v2411
        %v2413 = vpop.f32.mrb[0].mxu0
        %v2414 = vpop.f32.mrb[0].mxu0
        %v2415 = vadd.f32 0.0, %v2414
        %v2416 = vpop.f32.mrb[0].mxu0
        %2417 = vmatprep.mubr.bf16.mxu0 0
        %2418 = vmatmul.mubr.bf16.gmra.mrb[0].mxu0 %v2298
        %v2419 = vpop.f32.mrb[0].mxu0
        %v2420 = vadd.f32 0.0, %v2419
        %v2421 = vpop.f32.mrb[0].mxu0
        %v2422 = vpop.f32.mrb[0].mxu0
        %v2423 = vadd.f32 0.0, %v2422
        %v2424 = vpop.f32.mrb[0].mxu0
        %2425 = vmatprep.mubr.bf16.mxu0 0
        %2426 = vmatmul.mubr.bf16.gmra.mrb[0].mxu0 %v2301
        %v2427 = vpop.f32.mrb[0].mxu0
        %v2428 = vadd.f32 0.0, %v2427
        %v2429 = vpop.f32.mrb[0].mxu0
        %v2430 = vpop.f32.mrb[0].mxu0
        %v2431 = vadd.f32 0.0, %v2430
        %v2432 = vpop.f32.mrb[0].mxu0
        %2433 = vmatprep.mubr.bf16.mxu0 0
        %2434 = vmatmul.mubr.bf16.gmra.mrb[0].mxu0 %v2304
        %v2435 = vpop.f32.mrb[0].mxu0
        %v2436 = vadd.f32 0.0, %v2435
        %v2437 = vpop.f32.mrb[0].mxu0
        %v2438 = vpop.f32.mrb[0].mxu0
        %v2439 = vadd.f32 0.0, %v2438
        %v2440 = vpop.f32.mrb[0].mxu0
        %2441 = vmatprep.mubr.bf16.mxu0 0
        %2442 = vmatmul.mubr.bf16.gmra.mrb[0].mxu0 %v2307
        %v2443 = vpop.f32.mrb[0].mxu0
        %v2444 = vadd.f32 0.0, %v2443
        %v2445 = vpop.f32.mrb[0].mxu0
        %v2446 = vpop.f32.mrb[0].mxu0
        %v2447 = vadd.f32 0.0, %v2446
        %v2448 = vpop.f32.mrb[0].mxu0
        %2449 = vmatprep.mubr.bf16.mxu0 0
        %2450 = vmatmul.mubr.bf16.gmra.mrb[0].mxu0 %v2310
        %v2451 = vpop.f32.mrb[0].mxu0
        %v2452 = vadd.f32 0.0, %v2451
        %v2453 = vpop.f32.mrb[0].mxu0
        %v2454 = vpop.f32.mrb[0].mxu0
        %v2455 = vadd.f32 0.0, %v2454
        %v2456 = vpop.f32.mrb[0].mxu0
        %2457 = vmatprep.mubr.bf16.mxu0 0
        %2458 = vmatmul.mubr.bf16.gmra.mrb[0].mxu0 %v2313
        %v2459 = vpop.f32.mrb[0].mxu0
        %v2460 = vadd.f32 0.0, %v2459
        %v2461 = vpop.f32.mrb[0].mxu0
        %v2462 = vpop.f32.mrb[0].mxu0
        %v2463 = vadd.f32 0.0, %v2462
        %v2464 = vpop.f32.mrb[0].mxu0
        %2465 = vmatprep.mubr.bf16.mxu0 0
        %2466 = vmatmul.mubr.bf16.gmra.mrb[0].mxu0 %v2316
        %v2467 = vpop.f32.mrb[0].mxu0
        %v2468 = vadd.f32 0.0, %v2467
        %v2469 = vpop.f32.mrb[0].mxu0
        %v2470 = vpop.f32.mrb[0].mxu0
        %v2471 = vadd.f32 0.0, %v2470
        %v2472 = vpop.f32.mrb[0].mxu0
        %2473 = vmatprep.mubr.bf16.mxu0 0
        %2474 = vmatmul.mubr.bf16.gmra.mrb[0].mxu0 %v2319
        %v2475 = vpop.f32.mrb[0].mxu0
        %v2476 = vadd.f32 0.0, %v2475
        %v2477 = vpop.f32.mrb[0].mxu0
        %v2478 = vpop.f32.mrb[0].mxu0
        %v2479 = vadd.f32 0.0, %v2478
        %v2480 = vpop.f32.mrb[0].mxu0
        %2481 = vdwg.mxu0
        %v2482 = vadd.f32 %v2161, %v2356
        %v2483 = vadd.f32 %v2162, %v2359
        %v2484 = vadd.f32 %v2163, %v2364
        %v2485 = vadd.f32 %v2164, %v2367
        %v2486 = vadd.f32 %v2165, %v2372
        %v2487 = vadd.f32 %v2166, %v2375
        %v2488 = vadd.f32 %v2167, %v2380
        %v2489 = vadd.f32 %v2168, %v2383
        %v2490 = vadd.f32 %v2169, %v2388
        %v2491 = vadd.f32 %v2170, %v2391
        %v2492 = vadd.f32 %v2171, %v2396
        %v2493 = vadd.f32 %v2172, %v2399
        %v2494 = vadd.f32 %v2173, %v2404
        %v2495 = vadd.f32 %v2174, %v2407
        %v2496 = vadd.f32 %v2175, %v2412
        %v2497 = vadd.f32 %v2176, %v2415
        %v2498 = vadd.f32 %v2177, %v2420
        %v2499 = vadd.f32 %v2178, %v2423
        %v2500 = vadd.f32 %v2179, %v2428
        %v2501 = vadd.f32 %v2180, %v2431
        %v2502 = vadd.f32 %v2181, %v2436
        %v2503 = vadd.f32 %v2182, %v2439
        %v2504 = vadd.f32 %v2183, %v2444
        %v2505 = vadd.f32 %v2184, %v2447
        %v2506 = vadd.f32 %v2185, %v2452
        %v2507 = vadd.f32 %v2186, %v2455
        %v2508 = vadd.f32 %v2187, %v2460
        %v2509 = vadd.f32 %v2188, %v2463
        %v2510 = vadd.f32 %v2189, %v2468
        %v2511 = vadd.f32 %v2190, %v2471
        %v2512 = vadd.f32 %v2191, %v2476
        %v2513 = vadd.f32 %v2192, %v2479
        %s2514 = scalar_lea.vmem [#allocation2], 48
        %v2515 = vld [vmem:[%s2514] sm:$0xff]
        %v2516 = vld [vmem:[%s2514 + $0x8] sm:$0xff]
        %v2517 = vld [vmem:[%s2514 + $0x18] sm:$0xff]
        %v2518 = vld [vmem:[%s2514 + $0x20] sm:$0xff]
        %v2519 = vld [vmem:[%s2514 + $0x30] sm:$0xff]
        %v2520 = vld [vmem:[%s2514 + $0x38] sm:$0xff]
        %v2521 = vld [vmem:[%s2514 + $0x48] sm:$0xff]
        %v2522 = vld [vmem:[%s2514 + $0x50] sm:$0xff]
        %v2523 = vld [vmem:[%s2514 + $0x60] sm:$0xff]
        %v2524 = vld [vmem:[%s2514 + $0x68] sm:$0xff]
        %v2525 = vld [vmem:[%s2514 + $0x78] sm:$0xff]
        %v2526 = vld [vmem:[%s2514 + $0x80] sm:$0xff]
        %v2527 = vld [vmem:[%s2514 + $0x90] sm:$0xff]
        %v2528 = vld [vmem:[%s2514 + $0x98] sm:$0xff]
        %v2529 = vld [vmem:[%s2514 + $0xa8] sm:$0xff]
        %v2530 = vld [vmem:[%s2514 + $0xb0] sm:$0xff]
        %v2531 = vld [vmem:[%s2514 + $0xc0] sm:$0xff]
        %v2532 = vld [vmem:[%s2514 + $0xc8] sm:$0xff]
        %v2533 = vld [vmem:[%s2514 + $0xd8] sm:$0xff]
        %v2534 = vld [vmem:[%s2514 + $0xe0] sm:$0xff]
        %v2535 = vld [vmem:[%s2514 + $0xf0] sm:$0xff]
        %v2536 = vld [vmem:[%s2514 + $0xf8] sm:$0xff]
        %v2537 = vld [vmem:[%s2514 + $0x108] sm:$0xff]
        %v2538 = vld [vmem:[%s2514 + $0x110] sm:$0xff]
        %v2539 = vld [vmem:[%s2514 + $0x120] sm:$0xff]
        %v2540 = vld [vmem:[%s2514 + $0x128] sm:$0xff]
        %v2541 = vld [vmem:[%s2514 + $0x138] sm:$0xff]
        %v2542 = vld [vmem:[%s2514 + $0x140] sm:$0xff]
        %v2543 = vld [vmem:[%s2514 + $0x150] sm:$0xff]
        %v2544 = vld [vmem:[%s2514 + $0x158] sm:$0xff]
        %v2545 = vld [vmem:[%s2514 + $0x168] sm:$0xff]
        %v2546 = vld [vmem:[%s2514 + $0x170] sm:$0xff]
        %v2547 = vpack.c.bf16 %v2516, %v2515
        %v2548 = vpack.c.bf16 %v2518, %v2517
        %v2549 = vpack.c.bf16 %v2520, %v2519
        %v2550 = vpack.c.bf16 %v2522, %v2521
        %v2551 = vpack.c.bf16 %v2524, %v2523
        %v2552 = vpack.c.bf16 %v2526, %v2525
        %v2553 = vpack.c.bf16 %v2528, %v2527
        %v2554 = vpack.c.bf16 %v2530, %v2529
        %v2555 = vpack.c.bf16 %v2532, %v2531
        %v2556 = vpack.c.bf16 %v2534, %v2533
        %v2557 = vpack.c.bf16 %v2536, %v2535
        %v2558 = vpack.c.bf16 %v2538, %v2537
        %v2559 = vpack.c.bf16 %v2540, %v2539
        %v2560 = vpack.c.bf16 %v2542, %v2541
        %v2561 = vpack.c.bf16 %v2544, %v2543
        %v2562 = vpack.c.bf16 %v2546, %v2545
        %v2563 = vld [vmem:[%s2 + $0xc0] sm:$0xf]
        %v2564 = vld [vmem:[%s2 + $0xc4] sm:$0xf]
        %v2565 = vld [vmem:[%s2 + $0xc8] sm:$0xf]
        %v2566 = vld [vmem:[%s2 + $0xcc] sm:$0xf]
        %v2567 = vld [vmem:[%s2 + $0xd0] sm:$0xf]
        %v2568 = vld [vmem:[%s2 + $0xd4] sm:$0xf]
        %v2569 = vld [vmem:[%s2 + $0xd8] sm:$0xf]
        %v2570 = vld [vmem:[%s2 + $0xdc] sm:$0xf]
        %v2579 = vunpack.c.l.b16 %v2563
        %v2580 = vunpack.c.l.b16 %v2564
        %v2581 = vunpack.c.l.b16 %v2565
        %v2582 = vunpack.c.l.b16 %v2566
        %v2583 = vunpack.c.l.b16 %v2567
        %v2584 = vunpack.c.l.b16 %v2568
        %v2585 = vunpack.c.l.b16 %v2569
        %v2586 = vunpack.c.l.b16 %v2570
        %v2587 = vpack.c.b16 %v2580, %v2579
        %v2588 = vpack.c.b16 %v2582, %v2581
        %v2589 = vpack.c.b16 %v2584, %v2583
        %v2590 = vpack.c.b16 %v2586, %v2585
        %v2596 = vsel %vm244, %v2547, 0
        %v2599 = vsel %vm244, %v2548, 0
        %v2602 = vsel %vm244, %v2549, 0
        %v2605 = vsel %vm244, %v2550, 0
        %v2608 = vsel %vm244, %v2551, 0
        %v2611 = vsel %vm244, %v2552, 0
        %v2614 = vsel %vm244, %v2553, 0
        %v2617 = vsel %vm244, %v2554, 0
        %v2620 = vsel %vm244, %v2555, 0
        %v2623 = vsel %vm244, %v2556, 0
        %v2626 = vsel %vm244, %v2557, 0
        %v2629 = vsel %vm244, %v2558, 0
        %v2632 = vsel %vm244, %v2559, 0
        %v2635 = vsel %vm244, %v2560, 0
        %v2638 = vsel %vm244, %v2561, 0
        %v2641 = vsel %vm244, %v2562, 0
        %2643 = vmatprep.subr.bf16.mxu0 0
        %2644 = vmatpush1.bf16.msra.mxu0 %v2587
        %2645 = vmatprep.subr.bf16.mxu0 0
        %2646 = vmatpush1.bf16.msra.mxu0 %v2588
        %2647 = vmatprep.subr.bf16.mxu0 0
        %2648 = vmatpush1.bf16.msra.mxu0 %v2589
        %2649 = vmatprep.subr.bf16.mxu0 0
        %2650 = vmatpush1.bf16.msra.mxu0 %v2590
        %2651 = vmatprep.subr.bf16.mxu0 0
        %2652 = vmatpush1.bf16.msra.mxu0 0
        %2653 = vmatprep.subr.bf16.mxu0 0
        %2654 = vmatpush1.bf16.msra.mxu0 0
        %2655 = vmatprep.subr.bf16.mxu0 0
        %2656 = vmatpush1.bf16.msra.mxu0 0
        %2657 = vmatprep.subr.bf16.mxu0 0
        %2658 = vmatpush1.bf16.msra.mxu0 0
        %2659 = vmatprep.subr.bf16.mxu0 0
        %2660 = vmatpush1.bf16.msra.mxu0 0
        %2661 = vmatprep.subr.bf16.mxu0 0
        %2662 = vmatpush1.bf16.msra.mxu0 0
        %2663 = vmatprep.subr.bf16.mxu0 0
        %2664 = vmatpush1.bf16.msra.mxu0 0
        %2665 = vmatprep.subr.bf16.mxu0 0
        %2666 = vmatpush1.bf16.msra.mxu0 0
        %2667 = vmatprep.subr.bf16.mxu0 0
        %2668 = vmatpush1.bf16.msra.mxu0 0
        %2669 = vmatprep.subr.bf16.mxu0 0
        %2670 = vmatpush1.bf16.msra.mxu0 0
        %2671 = vmatprep.subr.bf16.mxu0 0
        %2672 = vmatpush1.bf16.msra.mxu0 0
        %2673 = vmatprep.subr.bf16.mxu0 0
        %2674 = vmatpush1.bf16.msra.mxu0 0
        %2675 = vmatprep.mubr.bf16.mxu0 0
        %2676 = vmatmul.mubr.bf16.gmra.mrb[0].mxu0 %v2596
        %v2677 = vpop.f32.mrb[0].mxu0
        %v2678 = vadd.f32 0.0, %v2677
        %v2679 = vpop.f32.mrb[0].mxu0
        %v2680 = vpop.f32.mrb[0].mxu0
        %v2681 = vadd.f32 0.0, %v2680
        %v2682 = vpop.f32.mrb[0].mxu0
        %2683 = vmatprep.mubr.bf16.mxu0 0
        %2684 = vmatmul.mubr.bf16.gmra.mrb[0].mxu0 %v2599
        %v2685 = vpop.f32.mrb[0].mxu0
        %v2686 = vadd.f32 0.0, %v2685
        %v2687 = vpop.f32.mrb[0].mxu0
        %v2688 = vpop.f32.mrb[0].mxu0
        %v2689 = vadd.f32 0.0, %v2688
        %v2690 = vpop.f32.mrb[0].mxu0
        %2691 = vmatprep.mubr.bf16.mxu0 0
        %2692 = vmatmul.mubr.bf16.gmra.mrb[0].mxu0 %v2602
        %v2693 = vpop.f32.mrb[0].mxu0
        %v2694 = vadd.f32 0.0, %v2693
        %v2695 = vpop.f32.mrb[0].mxu0
        %v2696 = vpop.f32.mrb[0].mxu0
        %v2697 = vadd.f32 0.0, %v2696
        %v2698 = vpop.f32.mrb[0].mxu0
        %2699 = vmatprep.mubr.bf16.mxu0 0
        %2700 = vmatmul.mubr.bf16.gmra.mrb[0].mxu0 %v2605
        %v2701 = vpop.f32.mrb[0].mxu0
        %v2702 = vadd.f32 0.0, %v2701
        %v2703 = vpop.f32.mrb[0].mxu0
        %v2704 = vpop.f32.mrb[0].mxu0
        %v2705 = vadd.f32 0.0, %v2704
        %v2706 = vpop.f32.mrb[0].mxu0
        %2707 = vmatprep.mubr.bf16.mxu0 0
        %2708 = vmatmul.mubr.bf16.gmra.mrb[0].mxu0 %v2608
        %v2709 = vpop.f32.mrb[0].mxu0
        %v2710 = vadd.f32 0.0, %v2709
        %v2711 = vpop.f32.mrb[0].mxu0
        %v2712 = vpop.f32.mrb[0].mxu0
        %v2713 = vadd.f32 0.0, %v2712
        %v2714 = vpop.f32.mrb[0].mxu0
        %2715 = vmatprep.mubr.bf16.mxu0 0
        %2716 = vmatmul.mubr.bf16.gmra.mrb[0].mxu0 %v2611
        %v2717 = vpop.f32.mrb[0].mxu0
        %v2718 = vadd.f32 0.0, %v2717
        %v2719 = vpop.f32.mrb[0].mxu0
        %v2720 = vpop.f32.mrb[0].mxu0
        %v2721 = vadd.f32 0.0, %v2720
        %v2722 = vpop.f32.mrb[0].mxu0
        %2723 = vmatprep.mubr.bf16.mxu0 0
        %2724 = vmatmul.mubr.bf16.gmra.mrb[0].mxu0 %v2614
        %v2725 = vpop.f32.mrb[0].mxu0
        %v2726 = vadd.f32 0.0, %v2725
        %v2727 = vpop.f32.mrb[0].mxu0
        %v2728 = vpop.f32.mrb[0].mxu0
        %v2729 = vadd.f32 0.0, %v2728
        %v2730 = vpop.f32.mrb[0].mxu0
        %2731 = vmatprep.mubr.bf16.mxu0 0
        %2732 = vmatmul.mubr.bf16.gmra.mrb[0].mxu0 %v2617
        %v2733 = vpop.f32.mrb[0].mxu0
        %v2734 = vadd.f32 0.0, %v2733
        %v2735 = vpop.f32.mrb[0].mxu0
        %v2736 = vpop.f32.mrb[0].mxu0
        %v2737 = vadd.f32 0.0, %v2736
        %v2738 = vpop.f32.mrb[0].mxu0
        %2739 = vmatprep.mubr.bf16.mxu0 0
        %2740 = vmatmul.mubr.bf16.gmra.mrb[0].mxu0 %v2620
        %v2741 = vpop.f32.mrb[0].mxu0
        %v2742 = vadd.f32 0.0, %v2741
        %v2743 = vpop.f32.mrb[0].mxu0
        %v2744 = vpop.f32.mrb[0].mxu0
        %v2745 = vadd.f32 0.0, %v2744
        %v2746 = vpop.f32.mrb[0].mxu0
        %2747 = vmatprep.mubr.bf16.mxu0 0
        %2748 = vmatmul.mubr.bf16.gmra.mrb[0].mxu0 %v2623
        %v2749 = vpop.f32.mrb[0].mxu0
        %v2750 = vadd.f32 0.0, %v2749
        %v2751 = vpop.f32.mrb[0].mxu0
        %v2752 = vpop.f32.mrb[0].mxu0
        %v2753 = vadd.f32 0.0, %v2752
        %v2754 = vpop.f32.mrb[0].mxu0
        %2755 = vmatprep.mubr.bf16.mxu0 0
        %2756 = vmatmul.mubr.bf16.gmra.mrb[0].mxu0 %v2626
        %v2757 = vpop.f32.mrb[0].mxu0
        %v2758 = vadd.f32 0.0, %v2757
        %v2759 = vpop.f32.mrb[0].mxu0
        %v2760 = vpop.f32.mrb[0].mxu0
        %v2761 = vadd.f32 0.0, %v2760
        %v2762 = vpop.f32.mrb[0].mxu0
        %2763 = vmatprep.mubr.bf16.mxu0 0
        %2764 = vmatmul.mubr.bf16.gmra.mrb[0].mxu0 %v2629
        %v2765 = vpop.f32.mrb[0].mxu0
        %v2766 = vadd.f32 0.0, %v2765
        %v2767 = vpop.f32.mrb[0].mxu0
        %v2768 = vpop.f32.mrb[0].mxu0
        %v2769 = vadd.f32 0.0, %v2768
        %v2770 = vpop.f32.mrb[0].mxu0
        %2771 = vmatprep.mubr.bf16.mxu0 0
        %2772 = vmatmul.mubr.bf16.gmra.mrb[0].mxu0 %v2632
        %v2773 = vpop.f32.mrb[0].mxu0
        %v2774 = vadd.f32 0.0, %v2773
        %v2775 = vpop.f32.mrb[0].mxu0
        %v2776 = vpop.f32.mrb[0].mxu0
        %v2777 = vadd.f32 0.0, %v2776
        %v2778 = vpop.f32.mrb[0].mxu0
        %2779 = vmatprep.mubr.bf16.mxu0 0
        %2780 = vmatmul.mubr.bf16.gmra.mrb[0].mxu0 %v2635
        %v2781 = vpop.f32.mrb[0].mxu0
        %v2782 = vadd.f32 0.0, %v2781
        %v2783 = vpop.f32.mrb[0].mxu0
        %v2784 = vpop.f32.mrb[0].mxu0
        %v2785 = vadd.f32 0.0, %v2784
        %v2786 = vpop.f32.mrb[0].mxu0
        %2787 = vmatprep.mubr.bf16.mxu0 0
        %2788 = vmatmul.mubr.bf16.gmra.mrb[0].mxu0 %v2638
        %v2789 = vpop.f32.mrb[0].mxu0
        %v2790 = vadd.f32 0.0, %v2789
        %v2791 = vpop.f32.mrb[0].mxu0
        %v2792 = vpop.f32.mrb[0].mxu0
        %v2793 = vadd.f32 0.0, %v2792
        %v2794 = vpop.f32.mrb[0].mxu0
        %2795 = vmatprep.mubr.bf16.mxu0 0
        %2796 = vmatmul.mubr.bf16.gmra.mrb[0].mxu0 %v2641
        %v2797 = vpop.f32.mrb[0].mxu0
        %v2798 = vadd.f32 0.0, %v2797
        %v2799 = vpop.f32.mrb[0].mxu0
        %v2800 = vpop.f32.mrb[0].mxu0
        %v2801 = vadd.f32 0.0, %v2800
        %v2802 = vpop.f32.mrb[0].mxu0
        %2803 = vdwg.mxu0
        %v2804 = vadd.f32 %v2482, %v2678
        %v2805 = vadd.f32 %v2483, %v2681
        %v2806 = vadd.f32 %v2484, %v2686
        %v2807 = vadd.f32 %v2485, %v2689
        %v2808 = vadd.f32 %v2486, %v2694
        %v2809 = vadd.f32 %v2487, %v2697
        %v2810 = vadd.f32 %v2488, %v2702
        %v2811 = vadd.f32 %v2489, %v2705
        %v2812 = vadd.f32 %v2490, %v2710
        %v2813 = vadd.f32 %v2491, %v2713
        %v2814 = vadd.f32 %v2492, %v2718
        %v2815 = vadd.f32 %v2493, %v2721
        %v2816 = vadd.f32 %v2494, %v2726
        %v2817 = vadd.f32 %v2495, %v2729
        %v2818 = vadd.f32 %v2496, %v2734
        %v2819 = vadd.f32 %v2497, %v2737
        %v2820 = vadd.f32 %v2498, %v2742
        %v2821 = vadd.f32 %v2499, %v2745
        %v2822 = vadd.f32 %v2500, %v2750
        %v2823 = vadd.f32 %v2501, %v2753
        %v2824 = vadd.f32 %v2502, %v2758
        %v2825 = vadd.f32 %v2503, %v2761
        %v2826 = vadd.f32 %v2504, %v2766
        %v2827 = vadd.f32 %v2505, %v2769
        %v2828 = vadd.f32 %v2506, %v2774
        %v2829 = vadd.f32 %v2507, %v2777
        %v2830 = vadd.f32 %v2508, %v2782
        %v2831 = vadd.f32 %v2509, %v2785
        %v2832 = vadd.f32 %v2510, %v2790
        %v2833 = vadd.f32 %v2511, %v2793
        %v2834 = vadd.f32 %v2512, %v2798
        %v2835 = vadd.f32 %v2513, %v2801
        %v2836 = vld [vmem:[%s2514 + $0x1] sm:$0xff]
        %v2837 = vld [vmem:[%s2514 + $0x9] sm:$0xff]
        %v2838 = vld [vmem:[%s2514 + $0x19] sm:$0xff]
        %v2839 = vld [vmem:[%s2514 + $0x21] sm:$0xff]
        %v2840 = vld [vmem:[%s2514 + $0x31] sm:$0xff]
        %v2841 = vld [vmem:[%s2514 + $0x39] sm:$0xff]
        %v2842 = vld [vmem:[%s2514 + $0x49] sm:$0xff]
        %v2843 = vld [vmem:[%s2514 + $0x51] sm:$0xff]
        %v2844 = vld [vmem:[%s2514 + $0x61] sm:$0xff]
        %v2845 = vld [vmem:[%s2514 + $0x69] sm:$0xff]
        %v2846 = vld [vmem:[%s2514 + $0x79] sm:$0xff]
        %v2847 = vld [vmem:[%s2514 + $0x81] sm:$0xff]
        %v2848 = vld [vmem:[%s2514 + $0x91] sm:$0xff]
        %v2849 = vld [vmem:[%s2514 + $0x99] sm:$0xff]
        %v2850 = vld [vmem:[%s2514 + $0xa9] sm:$0xff]
        %v2851 = vld [vmem:[%s2514 + $0xb1] sm:$0xff]
        %v2852 = vld [vmem:[%s2514 + $0xc1] sm:$0xff]
        %v2853 = vld [vmem:[%s2514 + $0xc9] sm:$0xff]
        %v2854 = vld [vmem:[%s2514 + $0xd9] sm:$0xff]
        %v2855 = vld [vmem:[%s2514 + $0xe1] sm:$0xff]
        %v2856 = vld [vmem:[%s2514 + $0xf1] sm:$0xff]
        %v2857 = vld [vmem:[%s2514 + $0xf9] sm:$0xff]
        %v2858 = vld [vmem:[%s2514 + $0x109] sm:$0xff]
        %v2859 = vld [vmem:[%s2514 + $0x111] sm:$0xff]
        %v2860 = vld [vmem:[%s2514 + $0x121] sm:$0xff]
        %v2861 = vld [vmem:[%s2514 + $0x129] sm:$0xff]
        %v2862 = vld [vmem:[%s2514 + $0x139] sm:$0xff]
        %v2863 = vld [vmem:[%s2514 + $0x141] sm:$0xff]
        %v2864 = vld [vmem:[%s2514 + $0x151] sm:$0xff]
        %v2865 = vld [vmem:[%s2514 + $0x159] sm:$0xff]
        %v2866 = vld [vmem:[%s2514 + $0x169] sm:$0xff]
        %v2867 = vld [vmem:[%s2514 + $0x171] sm:$0xff]
        %v2868 = vpack.c.bf16 %v2837, %v2836
        %v2869 = vpack.c.bf16 %v2839, %v2838
        %v2870 = vpack.c.bf16 %v2841, %v2840
        %v2871 = vpack.c.bf16 %v2843, %v2842
        %v2872 = vpack.c.bf16 %v2845, %v2844
        %v2873 = vpack.c.bf16 %v2847, %v2846
        %v2874 = vpack.c.bf16 %v2849, %v2848
        %v2875 = vpack.c.bf16 %v2851, %v2850
        %v2876 = vpack.c.bf16 %v2853, %v2852
        %v2877 = vpack.c.bf16 %v2855, %v2854
        %v2878 = vpack.c.bf16 %v2857, %v2856
        %v2879 = vpack.c.bf16 %v2859, %v2858
        %v2880 = vpack.c.bf16 %v2861, %v2860
        %v2881 = vpack.c.bf16 %v2863, %v2862
        %v2882 = vpack.c.bf16 %v2865, %v2864
        %v2883 = vpack.c.bf16 %v2867, %v2866
        %v2884 = vld [vmem:[%s2 + $0xe0] sm:$0xf]
        %v2885 = vld [vmem:[%s2 + $0xe4] sm:$0xf]
        %v2886 = vld [vmem:[%s2 + $0xe8] sm:$0xf]
        %v2887 = vld [vmem:[%s2 + $0xec] sm:$0xf]
        %v2888 = vld [vmem:[%s2 + $0xf0] sm:$0xf]
        %v2889 = vld [vmem:[%s2 + $0xf4] sm:$0xf]
        %v2890 = vld [vmem:[%s2 + $0xf8] sm:$0xf]
        %v2891 = vld [vmem:[%s2 + $0xfc] sm:$0xf]
        %v2900 = vunpack.c.l.b16 %v2884
        %v2901 = vunpack.c.l.b16 %v2885
        %v2902 = vunpack.c.l.b16 %v2886
        %v2903 = vunpack.c.l.b16 %v2887
        %v2904 = vunpack.c.l.b16 %v2888
        %v2905 = vunpack.c.l.b16 %v2889
        %v2906 = vunpack.c.l.b16 %v2890
        %v2907 = vunpack.c.l.b16 %v2891
        %v2908 = vpack.c.b16 %v2901, %v2900
        %v2909 = vpack.c.b16 %v2903, %v2902
        %v2910 = vpack.c.b16 %v2905, %v2904
        %v2911 = vpack.c.b16 %v2907, %v2906
        %v2917 = vsel %vm244, %v2868, 0
        %v2920 = vsel %vm244, %v2869, 0
        %v2923 = vsel %vm244, %v2870, 0
        %v2926 = vsel %vm244, %v2871, 0
        %v2929 = vsel %vm244, %v2872, 0
        %v2932 = vsel %vm244, %v2873, 0
        %v2935 = vsel %vm244, %v2874, 0
        %v2938 = vsel %vm244, %v2875, 0
        %v2941 = vsel %vm244, %v2876, 0
        %v2944 = vsel %vm244, %v2877, 0
        %v2947 = vsel %vm244, %v2878, 0
        %v2950 = vsel %vm244, %v2879, 0
        %v2953 = vsel %vm244, %v2880, 0
        %v2956 = vsel %vm244, %v2881, 0
        %v2959 = vsel %vm244, %v2882, 0
        %v2962 = vsel %vm244, %v2883, 0
        %2964 = vmatprep.subr.bf16.mxu0 0
        %2965 = vmatpush1.bf16.msra.mxu0 %v2908
        %2966 = vmatprep.subr.bf16.mxu0 0
        %2967 = vmatpush1.bf16.msra.mxu0 %v2909
        %2968 = vmatprep.subr.bf16.mxu0 0
        %2969 = vmatpush1.bf16.msra.mxu0 %v2910
        %2970 = vmatprep.subr.bf16.mxu0 0
        %2971 = vmatpush1.bf16.msra.mxu0 %v2911
        %2972 = vmatprep.subr.bf16.mxu0 0
        %2973 = vmatpush1.bf16.msra.mxu0 0
        %2974 = vmatprep.subr.bf16.mxu0 0
        %2975 = vmatpush1.bf16.msra.mxu0 0
        %2976 = vmatprep.subr.bf16.mxu0 0
        %2977 = vmatpush1.bf16.msra.mxu0 0
        %2978 = vmatprep.subr.bf16.mxu0 0
        %2979 = vmatpush1.bf16.msra.mxu0 0
        %2980 = vmatprep.subr.bf16.mxu0 0
        %2981 = vmatpush1.bf16.msra.mxu0 0
        %2982 = vmatprep.subr.bf16.mxu0 0
        %2983 = vmatpush1.bf16.msra.mxu0 0
        %2984 = vmatprep.subr.bf16.mxu0 0
        %2985 = vmatpush1.bf16.msra.mxu0 0
        %2986 = vmatprep.subr.bf16.mxu0 0
        %2987 = vmatpush1.bf16.msra.mxu0 0
        %2988 = vmatprep.subr.bf16.mxu0 0
        %2989 = vmatpush1.bf16.msra.mxu0 0
        %2990 = vmatprep.subr.bf16.mxu0 0
        %2991 = vmatpush1.bf16.msra.mxu0 0
        %2992 = vmatprep.subr.bf16.mxu0 0
        %2993 = vmatpush1.bf16.msra.mxu0 0
        %2994 = vmatprep.subr.bf16.mxu0 0
        %2995 = vmatpush1.bf16.msra.mxu0 0
        %2996 = vmatprep.mubr.bf16.mxu0 0
        %2997 = vmatmul.mubr.bf16.gmra.mrb[0].mxu0 %v2917
        %v2998 = vpop.f32.mrb[0].mxu0
        %v2999 = vadd.f32 0.0, %v2998
        %v3000 = vpop.f32.mrb[0].mxu0
        %v3001 = vpop.f32.mrb[0].mxu0
        %v3002 = vadd.f32 0.0, %v3001
        %v3003 = vpop.f32.mrb[0].mxu0
        %3004 = vmatprep.mubr.bf16.mxu0 0
        %3005 = vmatmul.mubr.bf16.gmra.mrb[0].mxu0 %v2920
        %v3006 = vpop.f32.mrb[0].mxu0
        %v3007 = vadd.f32 0.0, %v3006
        %v3008 = vpop.f32.mrb[0].mxu0
        %v3009 = vpop.f32.mrb[0].mxu0
        %v3010 = vadd.f32 0.0, %v3009
        %v3011 = vpop.f32.mrb[0].mxu0
        %3012 = vmatprep.mubr.bf16.mxu0 0
        %3013 = vmatmul.mubr.bf16.gmra.mrb[0].mxu0 %v2923
        %v3014 = vpop.f32.mrb[0].mxu0
        %v3015 = vadd.f32 0.0, %v3014
        %v3016 = vpop.f32.mrb[0].mxu0
        %v3017 = vpop.f32.mrb[0].mxu0
        %v3018 = vadd.f32 0.0, %v3017
        %v3019 = vpop.f32.mrb[0].mxu0
        %3020 = vmatprep.mubr.bf16.mxu0 0
        %3021 = vmatmul.mubr.bf16.gmra.mrb[0].mxu0 %v2926
        %v3022 = vpop.f32.mrb[0].mxu0
        %v3023 = vadd.f32 0.0, %v3022
        %v3024 = vpop.f32.mrb[0].mxu0
        %v3025 = vpop.f32.mrb[0].mxu0
        %v3026 = vadd.f32 0.0, %v3025
        %v3027 = vpop.f32.mrb[0].mxu0
        %3028 = vmatprep.mubr.bf16.mxu0 0
        %3029 = vmatmul.mubr.bf16.gmra.mrb[0].mxu0 %v2929
        %v3030 = vpop.f32.mrb[0].mxu0
        %v3031 = vadd.f32 0.0, %v3030
        %v3032 = vpop.f32.mrb[0].mxu0
        %v3033 = vpop.f32.mrb[0].mxu0
        %v3034 = vadd.f32 0.0, %v3033
        %v3035 = vpop.f32.mrb[0].mxu0
        %3036 = vmatprep.mubr.bf16.mxu0 0
        %3037 = vmatmul.mubr.bf16.gmra.mrb[0].mxu0 %v2932
        %v3038 = vpop.f32.mrb[0].mxu0
        %v3039 = vadd.f32 0.0, %v3038
        %v3040 = vpop.f32.mrb[0].mxu0
        %v3041 = vpop.f32.mrb[0].mxu0
        %v3042 = vadd.f32 0.0, %v3041
        %v3043 = vpop.f32.mrb[0].mxu0
        %3044 = vmatprep.mubr.bf16.mxu0 0
        %3045 = vmatmul.mubr.bf16.gmra.mrb[0].mxu0 %v2935
        %v3046 = vpop.f32.mrb[0].mxu0
        %v3047 = vadd.f32 0.0, %v3046
        %v3048 = vpop.f32.mrb[0].mxu0
        %v3049 = vpop.f32.mrb[0].mxu0
        %v3050 = vadd.f32 0.0, %v3049
        %v3051 = vpop.f32.mrb[0].mxu0
        %3052 = vmatprep.mubr.bf16.mxu0 0
        %3053 = vmatmul.mubr.bf16.gmra.mrb[0].mxu0 %v2938
        %v3054 = vpop.f32.mrb[0].mxu0
        %v3055 = vadd.f32 0.0, %v3054
        %v3056 = vpop.f32.mrb[0].mxu0
        %v3057 = vpop.f32.mrb[0].mxu0
        %v3058 = vadd.f32 0.0, %v3057
        %v3059 = vpop.f32.mrb[0].mxu0
        %3060 = vmatprep.mubr.bf16.mxu0 0
        %3061 = vmatmul.mubr.bf16.gmra.mrb[0].mxu0 %v2941
        %v3062 = vpop.f32.mrb[0].mxu0
        %v3063 = vadd.f32 0.0, %v3062
        %v3064 = vpop.f32.mrb[0].mxu0
        %v3065 = vpop.f32.mrb[0].mxu0
        %v3066 = vadd.f32 0.0, %v3065
        %v3067 = vpop.f32.mrb[0].mxu0
        %3068 = vmatprep.mubr.bf16.mxu0 0
        %3069 = vmatmul.mubr.bf16.gmra.mrb[0].mxu0 %v2944
        %v3070 = vpop.f32.mrb[0].mxu0
        %v3071 = vadd.f32 0.0, %v3070
        %v3072 = vpop.f32.mrb[0].mxu0
        %v3073 = vpop.f32.mrb[0].mxu0
        %v3074 = vadd.f32 0.0, %v3073
        %v3075 = vpop.f32.mrb[0].mxu0
        %3076 = vmatprep.mubr.bf16.mxu0 0
        %3077 = vmatmul.mubr.bf16.gmra.mrb[0].mxu0 %v2947
        %v3078 = vpop.f32.mrb[0].mxu0
        %v3079 = vadd.f32 0.0, %v3078
        %v3080 = vpop.f32.mrb[0].mxu0
        %v3081 = vpop.f32.mrb[0].mxu0
        %v3082 = vadd.f32 0.0, %v3081
        %v3083 = vpop.f32.mrb[0].mxu0
        %3084 = vmatprep.mubr.bf16.mxu0 0
        %3085 = vmatmul.mubr.bf16.gmra.mrb[0].mxu0 %v2950
        %v3086 = vpop.f32.mrb[0].mxu0
        %v3087 = vadd.f32 0.0, %v3086
        %v3088 = vpop.f32.mrb[0].mxu0
        %v3089 = vpop.f32.mrb[0].mxu0
        %v3090 = vadd.f32 0.0, %v3089
        %v3091 = vpop.f32.mrb[0].mxu0
        %3092 = vmatprep.mubr.bf16.mxu0 0
        %3093 = vmatmul.mubr.bf16.gmra.mrb[0].mxu0 %v2953
        %v3094 = vpop.f32.mrb[0].mxu0
        %v3095 = vadd.f32 0.0, %v3094
        %v3096 = vpop.f32.mrb[0].mxu0
        %v3097 = vpop.f32.mrb[0].mxu0
        %v3098 = vadd.f32 0.0, %v3097
        %v3099 = vpop.f32.mrb[0].mxu0
        %3100 = vmatprep.mubr.bf16.mxu0 0
        %3101 = vmatmul.mubr.bf16.gmra.mrb[0].mxu0 %v2956
        %v3102 = vpop.f32.mrb[0].mxu0
        %v3103 = vadd.f32 0.0, %v3102
        %v3104 = vpop.f32.mrb[0].mxu0
        %v3105 = vpop.f32.mrb[0].mxu0
        %v3106 = vadd.f32 0.0, %v3105
        %v3107 = vpop.f32.mrb[0].mxu0
        %3108 = vmatprep.mubr.bf16.mxu0 0
        %3109 = vmatmul.mubr.bf16.gmra.mrb[0].mxu0 %v2959
        %v3110 = vpop.f32.mrb[0].mxu0
        %v3111 = vadd.f32 0.0, %v3110
        %v3112 = vpop.f32.mrb[0].mxu0
        %v3113 = vpop.f32.mrb[0].mxu0
        %v3114 = vadd.f32 0.0, %v3113
        %v3115 = vpop.f32.mrb[0].mxu0
        %3116 = vmatprep.mubr.bf16.mxu0 0
        %3117 = vmatmul.mubr.bf16.gmra.mrb[0].mxu0 %v2962
        %v3118 = vpop.f32.mrb[0].mxu0
        %v3119 = vadd.f32 0.0, %v3118
        %v3120 = vpop.f32.mrb[0].mxu0
        %v3121 = vpop.f32.mrb[0].mxu0
        %v3122 = vadd.f32 0.0, %v3121
        %v3123 = vpop.f32.mrb[0].mxu0
        %3124 = vdwg.mxu0
        %v3125 = vadd.f32 %v2804, %v2999
        %v3126 = vadd.f32 %v2805, %v3002
        %v3127 = vadd.f32 %v2806, %v3007
        %v3128 = vadd.f32 %v2807, %v3010
        %v3129 = vadd.f32 %v2808, %v3015
        %v3130 = vadd.f32 %v2809, %v3018
        %v3131 = vadd.f32 %v2810, %v3023
        %v3132 = vadd.f32 %v2811, %v3026
        %v3133 = vadd.f32 %v2812, %v3031
        %v3134 = vadd.f32 %v2813, %v3034
        %v3135 = vadd.f32 %v2814, %v3039
        %v3136 = vadd.f32 %v2815, %v3042
        %v3137 = vadd.f32 %v2816, %v3047
        %v3138 = vadd.f32 %v2817, %v3050
        %v3139 = vadd.f32 %v2818, %v3055
        %v3140 = vadd.f32 %v2819, %v3058
        %v3141 = vadd.f32 %v2820, %v3063
        %v3142 = vadd.f32 %v2821, %v3066
        %v3143 = vadd.f32 %v2822, %v3071
        %v3144 = vadd.f32 %v2823, %v3074
        %v3145 = vadd.f32 %v2824, %v3079
        %v3146 = vadd.f32 %v2825, %v3082
        %v3147 = vadd.f32 %v2826, %v3087
        %v3148 = vadd.f32 %v2827, %v3090
        %v3149 = vadd.f32 %v2828, %v3095
        %v3150 = vadd.f32 %v2829, %v3098
        %v3151 = vadd.f32 %v2830, %v3103
        %v3152 = vadd.f32 %v2831, %v3106
        %v3153 = vadd.f32 %v2832, %v3111
        %v3154 = vadd.f32 %v2833, %v3114
        %v3155 = vadd.f32 %v2834, %v3119
        %v3156 = vadd.f32 %v2835, %v3122
        %v3157 = vld [vmem:[%s2514 + $0x2] sm:$0xff]
        %v3158 = vld [vmem:[%s2514 + $0xa] sm:$0xff]
        %v3159 = vld [vmem:[%s2514 + $0x1a] sm:$0xff]
        %v3160 = vld [vmem:[%s2514 + $0x22] sm:$0xff]
        %v3161 = vld [vmem:[%s2514 + $0x32] sm:$0xff]
        %v3162 = vld [vmem:[%s2514 + $0x3a] sm:$0xff]
        %v3163 = vld [vmem:[%s2514 + $0x4a] sm:$0xff]
        %v3164 = vld [vmem:[%s2514 + $0x52] sm:$0xff]
        %v3165 = vld [vmem:[%s2514 + $0x62] sm:$0xff]
        %v3166 = vld [vmem:[%s2514 + $0x6a] sm:$0xff]
        %v3167 = vld [vmem:[%s2514 + $0x7a] sm:$0xff]
        %v3168 = vld [vmem:[%s2514 + $0x82] sm:$0xff]
        %v3169 = vld [vmem:[%s2514 + $0x92] sm:$0xff]
        %v3170 = vld [vmem:[%s2514 + $0x9a] sm:$0xff]
        %v3171 = vld [vmem:[%s2514 + $0xaa] sm:$0xff]
        %v3172 = vld [vmem:[%s2514 + $0xb2] sm:$0xff]
        %v3173 = vld [vmem:[%s2514 + $0xc2] sm:$0xff]
        %v3174 = vld [vmem:[%s2514 + $0xca] sm:$0xff]
        %v3175 = vld [vmem:[%s2514 + $0xda] sm:$0xff]
        %v3176 = vld [vmem:[%s2514 + $0xe2] sm:$0xff]
        %v3177 = vld [vmem:[%s2514 + $0xf2] sm:$0xff]
        %v3178 = vld [vmem:[%s2514 + $0xfa] sm:$0xff]
        %v3179 = vld [vmem:[%s2514 + $0x10a] sm:$0xff]
        %v3180 = vld [vmem:[%s2514 + $0x112] sm:$0xff]
        %v3181 = vld [vmem:[%s2514 + $0x122] sm:$0xff]
        %v3182 = vld [vmem:[%s2514 + $0x12a] sm:$0xff]
        %v3183 = vld [vmem:[%s2514 + $0x13a] sm:$0xff]
        %v3184 = vld [vmem:[%s2514 + $0x142] sm:$0xff]
        %v3185 = vld [vmem:[%s2514 + $0x152] sm:$0xff]
        %v3186 = vld [vmem:[%s2514 + $0x15a] sm:$0xff]
        %v3187 = vld [vmem:[%s2514 + $0x16a] sm:$0xff]
        %v3188 = vld [vmem:[%s2514 + $0x172] sm:$0xff]
        %v3189 = vpack.c.bf16 %v3158, %v3157
        %v3190 = vpack.c.bf16 %v3160, %v3159
        %v3191 = vpack.c.bf16 %v3162, %v3161
        %v3192 = vpack.c.bf16 %v3164, %v3163
        %v3193 = vpack.c.bf16 %v3166, %v3165
        %v3194 = vpack.c.bf16 %v3168, %v3167
        %v3195 = vpack.c.bf16 %v3170, %v3169
        %v3196 = vpack.c.bf16 %v3172, %v3171
        %v3197 = vpack.c.bf16 %v3174, %v3173
        %v3198 = vpack.c.bf16 %v3176, %v3175
        %v3199 = vpack.c.bf16 %v3178, %v3177
        %v3200 = vpack.c.bf16 %v3180, %v3179
        %v3201 = vpack.c.bf16 %v3182, %v3181
        %v3202 = vpack.c.bf16 %v3184, %v3183
        %v3203 = vpack.c.bf16 %v3186, %v3185
        %v3204 = vpack.c.bf16 %v3188, %v3187
        %v3205 = vld [vmem:[%s2 + $0x100] sm:$0xf]
        %v3206 = vld [vmem:[%s2 + $0x104] sm:$0xf]
        %v3207 = vld [vmem:[%s2 + $0x108] sm:$0xf]
        %v3208 = vld [vmem:[%s2 + $0x10c] sm:$0xf]
        %v3209 = vld [vmem:[%s2 + $0x110] sm:$0xf]
        %v3210 = vld [vmem:[%s2 + $0x114] sm:$0xf]
        %v3211 = vld [vmem:[%s2 + $0x118] sm:$0xf]
        %v3212 = vld [vmem:[%s2 + $0x11c] sm:$0xf]
        %v3221 = vunpack.c.l.b16 %v3205
        %v3222 = vunpack.c.l.b16 %v3206
        %v3223 = vunpack.c.l.b16 %v3207
        %v3224 = vunpack.c.l.b16 %v3208
        %v3225 = vunpack.c.l.b16 %v3209
        %v3226 = vunpack.c.l.b16 %v3210
        %v3227 = vunpack.c.l.b16 %v3211
        %v3228 = vunpack.c.l.b16 %v3212
        %v3229 = vpack.c.b16 %v3222, %v3221
        %v3230 = vpack.c.b16 %v3224, %v3223
        %v3231 = vpack.c.b16 %v3226, %v3225
        %v3232 = vpack.c.b16 %v3228, %v3227
        %v3238 = vsel %vm244, %v3189, 0
        %v3241 = vsel %vm244, %v3190, 0
        %v3244 = vsel %vm244, %v3191, 0
        %v3247 = vsel %vm244, %v3192, 0
        %v3250 = vsel %vm244, %v3193, 0
        %v3253 = vsel %vm244, %v3194, 0
        %v3256 = vsel %vm244, %v3195, 0
        %v3259 = vsel %vm244, %v3196, 0
        %v3262 = vsel %vm244, %v3197, 0
        %v3265 = vsel %vm244, %v3198, 0
        %v3268 = vsel %vm244, %v3199, 0
        %v3271 = vsel %vm244, %v3200, 0
        %v3274 = vsel %vm244, %v3201, 0
        %v3277 = vsel %vm244, %v3202, 0
        %v3280 = vsel %vm244, %v3203, 0
        %v3283 = vsel %vm244, %v3204, 0
        %3285 = vmatprep.subr.bf16.mxu0 0
        %3286 = vmatpush1.bf16.msra.mxu0 %v3229
        %3287 = vmatprep.subr.bf16.mxu0 0
        %3288 = vmatpush1.bf16.msra.mxu0 %v3230
        %3289 = vmatprep.subr.bf16.mxu0 0
        %3290 = vmatpush1.bf16.msra.mxu0 %v3231
        %3291 = vmatprep.subr.bf16.mxu0 0
        %3292 = vmatpush1.bf16.msra.mxu0 %v3232
        %3293 = vmatprep.subr.bf16.mxu0 0
        %3294 = vmatpush1.bf16.msra.mxu0 0
        %3295 = vmatprep.subr.bf16.mxu0 0
        %3296 = vmatpush1.bf16.msra.mxu0 0
        %3297 = vmatprep.subr.bf16.mxu0 0
        %3298 = vmatpush1.bf16.msra.mxu0 0
        %3299 = vmatprep.subr.bf16.mxu0 0
        %3300 = vmatpush1.bf16.msra.mxu0 0
        %3301 = vmatprep.subr.bf16.mxu0 0
        %3302 = vmatpush1.bf16.msra.mxu0 0
        %3303 = vmatprep.subr.bf16.mxu0 0
        %3304 = vmatpush1.bf16.msra.mxu0 0
        %3305 = vmatprep.subr.bf16.mxu0 0
        %3306 = vmatpush1.bf16.msra.mxu0 0
        %3307 = vmatprep.subr.bf16.mxu0 0
        %3308 = vmatpush1.bf16.msra.mxu0 0
        %3309 = vmatprep.subr.bf16.mxu0 0
        %3310 = vmatpush1.bf16.msra.mxu0 0
        %3311 = vmatprep.subr.bf16.mxu0 0
        %3312 = vmatpush1.bf16.msra.mxu0 0
        %3313 = vmatprep.subr.bf16.mxu0 0
        %3314 = vmatpush1.bf16.msra.mxu0 0
        %3315 = vmatprep.subr.bf16.mxu0 0
        %3316 = vmatpush1.bf16.msra.mxu0 0
        %3317 = vmatprep.mubr.bf16.mxu0 0
        %3318 = vmatmul.mubr.bf16.gmra.mrb[0].mxu0 %v3238
        %v3319 = vpop.f32.mrb[0].mxu0
        %v3320 = vadd.f32 0.0, %v3319
        %v3321 = vpop.f32.mrb[0].mxu0
        %v3322 = vpop.f32.mrb[0].mxu0
        %v3323 = vadd.f32 0.0, %v3322
        %v3324 = vpop.f32.mrb[0].mxu0
        %3325 = vmatprep.mubr.bf16.mxu0 0
        %3326 = vmatmul.mubr.bf16.gmra.mrb[0].mxu0 %v3241
        %v3327 = vpop.f32.mrb[0].mxu0
        %v3328 = vadd.f32 0.0, %v3327
        %v3329 = vpop.f32.mrb[0].mxu0
        %v3330 = vpop.f32.mrb[0].mxu0
        %v3331 = vadd.f32 0.0, %v3330
        %v3332 = vpop.f32.mrb[0].mxu0
        %3333 = vmatprep.mubr.bf16.mxu0 0
        %3334 = vmatmul.mubr.bf16.gmra.mrb[0].mxu0 %v3244
        %v3335 = vpop.f32.mrb[0].mxu0
        %v3336 = vadd.f32 0.0, %v3335
        %v3337 = vpop.f32.mrb[0].mxu0
        %v3338 = vpop.f32.mrb[0].mxu0
        %v3339 = vadd.f32 0.0, %v3338
        %v3340 = vpop.f32.mrb[0].mxu0
        %3341 = vmatprep.mubr.bf16.mxu0 0
        %3342 = vmatmul.mubr.bf16.gmra.mrb[0].mxu0 %v3247
        %v3343 = vpop.f32.mrb[0].mxu0
        %v3344 = vadd.f32 0.0, %v3343
        %v3345 = vpop.f32.mrb[0].mxu0
        %v3346 = vpop.f32.mrb[0].mxu0
        %v3347 = vadd.f32 0.0, %v3346
        %v3348 = vpop.f32.mrb[0].mxu0
        %3349 = vmatprep.mubr.bf16.mxu0 0
        %3350 = vmatmul.mubr.bf16.gmra.mrb[0].mxu0 %v3250
        %v3351 = vpop.f32.mrb[0].mxu0
        %v3352 = vadd.f32 0.0, %v3351
        %v3353 = vpop.f32.mrb[0].mxu0
        %v3354 = vpop.f32.mrb[0].mxu0
        %v3355 = vadd.f32 0.0, %v3354
        %v3356 = vpop.f32.mrb[0].mxu0
        %3357 = vmatprep.mubr.bf16.mxu0 0
        %3358 = vmatmul.mubr.bf16.gmra.mrb[0].mxu0 %v3253
        %v3359 = vpop.f32.mrb[0].mxu0
        %v3360 = vadd.f32 0.0, %v3359
        %v3361 = vpop.f32.mrb[0].mxu0
        %v3362 = vpop.f32.mrb[0].mxu0
        %v3363 = vadd.f32 0.0, %v3362
        %v3364 = vpop.f32.mrb[0].mxu0
        %3365 = vmatprep.mubr.bf16.mxu0 0
        %3366 = vmatmul.mubr.bf16.gmra.mrb[0].mxu0 %v3256
        %v3367 = vpop.f32.mrb[0].mxu0
        %v3368 = vadd.f32 0.0, %v3367
        %v3369 = vpop.f32.mrb[0].mxu0
        %v3370 = vpop.f32.mrb[0].mxu0
        %v3371 = vadd.f32 0.0, %v3370
        %v3372 = vpop.f32.mrb[0].mxu0
        %3373 = vmatprep.mubr.bf16.mxu0 0
        %3374 = vmatmul.mubr.bf16.gmra.mrb[0].mxu0 %v3259
        %v3375 = vpop.f32.mrb[0].mxu0
        %v3376 = vadd.f32 0.0, %v3375
        %v3377 = vpop.f32.mrb[0].mxu0
        %v3378 = vpop.f32.mrb[0].mxu0
        %v3379 = vadd.f32 0.0, %v3378
        %v3380 = vpop.f32.mrb[0].mxu0
        %3381 = vmatprep.mubr.bf16.mxu0 0
        %3382 = vmatmul.mubr.bf16.gmra.mrb[0].mxu0 %v3262
        %v3383 = vpop.f32.mrb[0].mxu0
        %v3384 = vadd.f32 0.0, %v3383
        %v3385 = vpop.f32.mrb[0].mxu0
        %v3386 = vpop.f32.mrb[0].mxu0
        %v3387 = vadd.f32 0.0, %v3386
        %v3388 = vpop.f32.mrb[0].mxu0
        %3389 = vmatprep.mubr.bf16.mxu0 0
        %3390 = vmatmul.mubr.bf16.gmra.mrb[0].mxu0 %v3265
        %v3391 = vpop.f32.mrb[0].mxu0
        %v3392 = vadd.f32 0.0, %v3391
        %v3393 = vpop.f32.mrb[0].mxu0
        %v3394 = vpop.f32.mrb[0].mxu0
        %v3395 = vadd.f32 0.0, %v3394
        %v3396 = vpop.f32.mrb[0].mxu0
        %3397 = vmatprep.mubr.bf16.mxu0 0
        %3398 = vmatmul.mubr.bf16.gmra.mrb[0].mxu0 %v3268
        %v3399 = vpop.f32.mrb[0].mxu0
        %v3400 = vadd.f32 0.0, %v3399
        %v3401 = vpop.f32.mrb[0].mxu0
        %v3402 = vpop.f32.mrb[0].mxu0
        %v3403 = vadd.f32 0.0, %v3402
        %v3404 = vpop.f32.mrb[0].mxu0
        %3405 = vmatprep.mubr.bf16.mxu0 0
        %3406 = vmatmul.mubr.bf16.gmra.mrb[0].mxu0 %v3271
        %v3407 = vpop.f32.mrb[0].mxu0
        %v3408 = vadd.f32 0.0, %v3407
        %v3409 = vpop.f32.mrb[0].mxu0
        %v3410 = vpop.f32.mrb[0].mxu0
        %v3411 = vadd.f32 0.0, %v3410
        %v3412 = vpop.f32.mrb[0].mxu0
        %3413 = vmatprep.mubr.bf16.mxu0 0
        %3414 = vmatmul.mubr.bf16.gmra.mrb[0].mxu0 %v3274
        %v3415 = vpop.f32.mrb[0].mxu0
        %v3416 = vadd.f32 0.0, %v3415
        %v3417 = vpop.f32.mrb[0].mxu0
        %v3418 = vpop.f32.mrb[0].mxu0
        %v3419 = vadd.f32 0.0, %v3418
        %v3420 = vpop.f32.mrb[0].mxu0
        %3421 = vmatprep.mubr.bf16.mxu0 0
        %3422 = vmatmul.mubr.bf16.gmra.mrb[0].mxu0 %v3277
        %v3423 = vpop.f32.mrb[0].mxu0
        %v3424 = vadd.f32 0.0, %v3423
        %v3425 = vpop.f32.mrb[0].mxu0
        %v3426 = vpop.f32.mrb[0].mxu0
        %v3427 = vadd.f32 0.0, %v3426
        %v3428 = vpop.f32.mrb[0].mxu0
        %3429 = vmatprep.mubr.bf16.mxu0 0
        %3430 = vmatmul.mubr.bf16.gmra.mrb[0].mxu0 %v3280
        %v3431 = vpop.f32.mrb[0].mxu0
        %v3432 = vadd.f32 0.0, %v3431
        %v3433 = vpop.f32.mrb[0].mxu0
        %v3434 = vpop.f32.mrb[0].mxu0
        %v3435 = vadd.f32 0.0, %v3434
        %v3436 = vpop.f32.mrb[0].mxu0
        %3437 = vmatprep.mubr.bf16.mxu0 0
        %3438 = vmatmul.mubr.bf16.gmra.mrb[0].mxu0 %v3283
        %v3439 = vpop.f32.mrb[0].mxu0
        %v3440 = vadd.f32 0.0, %v3439
        %v3441 = vpop.f32.mrb[0].mxu0
        %v3442 = vpop.f32.mrb[0].mxu0
        %v3443 = vadd.f32 0.0, %v3442
        %v3444 = vpop.f32.mrb[0].mxu0
        %3445 = vdwg.mxu0
        %v3446 = vadd.f32 %v3125, %v3320
        %v3447 = vadd.f32 %v3126, %v3323
        %v3448 = vadd.f32 %v3127, %v3328
        %v3449 = vadd.f32 %v3128, %v3331
        %v3450 = vadd.f32 %v3129, %v3336
        %v3451 = vadd.f32 %v3130, %v3339
        %v3452 = vadd.f32 %v3131, %v3344
        %v3453 = vadd.f32 %v3132, %v3347
        %v3454 = vadd.f32 %v3133, %v3352
        %v3455 = vadd.f32 %v3134, %v3355
        %v3456 = vadd.f32 %v3135, %v3360
        %v3457 = vadd.f32 %v3136, %v3363
        %v3458 = vadd.f32 %v3137, %v3368
        %v3459 = vadd.f32 %v3138, %v3371
        %v3460 = vadd.f32 %v3139, %v3376
        %v3461 = vadd.f32 %v3140, %v3379
        %v3462 = vadd.f32 %v3141, %v3384
        %v3463 = vadd.f32 %v3142, %v3387
        %v3464 = vadd.f32 %v3143, %v3392
        %v3465 = vadd.f32 %v3144, %v3395
        %v3466 = vadd.f32 %v3145, %v3400
        %v3467 = vadd.f32 %v3146, %v3403
        %v3468 = vadd.f32 %v3147, %v3408
        %v3469 = vadd.f32 %v3148, %v3411
        %v3470 = vadd.f32 %v3149, %v3416
        %v3471 = vadd.f32 %v3150, %v3419
        %v3472 = vadd.f32 %v3151, %v3424
        %v3473 = vadd.f32 %v3152, %v3427
        %v3474 = vadd.f32 %v3153, %v3432
        %v3475 = vadd.f32 %v3154, %v3435
        %v3476 = vadd.f32 %v3155, %v3440
        %v3477 = vadd.f32 %v3156, %v3443
        %v3478 = vld [vmem:[%s4] sm:$0x1]
        %v3480 = vlaneseq
        %v3481 = vshrl.u32 %v3480, 7
        %v3482 = vsub.s32 0, %v3481
        %v3483 = vrot.slane %v3478, %v3482
        %v3485 = vadd.f32 %v3446, %v3483
        %v3486 = vadd.f32 %v3447, %v3483
        %v3487 = vadd.f32 %v3448, %v3483
        %v3488 = vadd.f32 %v3449, %v3483
        %v3489 = vadd.f32 %v3450, %v3483
        %v3490 = vadd.f32 %v3451, %v3483
        %v3491 = vadd.f32 %v3452, %v3483
        %v3492 = vadd.f32 %v3453, %v3483
        %v3493 = vadd.f32 %v3454, %v3483
        %v3494 = vadd.f32 %v3455, %v3483
        %v3495 = vadd.f32 %v3456, %v3483
        %v3496 = vadd.f32 %v3457, %v3483
        %v3497 = vadd.f32 %v3458, %v3483
        %v3498 = vadd.f32 %v3459, %v3483
        %v3499 = vadd.f32 %v3460, %v3483
        %v3500 = vadd.f32 %v3461, %v3483
        %v3501 = vadd.f32 %v3462, %v3483
        %v3502 = vadd.f32 %v3463, %v3483
        %v3503 = vadd.f32 %v3464, %v3483
        %v3504 = vadd.f32 %v3465, %v3483
        %v3505 = vadd.f32 %v3466, %v3483
        %v3506 = vadd.f32 %v3467, %v3483
        %v3507 = vadd.f32 %v3468, %v3483
        %v3508 = vadd.f32 %v3469, %v3483
        %v3509 = vadd.f32 %v3470, %v3483
        %v3510 = vadd.f32 %v3471, %v3483
        %v3511 = vadd.f32 %v3472, %v3483
        %v3512 = vadd.f32 %v3473, %v3483
        %v3513 = vadd.f32 %v3474, %v3483
        %v3514 = vadd.f32 %v3475, %v3483
        %v3515 = vadd.f32 %v3476, %v3483
        %v3516 = vadd.f32 %v3477, %v3483
        %v3517 = vmax.f32 %v3485, 0.0
        %v3518 = vmax.f32 %v3486, 0.0
        %v3519 = vmax.f32 %v3487, 0.0
        %v3520 = vmax.f32 %v3488, 0.0
        %v3521 = vmax.f32 %v3489, 0.0
        %v3522 = vmax.f32 %v3490, 0.0
        %v3523 = vmax.f32 %v3491, 0.0
        %v3524 = vmax.f32 %v3492, 0.0
        %v3525 = vmax.f32 %v3493, 0.0
        %v3526 = vmax.f32 %v3494, 0.0
        %v3527 = vmax.f32 %v3495, 0.0
        %v3528 = vmax.f32 %v3496, 0.0
        %v3529 = vmax.f32 %v3497, 0.0
        %v3530 = vmax.f32 %v3498, 0.0
        %v3531 = vmax.f32 %v3499, 0.0
        %v3532 = vmax.f32 %v3500, 0.0
        %v3533 = vmax.f32 %v3501, 0.0
        %v3534 = vmax.f32 %v3502, 0.0
        %v3535 = vmax.f32 %v3503, 0.0
        %v3536 = vmax.f32 %v3504, 0.0
        %v3537 = vmax.f32 %v3505, 0.0
        %v3538 = vmax.f32 %v3506, 0.0
        %v3539 = vmax.f32 %v3507, 0.0
        %v3540 = vmax.f32 %v3508, 0.0
        %v3541 = vmax.f32 %v3509, 0.0
        %v3542 = vmax.f32 %v3510, 0.0
        %v3543 = vmax.f32 %v3511, 0.0
        %v3544 = vmax.f32 %v3512, 0.0
        %v3545 = vmax.f32 %v3513, 0.0
        %v3546 = vmax.f32 %v3514, 0.0
        %v3547 = vmax.f32 %v3515, 0.0
        %v3548 = vmax.f32 %v3516, 0.0
        %v3581 = vcombine.high %v3517, %v3517
        %v3583 = vunpack.c.l.s4 1983009808
        %v3584 = vunpack.c.0.s8 %v3583
        %v3585 = vlaneseq
        %v3586 = vshrl.u32 %v3585, 7
        %v3587 = vsub.s32 %v3584, %v3586
        %v3588 = vrot.slane %v3517, %v3587
        %v3590 = vunpack.c.l.s4 1983009808
        %v3591 = vunpack.c.0.s8 %v3590
        %v3592 = vlaneseq
        %v3593 = vshrl.u32 %v3592, 7
        %v3594 = vsub.s32 %v3591, %v3593
        %v3595 = vrot.slane %v3581, %v3594
        %v3596 = vcombine.high %v3588, %v3588
        %v3597 = vcombine.high %v3595, %v3595
        %v3598 = vcombine.high %v3518, %v3518
        %v3600 = vunpack.c.l.s4 1983009808
        %v3601 = vunpack.c.0.s8 %v3600
        %v3602 = vlaneseq
        %v3603 = vshrl.u32 %v3602, 7
        %v3604 = vsub.s32 %v3601, %v3603
        %v3605 = vrot.slane %v3518, %v3604
        %v3607 = vunpack.c.l.s4 1983009808
        %v3608 = vunpack.c.0.s8 %v3607
        %v3609 = vlaneseq
        %v3610 = vshrl.u32 %v3609, 7
        %v3611 = vsub.s32 %v3608, %v3610
        %v3612 = vrot.slane %v3598, %v3611
        %v3613 = vcombine.high %v3605, %v3605
        %v3614 = vcombine.high %v3612, %v3612
        %v3615 = vcombine.high %v3519, %v3519
        %v3617 = vunpack.c.l.s4 1983009808
        %v3618 = vunpack.c.0.s8 %v3617
        %v3619 = vlaneseq
        %v3620 = vshrl.u32 %v3619, 7
        %v3621 = vsub.s32 %v3618, %v3620
        %v3622 = vrot.slane %v3519, %v3621
        %v3624 = vunpack.c.l.s4 1983009808
        %v3625 = vunpack.c.0.s8 %v3624
        %v3626 = vlaneseq
        %v3627 = vshrl.u32 %v3626, 7
        %v3628 = vsub.s32 %v3625, %v3627
        %v3629 = vrot.slane %v3615, %v3628
        %v3630 = vcombine.high %v3622, %v3622
        %v3631 = vcombine.high %v3629, %v3629
        %v3632 = vcombine.high %v3520, %v3520
        %v3634 = vunpack.c.l.s4 1983009808
        %v3635 = vunpack.c.0.s8 %v3634
        %v3636 = vlaneseq
        %v3637 = vshrl.u32 %v3636, 7
        %v3638 = vsub.s32 %v3635, %v3637
        %v3639 = vrot.slane %v3520, %v3638
        %v3641 = vunpack.c.l.s4 1983009808
        %v3642 = vunpack.c.0.s8 %v3641
        %v3643 = vlaneseq
        %v3644 = vshrl.u32 %v3643, 7
        %v3645 = vsub.s32 %v3642, %v3644
        %v3646 = vrot.slane %v3632, %v3645
        %v3647 = vcombine.high %v3639, %v3639
        %v3648 = vcombine.high %v3646, %v3646
        %v3649 = vcombine.high %v3521, %v3521
        %v3651 = vunpack.c.l.s4 1983009808
        %v3652 = vunpack.c.0.s8 %v3651
        %v3653 = vlaneseq
        %v3654 = vshrl.u32 %v3653, 7
        %v3655 = vsub.s32 %v3652, %v3654
        %v3656 = vrot.slane %v3521, %v3655
        %v3658 = vunpack.c.l.s4 1983009808
        %v3659 = vunpack.c.0.s8 %v3658
        %v3660 = vlaneseq
        %v3661 = vshrl.u32 %v3660, 7
        %v3662 = vsub.s32 %v3659, %v3661
        %v3663 = vrot.slane %v3649, %v3662
        %v3664 = vcombine.high %v3656, %v3656
        %v3665 = vcombine.high %v3663, %v3663
        %v3666 = vcombine.high %v3522, %v3522
        %v3668 = vunpack.c.l.s4 1983009808
        %v3669 = vunpack.c.0.s8 %v3668
        %v3670 = vlaneseq
        %v3671 = vshrl.u32 %v3670, 7
        %v3672 = vsub.s32 %v3669, %v3671
        %v3673 = vrot.slane %v3522, %v3672
        %v3675 = vunpack.c.l.s4 1983009808
        %v3676 = vunpack.c.0.s8 %v3675
        %v3677 = vlaneseq
        %v3678 = vshrl.u32 %v3677, 7
        %v3679 = vsub.s32 %v3676, %v3678
        %v3680 = vrot.slane %v3666, %v3679
        %v3681 = vcombine.high %v3673, %v3673
        %v3682 = vcombine.high %v3680, %v3680
        %v3683 = vcombine.high %v3523, %v3523
        %v3685 = vunpack.c.l.s4 1983009808
        %v3686 = vunpack.c.0.s8 %v3685
        %v3687 = vlaneseq
        %v3688 = vshrl.u32 %v3687, 7
        %v3689 = vsub.s32 %v3686, %v3688
        %v3690 = vrot.slane %v3523, %v3689
        %v3692 = vunpack.c.l.s4 1983009808
        %v3693 = vunpack.c.0.s8 %v3692
        %v3694 = vlaneseq
        %v3695 = vshrl.u32 %v3694, 7
        %v3696 = vsub.s32 %v3693, %v3695
        %v3697 = vrot.slane %v3683, %v3696
        %v3698 = vcombine.high %v3690, %v3690
        %v3699 = vcombine.high %v3697, %v3697
        %v3700 = vcombine.high %v3524, %v3524
        %v3702 = vunpack.c.l.s4 1983009808
        %v3703 = vunpack.c.0.s8 %v3702
        %v3704 = vlaneseq
        %v3705 = vshrl.u32 %v3704, 7
        %v3706 = vsub.s32 %v3703, %v3705
        %v3707 = vrot.slane %v3524, %v3706
        %v3709 = vunpack.c.l.s4 1983009808
        %v3710 = vunpack.c.0.s8 %v3709
        %v3711 = vlaneseq
        %v3712 = vshrl.u32 %v3711, 7
        %v3713 = vsub.s32 %v3710, %v3712
        %v3714 = vrot.slane %v3700, %v3713
        %v3715 = vcombine.high %v3707, %v3707
        %v3716 = vcombine.high %v3714, %v3714
        %v3717 = vcombine.high %v3525, %v3525
        %v3719 = vunpack.c.l.s4 1983009808
        %v3720 = vunpack.c.0.s8 %v3719
        %v3721 = vlaneseq
        %v3722 = vshrl.u32 %v3721, 7
        %v3723 = vsub.s32 %v3720, %v3722
        %v3724 = vrot.slane %v3525, %v3723
        %v3726 = vunpack.c.l.s4 1983009808
        %v3727 = vunpack.c.0.s8 %v3726
        %v3728 = vlaneseq
        %v3729 = vshrl.u32 %v3728, 7
        %v3730 = vsub.s32 %v3727, %v3729
        %v3731 = vrot.slane %v3717, %v3730
        %v3732 = vcombine.high %v3724, %v3724
        %v3733 = vcombine.high %v3731, %v3731
        %v3734 = vcombine.high %v3526, %v3526
        %v3736 = vunpack.c.l.s4 1983009808
        %v3737 = vunpack.c.0.s8 %v3736
        %v3738 = vlaneseq
        %v3739 = vshrl.u32 %v3738, 7
        %v3740 = vsub.s32 %v3737, %v3739
        %v3741 = vrot.slane %v3526, %v3740
        %v3743 = vunpack.c.l.s4 1983009808
        %v3744 = vunpack.c.0.s8 %v3743
        %v3745 = vlaneseq
        %v3746 = vshrl.u32 %v3745, 7
        %v3747 = vsub.s32 %v3744, %v3746
        %v3748 = vrot.slane %v3734, %v3747
        %v3749 = vcombine.high %v3741, %v3741
        %v3750 = vcombine.high %v3748, %v3748
        %v3751 = vcombine.high %v3527, %v3527
        %v3753 = vunpack.c.l.s4 1983009808
        %v3754 = vunpack.c.0.s8 %v3753
        %v3755 = vlaneseq
        %v3756 = vshrl.u32 %v3755, 7
        %v3757 = vsub.s32 %v3754, %v3756
        %v3758 = vrot.slane %v3527, %v3757
        %v3760 = vunpack.c.l.s4 1983009808
        %v3761 = vunpack.c.0.s8 %v3760
        %v3762 = vlaneseq
        %v3763 = vshrl.u32 %v3762, 7
        %v3764 = vsub.s32 %v3761, %v3763
        %v3765 = vrot.slane %v3751, %v3764
        %v3766 = vcombine.high %v3758, %v3758
        %v3767 = vcombine.high %v3765, %v3765
        %v3768 = vcombine.high %v3528, %v3528
        %v3770 = vunpack.c.l.s4 1983009808
        %v3771 = vunpack.c.0.s8 %v3770
        %v3772 = vlaneseq
        %v3773 = vshrl.u32 %v3772, 7
        %v3774 = vsub.s32 %v3771, %v3773
        %v3775 = vrot.slane %v3528, %v3774
        %v3777 = vunpack.c.l.s4 1983009808
        %v3778 = vunpack.c.0.s8 %v3777
        %v3779 = vlaneseq
        %v3780 = vshrl.u32 %v3779, 7
        %v3781 = vsub.s32 %v3778, %v3780
        %v3782 = vrot.slane %v3768, %v3781
        %v3783 = vcombine.high %v3775, %v3775
        %v3784 = vcombine.high %v3782, %v3782
        %v3785 = vcombine.high %v3529, %v3529
        %v3787 = vunpack.c.l.s4 1983009808
        %v3788 = vunpack.c.0.s8 %v3787
        %v3789 = vlaneseq
        %v3790 = vshrl.u32 %v3789, 7
        %v3791 = vsub.s32 %v3788, %v3790
        %v3792 = vrot.slane %v3529, %v3791
        %v3794 = vunpack.c.l.s4 1983009808
        %v3795 = vunpack.c.0.s8 %v3794
        %v3796 = vlaneseq
        %v3797 = vshrl.u32 %v3796, 7
        %v3798 = vsub.s32 %v3795, %v3797
        %v3799 = vrot.slane %v3785, %v3798
        %v3800 = vcombine.high %v3792, %v3792
        %v3801 = vcombine.high %v3799, %v3799
        %v3802 = vcombine.high %v3530, %v3530
        %v3804 = vunpack.c.l.s4 1983009808
        %v3805 = vunpack.c.0.s8 %v3804
        %v3806 = vlaneseq
        %v3807 = vshrl.u32 %v3806, 7
        %v3808 = vsub.s32 %v3805, %v3807
        %v3809 = vrot.slane %v3530, %v3808
        %v3811 = vunpack.c.l.s4 1983009808
        %v3812 = vunpack.c.0.s8 %v3811
        %v3813 = vlaneseq
        %v3814 = vshrl.u32 %v3813, 7
        %v3815 = vsub.s32 %v3812, %v3814
        %v3816 = vrot.slane %v3802, %v3815
        %v3817 = vcombine.high %v3809, %v3809
        %v3818 = vcombine.high %v3816, %v3816
        %v3819 = vcombine.high %v3531, %v3531
        %v3821 = vunpack.c.l.s4 1983009808
        %v3822 = vunpack.c.0.s8 %v3821
        %v3823 = vlaneseq
        %v3824 = vshrl.u32 %v3823, 7
        %v3825 = vsub.s32 %v3822, %v3824
        %v3826 = vrot.slane %v3531, %v3825
        %v3828 = vunpack.c.l.s4 1983009808
        %v3829 = vunpack.c.0.s8 %v3828
        %v3830 = vlaneseq
        %v3831 = vshrl.u32 %v3830, 7
        %v3832 = vsub.s32 %v3829, %v3831
        %v3833 = vrot.slane %v3819, %v3832
        %v3834 = vcombine.high %v3826, %v3826
        %v3835 = vcombine.high %v3833, %v3833
        %v3836 = vcombine.high %v3532, %v3532
        %v3838 = vunpack.c.l.s4 1983009808
        %v3839 = vunpack.c.0.s8 %v3838
        %v3840 = vlaneseq
        %v3841 = vshrl.u32 %v3840, 7
        %v3842 = vsub.s32 %v3839, %v3841
        %v3843 = vrot.slane %v3532, %v3842
        %v3845 = vunpack.c.l.s4 1983009808
        %v3846 = vunpack.c.0.s8 %v3845
        %v3847 = vlaneseq
        %v3848 = vshrl.u32 %v3847, 7
        %v3849 = vsub.s32 %v3846, %v3848
        %v3850 = vrot.slane %v3836, %v3849
        %v3851 = vcombine.high %v3843, %v3843
        %v3852 = vcombine.high %v3850, %v3850
        %v3853 = vcombine.high %v3533, %v3533
        %v3855 = vunpack.c.l.s4 1983009808
        %v3856 = vunpack.c.0.s8 %v3855
        %v3857 = vlaneseq
        %v3858 = vshrl.u32 %v3857, 7
        %v3859 = vsub.s32 %v3856, %v3858
        %v3860 = vrot.slane %v3533, %v3859
        %v3862 = vunpack.c.l.s4 1983009808
        %v3863 = vunpack.c.0.s8 %v3862
        %v3864 = vlaneseq
        %v3865 = vshrl.u32 %v3864, 7
        %v3866 = vsub.s32 %v3863, %v3865
        %v3867 = vrot.slane %v3853, %v3866
        %v3868 = vcombine.high %v3860, %v3860
        %v3869 = vcombine.high %v3867, %v3867
        %v3870 = vcombine.high %v3534, %v3534
        %v3872 = vunpack.c.l.s4 1983009808
        %v3873 = vunpack.c.0.s8 %v3872
        %v3874 = vlaneseq
        %v3875 = vshrl.u32 %v3874, 7
        %v3876 = vsub.s32 %v3873, %v3875
        %v3877 = vrot.slane %v3534, %v3876
        %v3879 = vunpack.c.l.s4 1983009808
        %v3880 = vunpack.c.0.s8 %v3879
        %v3881 = vlaneseq
        %v3882 = vshrl.u32 %v3881, 7
        %v3883 = vsub.s32 %v3880, %v3882
        %v3884 = vrot.slane %v3870, %v3883
        %v3885 = vcombine.high %v3877, %v3877
        %v3886 = vcombine.high %v3884, %v3884
        %v3887 = vcombine.high %v3535, %v3535
        %v3889 = vunpack.c.l.s4 1983009808
        %v3890 = vunpack.c.0.s8 %v3889
        %v3891 = vlaneseq
        %v3892 = vshrl.u32 %v3891, 7
        %v3893 = vsub.s32 %v3890, %v3892
        %v3894 = vrot.slane %v3535, %v3893
        %v3896 = vunpack.c.l.s4 1983009808
        %v3897 = vunpack.c.0.s8 %v3896
        %v3898 = vlaneseq
        %v3899 = vshrl.u32 %v3898, 7
        %v3900 = vsub.s32 %v3897, %v3899
        %v3901 = vrot.slane %v3887, %v3900
        %v3902 = vcombine.high %v3894, %v3894
        %v3903 = vcombine.high %v3901, %v3901
        %v3904 = vcombine.high %v3536, %v3536
        %v3906 = vunpack.c.l.s4 1983009808
        %v3907 = vunpack.c.0.s8 %v3906
        %v3908 = vlaneseq
        %v3909 = vshrl.u32 %v3908, 7
        %v3910 = vsub.s32 %v3907, %v3909
        %v3911 = vrot.slane %v3536, %v3910
        %v3913 = vunpack.c.l.s4 1983009808
        %v3914 = vunpack.c.0.s8 %v3913
        %v3915 = vlaneseq
        %v3916 = vshrl.u32 %v3915, 7
        %v3917 = vsub.s32 %v3914, %v3916
        %v3918 = vrot.slane %v3904, %v3917
        %v3919 = vcombine.high %v3911, %v3911
        %v3920 = vcombine.high %v3918, %v3918
        %v3921 = vcombine.high %v3537, %v3537
        %v3923 = vunpack.c.l.s4 1983009808
        %v3924 = vunpack.c.0.s8 %v3923
        %v3925 = vlaneseq
        %v3926 = vshrl.u32 %v3925, 7
        %v3927 = vsub.s32 %v3924, %v3926
        %v3928 = vrot.slane %v3537, %v3927
        %v3930 = vunpack.c.l.s4 1983009808
        %v3931 = vunpack.c.0.s8 %v3930
        %v3932 = vlaneseq
        %v3933 = vshrl.u32 %v3932, 7
        %v3934 = vsub.s32 %v3931, %v3933
        %v3935 = vrot.slane %v3921, %v3934
        %v3936 = vcombine.high %v3928, %v3928
        %v3937 = vcombine.high %v3935, %v3935
        %v3938 = vcombine.high %v3538, %v3538
        %v3940 = vunpack.c.l.s4 1983009808
        %v3941 = vunpack.c.0.s8 %v3940
        %v3942 = vlaneseq
        %v3943 = vshrl.u32 %v3942, 7
        %v3944 = vsub.s32 %v3941, %v3943
        %v3945 = vrot.slane %v3538, %v3944
        %v3947 = vunpack.c.l.s4 1983009808
        %v3948 = vunpack.c.0.s8 %v3947
        %v3949 = vlaneseq
        %v3950 = vshrl.u32 %v3949, 7
        %v3951 = vsub.s32 %v3948, %v3950
        %v3952 = vrot.slane %v3938, %v3951
        %v3953 = vcombine.high %v3945, %v3945
        %v3954 = vcombine.high %v3952, %v3952
        %v3955 = vcombine.high %v3539, %v3539
        %v3957 = vunpack.c.l.s4 1983009808
        %v3958 = vunpack.c.0.s8 %v3957
        %v3959 = vlaneseq
        %v3960 = vshrl.u32 %v3959, 7
        %v3961 = vsub.s32 %v3958, %v3960
        %v3962 = vrot.slane %v3539, %v3961
        %v3964 = vunpack.c.l.s4 1983009808
        %v3965 = vunpack.c.0.s8 %v3964
        %v3966 = vlaneseq
        %v3967 = vshrl.u32 %v3966, 7
        %v3968 = vsub.s32 %v3965, %v3967
        %v3969 = vrot.slane %v3955, %v3968
        %v3970 = vcombine.high %v3962, %v3962
        %v3971 = vcombine.high %v3969, %v3969
        %v3972 = vcombine.high %v3540, %v3540
        %v3974 = vunpack.c.l.s4 1983009808
        %v3975 = vunpack.c.0.s8 %v3974
        %v3976 = vlaneseq
        %v3977 = vshrl.u32 %v3976, 7
        %v3978 = vsub.s32 %v3975, %v3977
        %v3979 = vrot.slane %v3540, %v3978
        %v3981 = vunpack.c.l.s4 1983009808
        %v3982 = vunpack.c.0.s8 %v3981
        %v3983 = vlaneseq
        %v3984 = vshrl.u32 %v3983, 7
        %v3985 = vsub.s32 %v3982, %v3984
        %v3986 = vrot.slane %v3972, %v3985
        %v3987 = vcombine.high %v3979, %v3979
        %v3988 = vcombine.high %v3986, %v3986
        %v3989 = vcombine.high %v3541, %v3541
        %v3991 = vunpack.c.l.s4 1983009808
        %v3992 = vunpack.c.0.s8 %v3991
        %v3993 = vlaneseq
        %v3994 = vshrl.u32 %v3993, 7
        %v3995 = vsub.s32 %v3992, %v3994
        %v3996 = vrot.slane %v3541, %v3995
        %v3998 = vunpack.c.l.s4 1983009808
        %v3999 = vunpack.c.0.s8 %v3998
        %v4000 = vlaneseq
        %v4001 = vshrl.u32 %v4000, 7
        %v4002 = vsub.s32 %v3999, %v4001
        %v4003 = vrot.slane %v3989, %v4002
        %v4004 = vcombine.high %v3996, %v3996
        %v4005 = vcombine.high %v4003, %v4003
        %v4006 = vcombine.high %v3542, %v3542
        %v4008 = vunpack.c.l.s4 1983009808
        %v4009 = vunpack.c.0.s8 %v4008
        %v4010 = vlaneseq
        %v4011 = vshrl.u32 %v4010, 7
        %v4012 = vsub.s32 %v4009, %v4011
        %v4013 = vrot.slane %v3542, %v4012
        %v4015 = vunpack.c.l.s4 1983009808
        %v4016 = vunpack.c.0.s8 %v4015
        %v4017 = vlaneseq
        %v4018 = vshrl.u32 %v4017, 7
        %v4019 = vsub.s32 %v4016, %v4018
        %v4020 = vrot.slane %v4006, %v4019
        %v4021 = vcombine.high %v4013, %v4013
        %v4022 = vcombine.high %v4020, %v4020
        %v4023 = vcombine.high %v3543, %v3543
        %v4025 = vunpack.c.l.s4 1983009808
        %v4026 = vunpack.c.0.s8 %v4025
        %v4027 = vlaneseq
        %v4028 = vshrl.u32 %v4027, 7
        %v4029 = vsub.s32 %v4026, %v4028
        %v4030 = vrot.slane %v3543, %v4029
        %v4032 = vunpack.c.l.s4 1983009808
        %v4033 = vunpack.c.0.s8 %v4032
        %v4034 = vlaneseq
        %v4035 = vshrl.u32 %v4034, 7
        %v4036 = vsub.s32 %v4033, %v4035
        %v4037 = vrot.slane %v4023, %v4036
        %v4038 = vcombine.high %v4030, %v4030
        %v4039 = vcombine.high %v4037, %v4037
        %v4040 = vcombine.high %v3544, %v3544
        %v4042 = vunpack.c.l.s4 1983009808
        %v4043 = vunpack.c.0.s8 %v4042
        %v4044 = vlaneseq
        %v4045 = vshrl.u32 %v4044, 7
        %v4046 = vsub.s32 %v4043, %v4045
        %v4047 = vrot.slane %v3544, %v4046
        %v4049 = vunpack.c.l.s4 1983009808
        %v4050 = vunpack.c.0.s8 %v4049
        %v4051 = vlaneseq
        %v4052 = vshrl.u32 %v4051, 7
        %v4053 = vsub.s32 %v4050, %v4052
        %v4054 = vrot.slane %v4040, %v4053
        %v4055 = vcombine.high %v4047, %v4047
        %v4056 = vcombine.high %v4054, %v4054
        %v4057 = vcombine.high %v3545, %v3545
        %v4059 = vunpack.c.l.s4 1983009808
        %v4060 = vunpack.c.0.s8 %v4059
        %v4061 = vlaneseq
        %v4062 = vshrl.u32 %v4061, 7
        %v4063 = vsub.s32 %v4060, %v4062
        %v4064 = vrot.slane %v3545, %v4063
        %v4066 = vunpack.c.l.s4 1983009808
        %v4067 = vunpack.c.0.s8 %v4066
        %v4068 = vlaneseq
        %v4069 = vshrl.u32 %v4068, 7
        %v4070 = vsub.s32 %v4067, %v4069
        %v4071 = vrot.slane %v4057, %v4070
        %v4072 = vcombine.high %v4064, %v4064
        %v4073 = vcombine.high %v4071, %v4071
        %v4074 = vcombine.high %v3546, %v3546
        %v4076 = vunpack.c.l.s4 1983009808
        %v4077 = vunpack.c.0.s8 %v4076
        %v4078 = vlaneseq
        %v4079 = vshrl.u32 %v4078, 7
        %v4080 = vsub.s32 %v4077, %v4079
        %v4081 = vrot.slane %v3546, %v4080
        %v4083 = vunpack.c.l.s4 1983009808
        %v4084 = vunpack.c.0.s8 %v4083
        %v4085 = vlaneseq
        %v4086 = vshrl.u32 %v4085, 7
        %v4087 = vsub.s32 %v4084, %v4086
        %v4088 = vrot.slane %v4074, %v4087
        %v4089 = vcombine.high %v4081, %v4081
        %v4090 = vcombine.high %v4088, %v4088
        %v4091 = vcombine.high %v3547, %v3547
        %v4093 = vunpack.c.l.s4 1983009808
        %v4094 = vunpack.c.0.s8 %v4093
        %v4095 = vlaneseq
        %v4096 = vshrl.u32 %v4095, 7
        %v4097 = vsub.s32 %v4094, %v4096
        %v4098 = vrot.slane %v3547, %v4097
        %v4100 = vunpack.c.l.s4 1983009808
        %v4101 = vunpack.c.0.s8 %v4100
        %v4102 = vlaneseq
        %v4103 = vshrl.u32 %v4102, 7
        %v4104 = vsub.s32 %v4101, %v4103
        %v4105 = vrot.slane %v4091, %v4104
        %v4106 = vcombine.high %v4098, %v4098
        %v4107 = vcombine.high %v4105, %v4105
        %v4108 = vcombine.high %v3548, %v3548
        %v4110 = vunpack.c.l.s4 1983009808
        %v4111 = vunpack.c.0.s8 %v4110
        %v4112 = vlaneseq
        %v4113 = vshrl.u32 %v4112, 7
        %v4114 = vsub.s32 %v4111, %v4113
        %v4115 = vrot.slane %v3548, %v4114
        %v4117 = vunpack.c.l.s4 1983009808
        %v4118 = vunpack.c.0.s8 %v4117
        %v4119 = vlaneseq
        %v4120 = vshrl.u32 %v4119, 7
        %v4121 = vsub.s32 %v4118, %v4120
        %v4122 = vrot.slane %v4108, %v4121
        %v4123 = vcombine.high %v4115, %v4115
        %v4124 = vcombine.high %v4122, %v4122
        %v4253 = vsel %vm247, %v3588, -inf
        %v4254 = vrot.slane %v4253, 4
        %v4255 = vmax.f32 %v4253, %v4254
        %v4256 = vrot.slane %v4255, 2
        %v4257 = vmax.f32 %v4255, %v4256
        %v4258 = vrot.slane %v4257, 1
        %v4259 = vmax.f32 %v4257, %v4258
        %v4260 = vsel %vm247, %v3596, -inf
        %v4261 = vrot.slane %v4260, 4
        %v4262 = vmax.f32 %v4260, %v4261
        %v4263 = vrot.slane %v4262, 2
        %v4264 = vmax.f32 %v4262, %v4263
        %v4265 = vrot.slane %v4264, 1
        %v4266 = vmax.f32 %v4264, %v4265
        %v4267 = vsel %vm247, %v3595, -inf
        %v4268 = vrot.slane %v4267, 4
        %v4269 = vmax.f32 %v4267, %v4268
        %v4270 = vrot.slane %v4269, 2
        %v4271 = vmax.f32 %v4269, %v4270
        %v4272 = vrot.slane %v4271, 1
        %v4273 = vmax.f32 %v4271, %v4272
        %v4274 = vsel %vm247, %v3597, -inf
        %v4275 = vrot.slane %v4274, 4
        %v4276 = vmax.f32 %v4274, %v4275
        %v4277 = vrot.slane %v4276, 2
        %v4278 = vmax.f32 %v4276, %v4277
        %v4279 = vrot.slane %v4278, 1
        %v4280 = vmax.f32 %v4278, %v4279
        %v4281 = vsel %vm247, %v3605, -inf
        %v4282 = vrot.slane %v4281, 4
        %v4283 = vmax.f32 %v4281, %v4282
        %v4284 = vrot.slane %v4283, 2
        %v4285 = vmax.f32 %v4283, %v4284
        %v4286 = vrot.slane %v4285, 1
        %v4287 = vmax.f32 %v4285, %v4286
        %v4288 = vsel %vm247, %v3613, -inf
        %v4289 = vrot.slane %v4288, 4
        %v4290 = vmax.f32 %v4288, %v4289
        %v4291 = vrot.slane %v4290, 2
        %v4292 = vmax.f32 %v4290, %v4291
        %v4293 = vrot.slane %v4292, 1
        %v4294 = vmax.f32 %v4292, %v4293
        %v4295 = vsel %vm247, %v3612, -inf
        %v4296 = vrot.slane %v4295, 4
        %v4297 = vmax.f32 %v4295, %v4296
        %v4298 = vrot.slane %v4297, 2
        %v4299 = vmax.f32 %v4297, %v4298
        %v4300 = vrot.slane %v4299, 1
        %v4301 = vmax.f32 %v4299, %v4300
        %v4302 = vsel %vm247, %v3614, -inf
        %v4303 = vrot.slane %v4302, 4
        %v4304 = vmax.f32 %v4302, %v4303
        %v4305 = vrot.slane %v4304, 2
        %v4306 = vmax.f32 %v4304, %v4305
        %v4307 = vrot.slane %v4306, 1
        %v4308 = vmax.f32 %v4306, %v4307
        %v4309 = vsel %vm247, %v3622, -inf
        %v4310 = vrot.slane %v4309, 4
        %v4311 = vmax.f32 %v4309, %v4310
        %v4312 = vrot.slane %v4311, 2
        %v4313 = vmax.f32 %v4311, %v4312
        %v4314 = vrot.slane %v4313, 1
        %v4315 = vmax.f32 %v4313, %v4314
        %v4316 = vsel %vm247, %v3630, -inf
        %v4317 = vrot.slane %v4316, 4
        %v4318 = vmax.f32 %v4316, %v4317
        %v4319 = vrot.slane %v4318, 2
        %v4320 = vmax.f32 %v4318, %v4319
        %v4321 = vrot.slane %v4320, 1
        %v4322 = vmax.f32 %v4320, %v4321
        %v4323 = vsel %vm247, %v3629, -inf
        %v4324 = vrot.slane %v4323, 4
        %v4325 = vmax.f32 %v4323, %v4324
        %v4326 = vrot.slane %v4325, 2
        %v4327 = vmax.f32 %v4325, %v4326
        %v4328 = vrot.slane %v4327, 1
        %v4329 = vmax.f32 %v4327, %v4328
        %v4330 = vsel %vm247, %v3631, -inf
        %v4331 = vrot.slane %v4330, 4
        %v4332 = vmax.f32 %v4330, %v4331
        %v4333 = vrot.slane %v4332, 2
        %v4334 = vmax.f32 %v4332, %v4333
        %v4335 = vrot.slane %v4334, 1
        %v4336 = vmax.f32 %v4334, %v4335
        %v4337 = vsel %vm247, %v3639, -inf
        %v4338 = vrot.slane %v4337, 4
        %v4339 = vmax.f32 %v4337, %v4338
        %v4340 = vrot.slane %v4339, 2
        %v4341 = vmax.f32 %v4339, %v4340
        %v4342 = vrot.slane %v4341, 1
        %v4343 = vmax.f32 %v4341, %v4342
        %v4344 = vsel %vm247, %v3647, -inf
        %v4345 = vrot.slane %v4344, 4
        %v4346 = vmax.f32 %v4344, %v4345
        %v4347 = vrot.slane %v4346, 2
        %v4348 = vmax.f32 %v4346, %v4347
        %v4349 = vrot.slane %v4348, 1
        %v4350 = vmax.f32 %v4348, %v4349
        %v4351 = vsel %vm247, %v3646, -inf
        %v4352 = vrot.slane %v4351, 4
        %v4353 = vmax.f32 %v4351, %v4352
        %v4354 = vrot.slane %v4353, 2
        %v4355 = vmax.f32 %v4353, %v4354
        %v4356 = vrot.slane %v4355, 1
        %v4357 = vmax.f32 %v4355, %v4356
        %v4358 = vsel %vm247, %v3648, -inf
        %v4359 = vrot.slane %v4358, 4
        %v4360 = vmax.f32 %v4358, %v4359
        %v4361 = vrot.slane %v4360, 2
        %v4362 = vmax.f32 %v4360, %v4361
        %v4363 = vrot.slane %v4362, 1
        %v4364 = vmax.f32 %v4362, %v4363
        %v4365 = vsel %vm247, %v3656, -inf
        %v4366 = vrot.slane %v4365, 4
        %v4367 = vmax.f32 %v4365, %v4366
        %v4368 = vrot.slane %v4367, 2
        %v4369 = vmax.f32 %v4367, %v4368
        %v4370 = vrot.slane %v4369, 1
        %v4371 = vmax.f32 %v4369, %v4370
        %v4372 = vsel %vm247, %v3664, -inf
        %v4373 = vrot.slane %v4372, 4
        %v4374 = vmax.f32 %v4372, %v4373
        %v4375 = vrot.slane %v4374, 2
        %v4376 = vmax.f32 %v4374, %v4375
        %v4377 = vrot.slane %v4376, 1
        %v4378 = vmax.f32 %v4376, %v4377
        %v4379 = vsel %vm247, %v3663, -inf
        %v4380 = vrot.slane %v4379, 4
        %v4381 = vmax.f32 %v4379, %v4380
        %v4382 = vrot.slane %v4381, 2
        %v4383 = vmax.f32 %v4381, %v4382
        %v4384 = vrot.slane %v4383, 1
        %v4385 = vmax.f32 %v4383, %v4384
        %v4386 = vsel %vm247, %v3665, -inf
        %v4387 = vrot.slane %v4386, 4
        %v4388 = vmax.f32 %v4386, %v4387
        %v4389 = vrot.slane %v4388, 2
        %v4390 = vmax.f32 %v4388, %v4389
        %v4391 = vrot.slane %v4390, 1
        %v4392 = vmax.f32 %v4390, %v4391
        %v4393 = vsel %vm247, %v3673, -inf
        %v4394 = vrot.slane %v4393, 4
        %v4395 = vmax.f32 %v4393, %v4394
        %v4396 = vrot.slane %v4395, 2
        %v4397 = vmax.f32 %v4395, %v4396
        %v4398 = vrot.slane %v4397, 1
        %v4399 = vmax.f32 %v4397, %v4398
        %v4400 = vsel %vm247, %v3681, -inf
        %v4401 = vrot.slane %v4400, 4
        %v4402 = vmax.f32 %v4400, %v4401
        %v4403 = vrot.slane %v4402, 2
        %v4404 = vmax.f32 %v4402, %v4403
        %v4405 = vrot.slane %v4404, 1
        %v4406 = vmax.f32 %v4404, %v4405
        %v4407 = vsel %vm247, %v3680, -inf
        %v4408 = vrot.slane %v4407, 4
        %v4409 = vmax.f32 %v4407, %v4408
        %v4410 = vrot.slane %v4409, 2
        %v4411 = vmax.f32 %v4409, %v4410
        %v4412 = vrot.slane %v4411, 1
        %v4413 = vmax.f32 %v4411, %v4412
        %v4414 = vsel %vm247, %v3682, -inf
        %v4415 = vrot.slane %v4414, 4
        %v4416 = vmax.f32 %v4414, %v4415
        %v4417 = vrot.slane %v4416, 2
        %v4418 = vmax.f32 %v4416, %v4417
        %v4419 = vrot.slane %v4418, 1
        %v4420 = vmax.f32 %v4418, %v4419
        %v4421 = vsel %vm247, %v3690, -inf
        %v4422 = vrot.slane %v4421, 4
        %v4423 = vmax.f32 %v4421, %v4422
        %v4424 = vrot.slane %v4423, 2
        %v4425 = vmax.f32 %v4423, %v4424
        %v4426 = vrot.slane %v4425, 1
        %v4427 = vmax.f32 %v4425, %v4426
        %v4428 = vsel %vm247, %v3698, -inf
        %v4429 = vrot.slane %v4428, 4
        %v4430 = vmax.f32 %v4428, %v4429
        %v4431 = vrot.slane %v4430, 2
        %v4432 = vmax.f32 %v4430, %v4431
        %v4433 = vrot.slane %v4432, 1
        %v4434 = vmax.f32 %v4432, %v4433
        %v4435 = vsel %vm247, %v3697, -inf
        %v4436 = vrot.slane %v4435, 4
        %v4437 = vmax.f32 %v4435, %v4436
        %v4438 = vrot.slane %v4437, 2
        %v4439 = vmax.f32 %v4437, %v4438
        %v4440 = vrot.slane %v4439, 1
        %v4441 = vmax.f32 %v4439, %v4440
        %v4442 = vsel %vm247, %v3699, -inf
        %v4443 = vrot.slane %v4442, 4
        %v4444 = vmax.f32 %v4442, %v4443
        %v4445 = vrot.slane %v4444, 2
        %v4446 = vmax.f32 %v4444, %v4445
        %v4447 = vrot.slane %v4446, 1
        %v4448 = vmax.f32 %v4446, %v4447
        %v4449 = vsel %vm247, %v3707, -inf
        %v4450 = vrot.slane %v4449, 4
        %v4451 = vmax.f32 %v4449, %v4450
        %v4452 = vrot.slane %v4451, 2
        %v4453 = vmax.f32 %v4451, %v4452
        %v4454 = vrot.slane %v4453, 1
        %v4455 = vmax.f32 %v4453, %v4454
        %v4456 = vsel %vm247, %v3715, -inf
        %v4457 = vrot.slane %v4456, 4
        %v4458 = vmax.f32 %v4456, %v4457
        %v4459 = vrot.slane %v4458, 2
        %v4460 = vmax.f32 %v4458, %v4459
        %v4461 = vrot.slane %v4460, 1
        %v4462 = vmax.f32 %v4460, %v4461
        %v4463 = vsel %vm247, %v3714, -inf
        %v4464 = vrot.slane %v4463, 4
        %v4465 = vmax.f32 %v4463, %v4464
        %v4466 = vrot.slane %v4465, 2
        %v4467 = vmax.f32 %v4465, %v4466
        %v4468 = vrot.slane %v4467, 1
        %v4469 = vmax.f32 %v4467, %v4468
        %v4470 = vsel %vm247, %v3716, -inf
        %v4471 = vrot.slane %v4470, 4
        %v4472 = vmax.f32 %v4470, %v4471
        %v4473 = vrot.slane %v4472, 2
        %v4474 = vmax.f32 %v4472, %v4473
        %v4475 = vrot.slane %v4474, 1
        %v4476 = vmax.f32 %v4474, %v4475
        %v4477 = vsel %vm247, %v3724, -inf
        %v4478 = vrot.slane %v4477, 4
        %v4479 = vmax.f32 %v4477, %v4478
        %v4480 = vrot.slane %v4479, 2
        %v4481 = vmax.f32 %v4479, %v4480
        %v4482 = vrot.slane %v4481, 1
        %v4483 = vmax.f32 %v4481, %v4482
        %v4484 = vsel %vm247, %v3732, -inf
        %v4485 = vrot.slane %v4484, 4
        %v4486 = vmax.f32 %v4484, %v4485
        %v4487 = vrot.slane %v4486, 2
        %v4488 = vmax.f32 %v4486, %v4487
        %v4489 = vrot.slane %v4488, 1
        %v4490 = vmax.f32 %v4488, %v4489
        %v4491 = vsel %vm247, %v3731, -inf
        %v4492 = vrot.slane %v4491, 4
        %v4493 = vmax.f32 %v4491, %v4492
        %v4494 = vrot.slane %v4493, 2
        %v4495 = vmax.f32 %v4493, %v4494
        %v4496 = vrot.slane %v4495, 1
        %v4497 = vmax.f32 %v4495, %v4496
        %v4498 = vsel %vm247, %v3733, -inf
        %v4499 = vrot.slane %v4498, 4
        %v4500 = vmax.f32 %v4498, %v4499
        %v4501 = vrot.slane %v4500, 2
        %v4502 = vmax.f32 %v4500, %v4501
        %v4503 = vrot.slane %v4502, 1
        %v4504 = vmax.f32 %v4502, %v4503
        %v4505 = vsel %vm247, %v3741, -inf
        %v4506 = vrot.slane %v4505, 4
        %v4507 = vmax.f32 %v4505, %v4506
        %v4508 = vrot.slane %v4507, 2
        %v4509 = vmax.f32 %v4507, %v4508
        %v4510 = vrot.slane %v4509, 1
        %v4511 = vmax.f32 %v4509, %v4510
        %v4512 = vsel %vm247, %v3749, -inf
        %v4513 = vrot.slane %v4512, 4
        %v4514 = vmax.f32 %v4512, %v4513
        %v4515 = vrot.slane %v4514, 2
        %v4516 = vmax.f32 %v4514, %v4515
        %v4517 = vrot.slane %v4516, 1
        %v4518 = vmax.f32 %v4516, %v4517
        %v4519 = vsel %vm247, %v3748, -inf
        %v4520 = vrot.slane %v4519, 4
        %v4521 = vmax.f32 %v4519, %v4520
        %v4522 = vrot.slane %v4521, 2
        %v4523 = vmax.f32 %v4521, %v4522
        %v4524 = vrot.slane %v4523, 1
        %v4525 = vmax.f32 %v4523, %v4524
        %v4526 = vsel %vm247, %v3750, -inf
        %v4527 = vrot.slane %v4526, 4
        %v4528 = vmax.f32 %v4526, %v4527
        %v4529 = vrot.slane %v4528, 2
        %v4530 = vmax.f32 %v4528, %v4529
        %v4531 = vrot.slane %v4530, 1
        %v4532 = vmax.f32 %v4530, %v4531
        %v4533 = vsel %vm247, %v3758, -inf
        %v4534 = vrot.slane %v4533, 4
        %v4535 = vmax.f32 %v4533, %v4534
        %v4536 = vrot.slane %v4535, 2
        %v4537 = vmax.f32 %v4535, %v4536
        %v4538 = vrot.slane %v4537, 1
        %v4539 = vmax.f32 %v4537, %v4538
        %v4540 = vsel %vm247, %v3766, -inf
        %v4541 = vrot.slane %v4540, 4
        %v4542 = vmax.f32 %v4540, %v4541
        %v4543 = vrot.slane %v4542, 2
        %v4544 = vmax.f32 %v4542, %v4543
        %v4545 = vrot.slane %v4544, 1
        %v4546 = vmax.f32 %v4544, %v4545
        %v4547 = vsel %vm247, %v3765, -inf
        %v4548 = vrot.slane %v4547, 4
        %v4549 = vmax.f32 %v4547, %v4548
        %v4550 = vrot.slane %v4549, 2
        %v4551 = vmax.f32 %v4549, %v4550
        %v4552 = vrot.slane %v4551, 1
        %v4553 = vmax.f32 %v4551, %v4552
        %v4554 = vsel %vm247, %v3767, -inf
        %v4555 = vrot.slane %v4554, 4
        %v4556 = vmax.f32 %v4554, %v4555
        %v4557 = vrot.slane %v4556, 2
        %v4558 = vmax.f32 %v4556, %v4557
        %v4559 = vrot.slane %v4558, 1
        %v4560 = vmax.f32 %v4558, %v4559
        %v4561 = vsel %vm247, %v3775, -inf
        %v4562 = vrot.slane %v4561, 4
        %v4563 = vmax.f32 %v4561, %v4562
        %v4564 = vrot.slane %v4563, 2
        %v4565 = vmax.f32 %v4563, %v4564
        %v4566 = vrot.slane %v4565, 1
        %v4567 = vmax.f32 %v4565, %v4566
        %v4568 = vsel %vm247, %v3783, -inf
        %v4569 = vrot.slane %v4568, 4
        %v4570 = vmax.f32 %v4568, %v4569
        %v4571 = vrot.slane %v4570, 2
        %v4572 = vmax.f32 %v4570, %v4571
        %v4573 = vrot.slane %v4572, 1
        %v4574 = vmax.f32 %v4572, %v4573
        %v4575 = vsel %vm247, %v3782, -inf
        %v4576 = vrot.slane %v4575, 4
        %v4577 = vmax.f32 %v4575, %v4576
        %v4578 = vrot.slane %v4577, 2
        %v4579 = vmax.f32 %v4577, %v4578
        %v4580 = vrot.slane %v4579, 1
        %v4581 = vmax.f32 %v4579, %v4580
        %v4582 = vsel %vm247, %v3784, -inf
        %v4583 = vrot.slane %v4582, 4
        %v4584 = vmax.f32 %v4582, %v4583
        %v4585 = vrot.slane %v4584, 2
        %v4586 = vmax.f32 %v4584, %v4585
        %v4587 = vrot.slane %v4586, 1
        %v4588 = vmax.f32 %v4586, %v4587
        %v4589 = vsel %vm247, %v3792, -inf
        %v4590 = vrot.slane %v4589, 4
        %v4591 = vmax.f32 %v4589, %v4590
        %v4592 = vrot.slane %v4591, 2
        %v4593 = vmax.f32 %v4591, %v4592
        %v4594 = vrot.slane %v4593, 1
        %v4595 = vmax.f32 %v4593, %v4594
        %v4596 = vsel %vm247, %v3800, -inf
        %v4597 = vrot.slane %v4596, 4
        %v4598 = vmax.f32 %v4596, %v4597
        %v4599 = vrot.slane %v4598, 2
        %v4600 = vmax.f32 %v4598, %v4599
        %v4601 = vrot.slane %v4600, 1
        %v4602 = vmax.f32 %v4600, %v4601
        %v4603 = vsel %vm247, %v3799, -inf
        %v4604 = vrot.slane %v4603, 4
        %v4605 = vmax.f32 %v4603, %v4604
        %v4606 = vrot.slane %v4605, 2
        %v4607 = vmax.f32 %v4605, %v4606
        %v4608 = vrot.slane %v4607, 1
        %v4609 = vmax.f32 %v4607, %v4608
        %v4610 = vsel %vm247, %v3801, -inf
        %v4611 = vrot.slane %v4610, 4
        %v4612 = vmax.f32 %v4610, %v4611
        %v4613 = vrot.slane %v4612, 2
        %v4614 = vmax.f32 %v4612, %v4613
        %v4615 = vrot.slane %v4614, 1
        %v4616 = vmax.f32 %v4614, %v4615
        %v4617 = vsel %vm247, %v3809, -inf
        %v4618 = vrot.slane %v4617, 4
        %v4619 = vmax.f32 %v4617, %v4618
        %v4620 = vrot.slane %v4619, 2
        %v4621 = vmax.f32 %v4619, %v4620
        %v4622 = vrot.slane %v4621, 1
        %v4623 = vmax.f32 %v4621, %v4622
        %v4624 = vsel %vm247, %v3817, -inf
        %v4625 = vrot.slane %v4624, 4
        %v4626 = vmax.f32 %v4624, %v4625
        %v4627 = vrot.slane %v4626, 2
        %v4628 = vmax.f32 %v4626, %v4627
        %v4629 = vrot.slane %v4628, 1
        %v4630 = vmax.f32 %v4628, %v4629
        %v4631 = vsel %vm247, %v3816, -inf
        %v4632 = vrot.slane %v4631, 4
        %v4633 = vmax.f32 %v4631, %v4632
        %v4634 = vrot.slane %v4633, 2
        %v4635 = vmax.f32 %v4633, %v4634
        %v4636 = vrot.slane %v4635, 1
        %v4637 = vmax.f32 %v4635, %v4636
        %v4638 = vsel %vm247, %v3818, -inf
        %v4639 = vrot.slane %v4638, 4
        %v4640 = vmax.f32 %v4638, %v4639
        %v4641 = vrot.slane %v4640, 2
        %v4642 = vmax.f32 %v4640, %v4641
        %v4643 = vrot.slane %v4642, 1
        %v4644 = vmax.f32 %v4642, %v4643
        %v4645 = vsel %vm247, %v3826, -inf
        %v4646 = vrot.slane %v4645, 4
        %v4647 = vmax.f32 %v4645, %v4646
        %v4648 = vrot.slane %v4647, 2
        %v4649 = vmax.f32 %v4647, %v4648
        %v4650 = vrot.slane %v4649, 1
        %v4651 = vmax.f32 %v4649, %v4650
        %v4652 = vsel %vm247, %v3834, -inf
        %v4653 = vrot.slane %v4652, 4
        %v4654 = vmax.f32 %v4652, %v4653
        %v4655 = vrot.slane %v4654, 2
        %v4656 = vmax.f32 %v4654, %v4655
        %v4657 = vrot.slane %v4656, 1
        %v4658 = vmax.f32 %v4656, %v4657
        %v4659 = vsel %vm247, %v3833, -inf
        %v4660 = vrot.slane %v4659, 4
        %v4661 = vmax.f32 %v4659, %v4660
        %v4662 = vrot.slane %v4661, 2
        %v4663 = vmax.f32 %v4661, %v4662
        %v4664 = vrot.slane %v4663, 1
        %v4665 = vmax.f32 %v4663, %v4664
        %v4666 = vsel %vm247, %v3835, -inf
        %v4667 = vrot.slane %v4666, 4
        %v4668 = vmax.f32 %v4666, %v4667
        %v4669 = vrot.slane %v4668, 2
        %v4670 = vmax.f32 %v4668, %v4669
        %v4671 = vrot.slane %v4670, 1
        %v4672 = vmax.f32 %v4670, %v4671
        %v4673 = vsel %vm247, %v3843, -inf
        %v4674 = vrot.slane %v4673, 4
        %v4675 = vmax.f32 %v4673, %v4674
        %v4676 = vrot.slane %v4675, 2
        %v4677 = vmax.f32 %v4675, %v4676
        %v4678 = vrot.slane %v4677, 1
        %v4679 = vmax.f32 %v4677, %v4678
        %v4680 = vsel %vm247, %v3851, -inf
        %v4681 = vrot.slane %v4680, 4
        %v4682 = vmax.f32 %v4680, %v4681
        %v4683 = vrot.slane %v4682, 2
        %v4684 = vmax.f32 %v4682, %v4683
        %v4685 = vrot.slane %v4684, 1
        %v4686 = vmax.f32 %v4684, %v4685
        %v4687 = vsel %vm247, %v3850, -inf
        %v4688 = vrot.slane %v4687, 4
        %v4689 = vmax.f32 %v4687, %v4688
        %v4690 = vrot.slane %v4689, 2
        %v4691 = vmax.f32 %v4689, %v4690
        %v4692 = vrot.slane %v4691, 1
        %v4693 = vmax.f32 %v4691, %v4692
        %v4694 = vsel %vm247, %v3852, -inf
        %v4695 = vrot.slane %v4694, 4
        %v4696 = vmax.f32 %v4694, %v4695
        %v4697 = vrot.slane %v4696, 2
        %v4698 = vmax.f32 %v4696, %v4697
        %v4699 = vrot.slane %v4698, 1
        %v4700 = vmax.f32 %v4698, %v4699
        %v4701 = vsel %vm247, %v3860, -inf
        %v4702 = vrot.slane %v4701, 4
        %v4703 = vmax.f32 %v4701, %v4702
        %v4704 = vrot.slane %v4703, 2
        %v4705 = vmax.f32 %v4703, %v4704
        %v4706 = vrot.slane %v4705, 1
        %v4707 = vmax.f32 %v4705, %v4706
        %v4708 = vsel %vm247, %v3868, -inf
        %v4709 = vrot.slane %v4708, 4
        %v4710 = vmax.f32 %v4708, %v4709
        %v4711 = vrot.slane %v4710, 2
        %v4712 = vmax.f32 %v4710, %v4711
        %v4713 = vrot.slane %v4712, 1
        %v4714 = vmax.f32 %v4712, %v4713
        %v4715 = vsel %vm247, %v3867, -inf
        %v4716 = vrot.slane %v4715, 4
        %v4717 = vmax.f32 %v4715, %v4716
        %v4718 = vrot.slane %v4717, 2
        %v4719 = vmax.f32 %v4717, %v4718
        %v4720 = vrot.slane %v4719, 1
        %v4721 = vmax.f32 %v4719, %v4720
        %v4722 = vsel %vm247, %v3869, -inf
        %v4723 = vrot.slane %v4722, 4
        %v4724 = vmax.f32 %v4722, %v4723
        %v4725 = vrot.slane %v4724, 2
        %v4726 = vmax.f32 %v4724, %v4725
        %v4727 = vrot.slane %v4726, 1
        %v4728 = vmax.f32 %v4726, %v4727
        %v4729 = vsel %vm247, %v3877, -inf
        %v4730 = vrot.slane %v4729, 4
        %v4731 = vmax.f32 %v4729, %v4730
        %v4732 = vrot.slane %v4731, 2
        %v4733 = vmax.f32 %v4731, %v4732
        %v4734 = vrot.slane %v4733, 1
        %v4735 = vmax.f32 %v4733, %v4734
        %v4736 = vsel %vm247, %v3885, -inf
        %v4737 = vrot.slane %v4736, 4
        %v4738 = vmax.f32 %v4736, %v4737
        %v4739 = vrot.slane %v4738, 2
        %v4740 = vmax.f32 %v4738, %v4739
        %v4741 = vrot.slane %v4740, 1
        %v4742 = vmax.f32 %v4740, %v4741
        %v4743 = vsel %vm247, %v3884, -inf
        %v4744 = vrot.slane %v4743, 4
        %v4745 = vmax.f32 %v4743, %v4744
        %v4746 = vrot.slane %v4745, 2
        %v4747 = vmax.f32 %v4745, %v4746
        %v4748 = vrot.slane %v4747, 1
        %v4749 = vmax.f32 %v4747, %v4748
        %v4750 = vsel %vm247, %v3886, -inf
        %v4751 = vrot.slane %v4750, 4
        %v4752 = vmax.f32 %v4750, %v4751
        %v4753 = vrot.slane %v4752, 2
        %v4754 = vmax.f32 %v4752, %v4753
        %v4755 = vrot.slane %v4754, 1
        %v4756 = vmax.f32 %v4754, %v4755
        %v4757 = vsel %vm247, %v3894, -inf
        %v4758 = vrot.slane %v4757, 4
        %v4759 = vmax.f32 %v4757, %v4758
        %v4760 = vrot.slane %v4759, 2
        %v4761 = vmax.f32 %v4759, %v4760
        %v4762 = vrot.slane %v4761, 1
        %v4763 = vmax.f32 %v4761, %v4762
        %v4764 = vsel %vm247, %v3902, -inf
        %v4765 = vrot.slane %v4764, 4
        %v4766 = vmax.f32 %v4764, %v4765
        %v4767 = vrot.slane %v4766, 2
        %v4768 = vmax.f32 %v4766, %v4767
        %v4769 = vrot.slane %v4768, 1
        %v4770 = vmax.f32 %v4768, %v4769
        %v4771 = vsel %vm247, %v3901, -inf
        %v4772 = vrot.slane %v4771, 4
        %v4773 = vmax.f32 %v4771, %v4772
        %v4774 = vrot.slane %v4773, 2
        %v4775 = vmax.f32 %v4773, %v4774
        %v4776 = vrot.slane %v4775, 1
        %v4777 = vmax.f32 %v4775, %v4776
        %v4778 = vsel %vm247, %v3903, -inf
        %v4779 = vrot.slane %v4778, 4
        %v4780 = vmax.f32 %v4778, %v4779
        %v4781 = vrot.slane %v4780, 2
        %v4782 = vmax.f32 %v4780, %v4781
        %v4783 = vrot.slane %v4782, 1
        %v4784 = vmax.f32 %v4782, %v4783
        %v4785 = vsel %vm247, %v3911, -inf
        %v4786 = vrot.slane %v4785, 4
        %v4787 = vmax.f32 %v4785, %v4786
        %v4788 = vrot.slane %v4787, 2
        %v4789 = vmax.f32 %v4787, %v4788
        %v4790 = vrot.slane %v4789, 1
        %v4791 = vmax.f32 %v4789, %v4790
        %v4792 = vsel %vm247, %v3919, -inf
        %v4793 = vrot.slane %v4792, 4
        %v4794 = vmax.f32 %v4792, %v4793
        %v4795 = vrot.slane %v4794, 2
        %v4796 = vmax.f32 %v4794, %v4795
        %v4797 = vrot.slane %v4796, 1
        %v4798 = vmax.f32 %v4796, %v4797
        %v4799 = vsel %vm247, %v3918, -inf
        %v4800 = vrot.slane %v4799, 4
        %v4801 = vmax.f32 %v4799, %v4800
        %v4802 = vrot.slane %v4801, 2
        %v4803 = vmax.f32 %v4801, %v4802
        %v4804 = vrot.slane %v4803, 1
        %v4805 = vmax.f32 %v4803, %v4804
        %v4806 = vsel %vm247, %v3920, -inf
        %v4807 = vrot.slane %v4806, 4
        %v4808 = vmax.f32 %v4806, %v4807
        %v4809 = vrot.slane %v4808, 2
        %v4810 = vmax.f32 %v4808, %v4809
        %v4811 = vrot.slane %v4810, 1
        %v4812 = vmax.f32 %v4810, %v4811
        %v4813 = vsel %vm247, %v3928, -inf
        %v4814 = vrot.slane %v4813, 4
        %v4815 = vmax.f32 %v4813, %v4814
        %v4816 = vrot.slane %v4815, 2
        %v4817 = vmax.f32 %v4815, %v4816
        %v4818 = vrot.slane %v4817, 1
        %v4819 = vmax.f32 %v4817, %v4818
        %v4820 = vsel %vm247, %v3936, -inf
        %v4821 = vrot.slane %v4820, 4
        %v4822 = vmax.f32 %v4820, %v4821
        %v4823 = vrot.slane %v4822, 2
        %v4824 = vmax.f32 %v4822, %v4823
        %v4825 = vrot.slane %v4824, 1
        %v4826 = vmax.f32 %v4824, %v4825
        %v4827 = vsel %vm247, %v3935, -inf
        %v4828 = vrot.slane %v4827, 4
        %v4829 = vmax.f32 %v4827, %v4828
        %v4830 = vrot.slane %v4829, 2
        %v4831 = vmax.f32 %v4829, %v4830
        %v4832 = vrot.slane %v4831, 1
        %v4833 = vmax.f32 %v4831, %v4832
        %v4834 = vsel %vm247, %v3937, -inf
        %v4835 = vrot.slane %v4834, 4
        %v4836 = vmax.f32 %v4834, %v4835
        %v4837 = vrot.slane %v4836, 2
        %v4838 = vmax.f32 %v4836, %v4837
        %v4839 = vrot.slane %v4838, 1
        %v4840 = vmax.f32 %v4838, %v4839
        %v4841 = vsel %vm247, %v3945, -inf
        %v4842 = vrot.slane %v4841, 4
        %v4843 = vmax.f32 %v4841, %v4842
        %v4844 = vrot.slane %v4843, 2
        %v4845 = vmax.f32 %v4843, %v4844
        %v4846 = vrot.slane %v4845, 1
        %v4847 = vmax.f32 %v4845, %v4846
        %v4848 = vsel %vm247, %v3953, -inf
        %v4849 = vrot.slane %v4848, 4
        %v4850 = vmax.f32 %v4848, %v4849
        %v4851 = vrot.slane %v4850, 2
        %v4852 = vmax.f32 %v4850, %v4851
        %v4853 = vrot.slane %v4852, 1
        %v4854 = vmax.f32 %v4852, %v4853
        %v4855 = vsel %vm247, %v3952, -inf
        %v4856 = vrot.slane %v4855, 4
        %v4857 = vmax.f32 %v4855, %v4856
        %v4858 = vrot.slane %v4857, 2
        %v4859 = vmax.f32 %v4857, %v4858
        %v4860 = vrot.slane %v4859, 1
        %v4861 = vmax.f32 %v4859, %v4860
        %v4862 = vsel %vm247, %v3954, -inf
        %v4863 = vrot.slane %v4862, 4
        %v4864 = vmax.f32 %v4862, %v4863
        %v4865 = vrot.slane %v4864, 2
        %v4866 = vmax.f32 %v4864, %v4865
        %v4867 = vrot.slane %v4866, 1
        %v4868 = vmax.f32 %v4866, %v4867
        %v4869 = vsel %vm247, %v3962, -inf
        %v4870 = vrot.slane %v4869, 4
        %v4871 = vmax.f32 %v4869, %v4870
        %v4872 = vrot.slane %v4871, 2
        %v4873 = vmax.f32 %v4871, %v4872
        %v4874 = vrot.slane %v4873, 1
        %v4875 = vmax.f32 %v4873, %v4874
        %v4876 = vsel %vm247, %v3970, -inf
        %v4877 = vrot.slane %v4876, 4
        %v4878 = vmax.f32 %v4876, %v4877
        %v4879 = vrot.slane %v4878, 2
        %v4880 = vmax.f32 %v4878, %v4879
        %v4881 = vrot.slane %v4880, 1
        %v4882 = vmax.f32 %v4880, %v4881
        %v4883 = vsel %vm247, %v3969, -inf
        %v4884 = vrot.slane %v4883, 4
        %v4885 = vmax.f32 %v4883, %v4884
        %v4886 = vrot.slane %v4885, 2
        %v4887 = vmax.f32 %v4885, %v4886
        %v4888 = vrot.slane %v4887, 1
        %v4889 = vmax.f32 %v4887, %v4888
        %v4890 = vsel %vm247, %v3971, -inf
        %v4891 = vrot.slane %v4890, 4
        %v4892 = vmax.f32 %v4890, %v4891
        %v4893 = vrot.slane %v4892, 2
        %v4894 = vmax.f32 %v4892, %v4893
        %v4895 = vrot.slane %v4894, 1
        %v4896 = vmax.f32 %v4894, %v4895
        %v4897 = vsel %vm247, %v3979, -inf
        %v4898 = vrot.slane %v4897, 4
        %v4899 = vmax.f32 %v4897, %v4898
        %v4900 = vrot.slane %v4899, 2
        %v4901 = vmax.f32 %v4899, %v4900
        %v4902 = vrot.slane %v4901, 1
        %v4903 = vmax.f32 %v4901, %v4902
        %v4904 = vsel %vm247, %v3987, -inf
        %v4905 = vrot.slane %v4904, 4
        %v4906 = vmax.f32 %v4904, %v4905
        %v4907 = vrot.slane %v4906, 2
        %v4908 = vmax.f32 %v4906, %v4907
        %v4909 = vrot.slane %v4908, 1
        %v4910 = vmax.f32 %v4908, %v4909
        %v4911 = vsel %vm247, %v3986, -inf
        %v4912 = vrot.slane %v4911, 4
        %v4913 = vmax.f32 %v4911, %v4912
        %v4914 = vrot.slane %v4913, 2
        %v4915 = vmax.f32 %v4913, %v4914
        %v4916 = vrot.slane %v4915, 1
        %v4917 = vmax.f32 %v4915, %v4916
        %v4918 = vsel %vm247, %v3988, -inf
        %v4919 = vrot.slane %v4918, 4
        %v4920 = vmax.f32 %v4918, %v4919
        %v4921 = vrot.slane %v4920, 2
        %v4922 = vmax.f32 %v4920, %v4921
        %v4923 = vrot.slane %v4922, 1
        %v4924 = vmax.f32 %v4922, %v4923
        %v4925 = vsel %vm247, %v3996, -inf
        %v4926 = vrot.slane %v4925, 4
        %v4927 = vmax.f32 %v4925, %v4926
        %v4928 = vrot.slane %v4927, 2
        %v4929 = vmax.f32 %v4927, %v4928
        %v4930 = vrot.slane %v4929, 1
        %v4931 = vmax.f32 %v4929, %v4930
        %v4932 = vsel %vm247, %v4004, -inf
        %v4933 = vrot.slane %v4932, 4
        %v4934 = vmax.f32 %v4932, %v4933
        %v4935 = vrot.slane %v4934, 2
        %v4936 = vmax.f32 %v4934, %v4935
        %v4937 = vrot.slane %v4936, 1
        %v4938 = vmax.f32 %v4936, %v4937
        %v4939 = vsel %vm247, %v4003, -inf
        %v4940 = vrot.slane %v4939, 4
        %v4941 = vmax.f32 %v4939, %v4940
        %v4942 = vrot.slane %v4941, 2
        %v4943 = vmax.f32 %v4941, %v4942
        %v4944 = vrot.slane %v4943, 1
        %v4945 = vmax.f32 %v4943, %v4944
        %v4946 = vsel %vm247, %v4005, -inf
        %v4947 = vrot.slane %v4946, 4
        %v4948 = vmax.f32 %v4946, %v4947
        %v4949 = vrot.slane %v4948, 2
        %v4950 = vmax.f32 %v4948, %v4949
        %v4951 = vrot.slane %v4950, 1
        %v4952 = vmax.f32 %v4950, %v4951
        %v4953 = vsel %vm247, %v4013, -inf
        %v4954 = vrot.slane %v4953, 4
        %v4955 = vmax.f32 %v4953, %v4954
        %v4956 = vrot.slane %v4955, 2
        %v4957 = vmax.f32 %v4955, %v4956
        %v4958 = vrot.slane %v4957, 1
        %v4959 = vmax.f32 %v4957, %v4958
        %v4960 = vsel %vm247, %v4021, -inf
        %v4961 = vrot.slane %v4960, 4
        %v4962 = vmax.f32 %v4960, %v4961
        %v4963 = vrot.slane %v4962, 2
        %v4964 = vmax.f32 %v4962, %v4963
        %v4965 = vrot.slane %v4964, 1
        %v4966 = vmax.f32 %v4964, %v4965
        %v4967 = vsel %vm247, %v4020, -inf
        %v4968 = vrot.slane %v4967, 4
        %v4969 = vmax.f32 %v4967, %v4968
        %v4970 = vrot.slane %v4969, 2
        %v4971 = vmax.f32 %v4969, %v4970
        %v4972 = vrot.slane %v4971, 1
        %v4973 = vmax.f32 %v4971, %v4972
        %v4974 = vsel %vm247, %v4022, -inf
        %v4975 = vrot.slane %v4974, 4
        %v4976 = vmax.f32 %v4974, %v4975
        %v4977 = vrot.slane %v4976, 2
        %v4978 = vmax.f32 %v4976, %v4977
        %v4979 = vrot.slane %v4978, 1
        %v4980 = vmax.f32 %v4978, %v4979
        %v4981 = vsel %vm247, %v4030, -inf
        %v4982 = vrot.slane %v4981, 4
        %v4983 = vmax.f32 %v4981, %v4982
        %v4984 = vrot.slane %v4983, 2
        %v4985 = vmax.f32 %v4983, %v4984
        %v4986 = vrot.slane %v4985, 1
        %v4987 = vmax.f32 %v4985, %v4986
        %v4988 = vsel %vm247, %v4038, -inf
        %v4989 = vrot.slane %v4988, 4
        %v4990 = vmax.f32 %v4988, %v4989
        %v4991 = vrot.slane %v4990, 2
        %v4992 = vmax.f32 %v4990, %v4991
        %v4993 = vrot.slane %v4992, 1
        %v4994 = vmax.f32 %v4992, %v4993
        %v4995 = vsel %vm247, %v4037, -inf
        %v4996 = vrot.slane %v4995, 4
        %v4997 = vmax.f32 %v4995, %v4996
        %v4998 = vrot.slane %v4997, 2
        %v4999 = vmax.f32 %v4997, %v4998
        %v5000 = vrot.slane %v4999, 1
        %v5001 = vmax.f32 %v4999, %v5000
        %v5002 = vsel %vm247, %v4039, -inf
        %v5003 = vrot.slane %v5002, 4
        %v5004 = vmax.f32 %v5002, %v5003
        %v5005 = vrot.slane %v5004, 2
        %v5006 = vmax.f32 %v5004, %v5005
        %v5007 = vrot.slane %v5006, 1
        %v5008 = vmax.f32 %v5006, %v5007
        %v5009 = vsel %vm247, %v4047, -inf
        %v5010 = vrot.slane %v5009, 4
        %v5011 = vmax.f32 %v5009, %v5010
        %v5012 = vrot.slane %v5011, 2
        %v5013 = vmax.f32 %v5011, %v5012
        %v5014 = vrot.slane %v5013, 1
        %v5015 = vmax.f32 %v5013, %v5014
        %v5016 = vsel %vm247, %v4055, -inf
        %v5017 = vrot.slane %v5016, 4
        %v5018 = vmax.f32 %v5016, %v5017
        %v5019 = vrot.slane %v5018, 2
        %v5020 = vmax.f32 %v5018, %v5019
        %v5021 = vrot.slane %v5020, 1
        %v5022 = vmax.f32 %v5020, %v5021
        %v5023 = vsel %vm247, %v4054, -inf
        %v5024 = vrot.slane %v5023, 4
        %v5025 = vmax.f32 %v5023, %v5024
        %v5026 = vrot.slane %v5025, 2
        %v5027 = vmax.f32 %v5025, %v5026
        %v5028 = vrot.slane %v5027, 1
        %v5029 = vmax.f32 %v5027, %v5028
        %v5030 = vsel %vm247, %v4056, -inf
        %v5031 = vrot.slane %v5030, 4
        %v5032 = vmax.f32 %v5030, %v5031
        %v5033 = vrot.slane %v5032, 2
        %v5034 = vmax.f32 %v5032, %v5033
        %v5035 = vrot.slane %v5034, 1
        %v5036 = vmax.f32 %v5034, %v5035
        %v5037 = vsel %vm247, %v4064, -inf
        %v5038 = vrot.slane %v5037, 4
        %v5039 = vmax.f32 %v5037, %v5038
        %v5040 = vrot.slane %v5039, 2
        %v5041 = vmax.f32 %v5039, %v5040
        %v5042 = vrot.slane %v5041, 1
        %v5043 = vmax.f32 %v5041, %v5042
        %v5044 = vsel %vm247, %v4072, -inf
        %v5045 = vrot.slane %v5044, 4
        %v5046 = vmax.f32 %v5044, %v5045
        %v5047 = vrot.slane %v5046, 2
        %v5048 = vmax.f32 %v5046, %v5047
        %v5049 = vrot.slane %v5048, 1
        %v5050 = vmax.f32 %v5048, %v5049
        %v5051 = vsel %vm247, %v4071, -inf
        %v5052 = vrot.slane %v5051, 4
        %v5053 = vmax.f32 %v5051, %v5052
        %v5054 = vrot.slane %v5053, 2
        %v5055 = vmax.f32 %v5053, %v5054
        %v5056 = vrot.slane %v5055, 1
        %v5057 = vmax.f32 %v5055, %v5056
        %v5058 = vsel %vm247, %v4073, -inf
        %v5059 = vrot.slane %v5058, 4
        %v5060 = vmax.f32 %v5058, %v5059
        %v5061 = vrot.slane %v5060, 2
        %v5062 = vmax.f32 %v5060, %v5061
        %v5063 = vrot.slane %v5062, 1
        %v5064 = vmax.f32 %v5062, %v5063
        %v5065 = vsel %vm247, %v4081, -inf
        %v5066 = vrot.slane %v5065, 4
        %v5067 = vmax.f32 %v5065, %v5066
        %v5068 = vrot.slane %v5067, 2
        %v5069 = vmax.f32 %v5067, %v5068
        %v5070 = vrot.slane %v5069, 1
        %v5071 = vmax.f32 %v5069, %v5070
        %v5072 = vsel %vm247, %v4089, -inf
        %v5073 = vrot.slane %v5072, 4
        %v5074 = vmax.f32 %v5072, %v5073
        %v5075 = vrot.slane %v5074, 2
        %v5076 = vmax.f32 %v5074, %v5075
        %v5077 = vrot.slane %v5076, 1
        %v5078 = vmax.f32 %v5076, %v5077
        %v5079 = vsel %vm247, %v4088, -inf
        %v5080 = vrot.slane %v5079, 4
        %v5081 = vmax.f32 %v5079, %v5080
        %v5082 = vrot.slane %v5081, 2
        %v5083 = vmax.f32 %v5081, %v5082
        %v5084 = vrot.slane %v5083, 1
        %v5085 = vmax.f32 %v5083, %v5084
        %v5086 = vsel %vm247, %v4090, -inf
        %v5087 = vrot.slane %v5086, 4
        %v5088 = vmax.f32 %v5086, %v5087
        %v5089 = vrot.slane %v5088, 2
        %v5090 = vmax.f32 %v5088, %v5089
        %v5091 = vrot.slane %v5090, 1
        %v5092 = vmax.f32 %v5090, %v5091
        %v5093 = vsel %vm247, %v4098, -inf
        %v5094 = vrot.slane %v5093, 4
        %v5095 = vmax.f32 %v5093, %v5094
        %v5096 = vrot.slane %v5095, 2
        %v5097 = vmax.f32 %v5095, %v5096
        %v5098 = vrot.slane %v5097, 1
        %v5099 = vmax.f32 %v5097, %v5098
        %v5100 = vsel %vm247, %v4106, -inf
        %v5101 = vrot.slane %v5100, 4
        %v5102 = vmax.f32 %v5100, %v5101
        %v5103 = vrot.slane %v5102, 2
        %v5104 = vmax.f32 %v5102, %v5103
        %v5105 = vrot.slane %v5104, 1
        %v5106 = vmax.f32 %v5104, %v5105
        %v5107 = vsel %vm247, %v4105, -inf
        %v5108 = vrot.slane %v5107, 4
        %v5109 = vmax.f32 %v5107, %v5108
        %v5110 = vrot.slane %v5109, 2
        %v5111 = vmax.f32 %v5109, %v5110
        %v5112 = vrot.slane %v5111, 1
        %v5113 = vmax.f32 %v5111, %v5112
        %v5114 = vsel %vm247, %v4107, -inf
        %v5115 = vrot.slane %v5114, 4
        %v5116 = vmax.f32 %v5114, %v5115
        %v5117 = vrot.slane %v5116, 2
        %v5118 = vmax.f32 %v5116, %v5117
        %v5119 = vrot.slane %v5118, 1
        %v5120 = vmax.f32 %v5118, %v5119
        %v5121 = vsel %vm247, %v4115, -inf
        %v5122 = vrot.slane %v5121, 4
        %v5123 = vmax.f32 %v5121, %v5122
        %v5124 = vrot.slane %v5123, 2
        %v5125 = vmax.f32 %v5123, %v5124
        %v5126 = vrot.slane %v5125, 1
        %v5127 = vmax.f32 %v5125, %v5126
        %v5128 = vsel %vm247, %v4123, -inf
        %v5129 = vrot.slane %v5128, 4
        %v5130 = vmax.f32 %v5128, %v5129
        %v5131 = vrot.slane %v5130, 2
        %v5132 = vmax.f32 %v5130, %v5131
        %v5133 = vrot.slane %v5132, 1
        %v5134 = vmax.f32 %v5132, %v5133
        %v5135 = vsel %vm247, %v4122, -inf
        %v5136 = vrot.slane %v5135, 4
        %v5137 = vmax.f32 %v5135, %v5136
        %v5138 = vrot.slane %v5137, 2
        %v5139 = vmax.f32 %v5137, %v5138
        %v5140 = vrot.slane %v5139, 1
        %v5141 = vmax.f32 %v5139, %v5140
        %v5142 = vsel %vm247, %v4124, -inf
        %v5143 = vrot.slane %v5142, 4
        %v5144 = vmax.f32 %v5142, %v5143
        %v5145 = vrot.slane %v5144, 2
        %v5146 = vmax.f32 %v5144, %v5145
        %v5147 = vrot.slane %v5146, 1
        %v5148 = vmax.f32 %v5146, %v5147
        %v5149 = vsel %vm244, %v4259, -inf
        %v5150 = vsel %vm244, %v4315, -inf
        %v5151 = vmax.f32 %v5149, %v5150
        %v5152 = vsel %vm244, %v4266, -inf
        %v5153 = vsel %vm244, %v4322, -inf
        %v5154 = vmax.f32 %v5152, %v5153
        %v5155 = vsel %vm244, %v4273, -inf
        %v5156 = vsel %vm244, %v4329, -inf
        %v5157 = vmax.f32 %v5155, %v5156
        %v5158 = vsel %vm244, %v4280, -inf
        %v5159 = vsel %vm244, %v4336, -inf
        %v5160 = vmax.f32 %v5158, %v5159
        %v5161 = vsel %vm244, %v4287, -inf
        %v5162 = vsel %vm244, %v4343, -inf
        %v5163 = vmax.f32 %v5161, %v5162
        %v5164 = vsel %vm244, %v4294, -inf
        %v5165 = vsel %vm244, %v4350, -inf
        %v5166 = vmax.f32 %v5164, %v5165
        %v5167 = vsel %vm244, %v4301, -inf
        %v5168 = vsel %vm244, %v4357, -inf
        %v5169 = vmax.f32 %v5167, %v5168
        %v5170 = vsel %vm244, %v4308, -inf
        %v5171 = vsel %vm244, %v4364, -inf
        %v5172 = vmax.f32 %v5170, %v5171
        %v5173 = vsel %vm244, %v4371, -inf
        %v5174 = vsel %vm244, %v4427, -inf
        %v5175 = vmax.f32 %v5173, %v5174
        %v5176 = vsel %vm244, %v4378, -inf
        %v5177 = vsel %vm244, %v4434, -inf
        %v5178 = vmax.f32 %v5176, %v5177
        %v5179 = vsel %vm244, %v4385, -inf
        %v5180 = vsel %vm244, %v4441, -inf
        %v5181 = vmax.f32 %v5179, %v5180
        %v5182 = vsel %vm244, %v4392, -inf
        %v5183 = vsel %vm244, %v4448, -inf
        %v5184 = vmax.f32 %v5182, %v5183
        %v5185 = vsel %vm244, %v4399, -inf
        %v5186 = vsel %vm244, %v4455, -inf
        %v5187 = vmax.f32 %v5185, %v5186
        %v5188 = vsel %vm244, %v4406, -inf
        %v5189 = vsel %vm244, %v4462, -inf
        %v5190 = vmax.f32 %v5188, %v5189
        %v5191 = vsel %vm244, %v4413, -inf
        %v5192 = vsel %vm244, %v4469, -inf
        %v5193 = vmax.f32 %v5191, %v5192
        %v5194 = vsel %vm244, %v4420, -inf
        %v5195 = vsel %vm244, %v4476, -inf
        %v5196 = vmax.f32 %v5194, %v5195
        %v5197 = vsel %vm244, %v4483, -inf
        %v5198 = vsel %vm244, %v4539, -inf
        %v5199 = vmax.f32 %v5197, %v5198
        %v5200 = vsel %vm244, %v4490, -inf
        %v5201 = vsel %vm244, %v4546, -inf
        %v5202 = vmax.f32 %v5200, %v5201
        %v5203 = vsel %vm244, %v4497, -inf
        %v5204 = vsel %vm244, %v4553, -inf
        %v5205 = vmax.f32 %v5203, %v5204
        %v5206 = vsel %vm244, %v4504, -inf
        %v5207 = vsel %vm244, %v4560, -inf
        %v5208 = vmax.f32 %v5206, %v5207
        %v5209 = vsel %vm244, %v4511, -inf
        %v5210 = vsel %vm244, %v4567, -inf
        %v5211 = vmax.f32 %v5209, %v5210
        %v5212 = vsel %vm244, %v4518, -inf
        %v5213 = vsel %vm244, %v4574, -inf
        %v5214 = vmax.f32 %v5212, %v5213
        %v5215 = vsel %vm244, %v4525, -inf
        %v5216 = vsel %vm244, %v4581, -inf
        %v5217 = vmax.f32 %v5215, %v5216
        %v5218 = vsel %vm244, %v4532, -inf
        %v5219 = vsel %vm244, %v4588, -inf
        %v5220 = vmax.f32 %v5218, %v5219
        %v5221 = vsel %vm244, %v4595, -inf
        %v5222 = vsel %vm244, %v4651, -inf
        %v5223 = vmax.f32 %v5221, %v5222
        %v5224 = vsel %vm244, %v4602, -inf
        %v5225 = vsel %vm244, %v4658, -inf
        %v5226 = vmax.f32 %v5224, %v5225
        %v5227 = vsel %vm244, %v4609, -inf
        %v5228 = vsel %vm244, %v4665, -inf
        %v5229 = vmax.f32 %v5227, %v5228
        %v5230 = vsel %vm244, %v4616, -inf
        %v5231 = vsel %vm244, %v4672, -inf
        %v5232 = vmax.f32 %v5230, %v5231
        %v5233 = vsel %vm244, %v4623, -inf
        %v5234 = vsel %vm244, %v4679, -inf
        %v5235 = vmax.f32 %v5233, %v5234
        %v5236 = vsel %vm244, %v4630, -inf
        %v5237 = vsel %vm244, %v4686, -inf
        %v5238 = vmax.f32 %v5236, %v5237
        %v5239 = vsel %vm244, %v4637, -inf
        %v5240 = vsel %vm244, %v4693, -inf
        %v5241 = vmax.f32 %v5239, %v5240
        %v5242 = vsel %vm244, %v4644, -inf
        %v5243 = vsel %vm244, %v4700, -inf
        %v5244 = vmax.f32 %v5242, %v5243
        %v5245 = vsel %vm244, %v4707, -inf
        %v5246 = vsel %vm244, %v4763, -inf
        %v5247 = vmax.f32 %v5245, %v5246
        %v5248 = vsel %vm244, %v4714, -inf
        %v5249 = vsel %vm244, %v4770, -inf
        %v5250 = vmax.f32 %v5248, %v5249
        %v5251 = vsel %vm244, %v4721, -inf
        %v5252 = vsel %vm244, %v4777, -inf
        %v5253 = vmax.f32 %v5251, %v5252
        %v5254 = vsel %vm244, %v4728, -inf
        %v5255 = vsel %vm244, %v4784, -inf
        %v5256 = vmax.f32 %v5254, %v5255
        %v5257 = vsel %vm244, %v4735, -inf
        %v5258 = vsel %vm244, %v4791, -inf
        %v5259 = vmax.f32 %v5257, %v5258
        %v5260 = vsel %vm244, %v4742, -inf
        %v5261 = vsel %vm244, %v4798, -inf
        %v5262 = vmax.f32 %v5260, %v5261
        %v5263 = vsel %vm244, %v4749, -inf
        %v5264 = vsel %vm244, %v4805, -inf
        %v5265 = vmax.f32 %v5263, %v5264
        %v5266 = vsel %vm244, %v4756, -inf
        %v5267 = vsel %vm244, %v4812, -inf
        %v5268 = vmax.f32 %v5266, %v5267
        %v5269 = vsel %vm244, %v4819, -inf
        %v5270 = vsel %vm244, %v4875, -inf
        %v5271 = vmax.f32 %v5269, %v5270
        %v5272 = vsel %vm244, %v4826, -inf
        %v5273 = vsel %vm244, %v4882, -inf
        %v5274 = vmax.f32 %v5272, %v5273
        %v5275 = vsel %vm244, %v4833, -inf
        %v5276 = vsel %vm244, %v4889, -inf
        %v5277 = vmax.f32 %v5275, %v5276
        %v5278 = vsel %vm244, %v4840, -inf
        %v5279 = vsel %vm244, %v4896, -inf
        %v5280 = vmax.f32 %v5278, %v5279
        %v5281 = vsel %vm244, %v4847, -inf
        %v5282 = vsel %vm244, %v4903, -inf
        %v5283 = vmax.f32 %v5281, %v5282
        %v5284 = vsel %vm244, %v4854, -inf
        %v5285 = vsel %vm244, %v4910, -inf
        %v5286 = vmax.f32 %v5284, %v5285
        %v5287 = vsel %vm244, %v4861, -inf
        %v5288 = vsel %vm244, %v4917, -inf
        %v5289 = vmax.f32 %v5287, %v5288
        %v5290 = vsel %vm244, %v4868, -inf
        %v5291 = vsel %vm244, %v4924, -inf
        %v5292 = vmax.f32 %v5290, %v5291
        %v5293 = vsel %vm244, %v4931, -inf
        %v5294 = vsel %vm244, %v4987, -inf
        %v5295 = vmax.f32 %v5293, %v5294
        %v5296 = vsel %vm244, %v4938, -inf
        %v5297 = vsel %vm244, %v4994, -inf
        %v5298 = vmax.f32 %v5296, %v5297
        %v5299 = vsel %vm244, %v4945, -inf
        %v5300 = vsel %vm244, %v5001, -inf
        %v5301 = vmax.f32 %v5299, %v5300
        %v5302 = vsel %vm244, %v4952, -inf
        %v5303 = vsel %vm244, %v5008, -inf
        %v5304 = vmax.f32 %v5302, %v5303
        %v5305 = vsel %vm244, %v4959, -inf
        %v5306 = vsel %vm244, %v5015, -inf
        %v5307 = vmax.f32 %v5305, %v5306
        %v5308 = vsel %vm244, %v4966, -inf
        %v5309 = vsel %vm244, %v5022, -inf
        %v5310 = vmax.f32 %v5308, %v5309
        %v5311 = vsel %vm244, %v4973, -inf
        %v5312 = vsel %vm244, %v5029, -inf
        %v5313 = vmax.f32 %v5311, %v5312
        %v5314 = vsel %vm244, %v4980, -inf
        %v5315 = vsel %vm244, %v5036, -inf
        %v5316 = vmax.f32 %v5314, %v5315
        %v5317 = vsel %vm244, %v5043, -inf
        %v5318 = vsel %vm244, %v5099, -inf
        %v5319 = vmax.f32 %v5317, %v5318
        %v5320 = vsel %vm244, %v5050, -inf
        %v5321 = vsel %vm244, %v5106, -inf
        %v5322 = vmax.f32 %v5320, %v5321
        %v5323 = vsel %vm244, %v5057, -inf
        %v5324 = vsel %vm244, %v5113, -inf
        %v5325 = vmax.f32 %v5323, %v5324
        %v5326 = vsel %vm244, %v5064, -inf
        %v5327 = vsel %vm244, %v5120, -inf
        %v5328 = vmax.f32 %v5326, %v5327
        %v5329 = vsel %vm244, %v5071, -inf
        %v5330 = vsel %vm244, %v5127, -inf
        %v5331 = vmax.f32 %v5329, %v5330
        %v5332 = vsel %vm244, %v5078, -inf
        %v5333 = vsel %vm244, %v5134, -inf
        %v5334 = vmax.f32 %v5332, %v5333
        %v5335 = vsel %vm244, %v5085, -inf
        %v5336 = vsel %vm244, %v5141, -inf
        %v5337 = vmax.f32 %v5335, %v5336
        %v5338 = vsel %vm244, %v5092, -inf
        %v5339 = vsel %vm244, %v5148, -inf
        %v5340 = vmax.f32 %v5338, %v5339
        %vm5405 = vcmask 1041409
        %v5406 = vsel %vm5405, %v5154, %v5151
        %vm5407 = vcmask 1042434
        %v5408 = vsel %vm5407, %v5157, %v5406
        %vm5409 = vcmask 1043459
        %v5410 = vsel %vm5409, %v5160, %v5408
        %vm5411 = vcmask 1044484
        %v5412 = vsel %vm5411, %v5163, %v5410
        %vm5413 = vcmask 1045509
        %v5414 = vsel %vm5413, %v5166, %v5412
        %vm5415 = vcmask 1046534
        %v5416 = vsel %vm5415, %v5169, %v5414
        %vm5417 = vcmask 1047559
        %v5418 = vsel %vm5417, %v5172, %v5416
        %v5419 = vsel %vm5405, %v5178, %v5175
        %v5420 = vsel %vm5407, %v5181, %v5419
        %v5421 = vsel %vm5409, %v5184, %v5420
        %v5422 = vsel %vm5411, %v5187, %v5421
        %v5423 = vsel %vm5413, %v5190, %v5422
        %v5424 = vsel %vm5415, %v5193, %v5423
        %v5425 = vsel %vm5417, %v5196, %v5424
        %v5426 = vsel %vm5405, %v5202, %v5199
        %v5427 = vsel %vm5407, %v5205, %v5426
        %v5428 = vsel %vm5409, %v5208, %v5427
        %v5429 = vsel %vm5411, %v5211, %v5428
        %v5430 = vsel %vm5413, %v5214, %v5429
        %v5431 = vsel %vm5415, %v5217, %v5430
        %v5432 = vsel %vm5417, %v5220, %v5431
        %v5433 = vsel %vm5405, %v5226, %v5223
        %v5434 = vsel %vm5407, %v5229, %v5433
        %v5435 = vsel %vm5409, %v5232, %v5434
        %v5436 = vsel %vm5411, %v5235, %v5435
        %v5437 = vsel %vm5413, %v5238, %v5436
        %v5438 = vsel %vm5415, %v5241, %v5437
        %v5439 = vsel %vm5417, %v5244, %v5438
        %v5440 = vsel %vm5405, %v5250, %v5247
        %v5441 = vsel %vm5407, %v5253, %v5440
        %v5442 = vsel %vm5409, %v5256, %v5441
        %v5443 = vsel %vm5411, %v5259, %v5442
        %v5444 = vsel %vm5413, %v5262, %v5443
        %v5445 = vsel %vm5415, %v5265, %v5444
        %v5446 = vsel %vm5417, %v5268, %v5445
        %v5447 = vsel %vm5405, %v5274, %v5271
        %v5448 = vsel %vm5407, %v5277, %v5447
        %v5449 = vsel %vm5409, %v5280, %v5448
        %v5450 = vsel %vm5411, %v5283, %v5449
        %v5451 = vsel %vm5413, %v5286, %v5450
        %v5452 = vsel %vm5415, %v5289, %v5451
        %v5453 = vsel %vm5417, %v5292, %v5452
        %v5454 = vsel %vm5405, %v5298, %v5295
        %v5455 = vsel %vm5407, %v5301, %v5454
        %v5456 = vsel %vm5409, %v5304, %v5455
        %v5457 = vsel %vm5411, %v5307, %v5456
        %v5458 = vsel %vm5413, %v5310, %v5457
        %v5459 = vsel %vm5415, %v5313, %v5458
        %v5460 = vsel %vm5417, %v5316, %v5459
        %v5461 = vsel %vm5405, %v5322, %v5319
        %v5462 = vsel %vm5407, %v5325, %v5461
        %v5463 = vsel %vm5409, %v5328, %v5462
        %v5464 = vsel %vm5411, %v5331, %v5463
        %v5465 = vsel %vm5413, %v5334, %v5464
        %v5466 = vsel %vm5415, %v5337, %v5465
        %v5467 = vsel %vm5417, %v5340, %v5466
        %5476 = vst.msk [vmem:[%s242] sm:$0xff] %vm244, %v5418
        %5477 = vst.msk [vmem:[%s242 + $0x8] sm:$0xff] %vm244, %v5425
        %5478 = vst.msk [vmem:[%s242 + $0x10] sm:$0xff] %vm244, %v5432
        %5479 = vst.msk [vmem:[%s242 + $0x18] sm:$0xff] %vm244, %v5439
        %5480 = vst.msk [vmem:[%s242 + $0x20] sm:$0xff] %vm244, %v5446
        %5481 = vst.msk [vmem:[%s242 + $0x28] sm:$0xff] %vm244, %v5453
        %5482 = vst.msk [vmem:[%s242 + $0x30] sm:$0xff] %vm244, %v5460
        %5483 = vst.msk [vmem:[%s242 + $0x38] sm:$0xff] %vm244, %v5467
        %s5484 = sand.u32 %s140, 1
        %s5485 = scalar_lea.sflag [#allocation5], %s5484
        %s5486 = sand.u32 %s140, 1
        %s5487 = smul.addr %s5486, 64
        %s5488 = scalar_lea.vmem [#allocation6], %s5487
        // Predicated region
        $region45: #{tpu_custom_call.1} parent=39 // pred_check
          %p5489 = pneg %p150
        $region46: #{tpu_custom_call.1} parent=39 // pred_check_branch
          %5491 = sbr.rel (%p5489) target = $region48
        $region47: #{tpu_custom_call.1} parent=39 // pred_region
          %s5493 = ssub.s32 1024, 1024
          %5494 = vsyncadd %s5485, %s5493
          %s5495 = smul.addr %s22, 8
          %s5496 = smul.addr %s5495, 128
          %s5497 = scalar_lea.hbm %s5, %s5496
          %s5498 = sshll.u32 %s5488, 4
          %s5499 = int_to_ptr.vmem [resolvable:$true] %s5498
          %5504 = dma.vmem_to_hbm [thread:$0]  %s5499, 1024, %s5497, %s5485, 128, 128, 8
        $region48: #{tpu_custom_call.1} parent=39 // pred_fallthru
          _
      $region40: #{tpu_custom_call.1} parent=5 // pred_fallthru
        _
      %p5505 = scmp.le.s32.totalorder 2, %s17
      // Predicated region
      $region49: #{tpu_custom_call.1} parent=5 // pred_check
        %p5506 = pneg %p5505
      $region50: #{tpu_custom_call.1} parent=5 // pred_check_branch
        %5508 = sbr.rel (%p5506) target = $region52
      $region51: #{tpu_custom_call.1} parent=5 // pred_region
        %s5509 = ssub.s32 %s17, 2
        // Predicated region
        $region53: #{tpu_custom_call.1} parent=51 // pred_check
          %p5510 = pneg %p156
        $region54: #{tpu_custom_call.1} parent=51 // pred_check_branch
          %5512 = sbr.rel (%p5510) target = $region56
        $region55: #{tpu_custom_call.1} parent=51 // pred_region
          %s5513 = sand.u32 %s141, 1
          %s5514 = scalar_lea.sflag [#allocation5], %s5513
          %s5515 = sand.u32 %s141, 1
          %s5516 = smul.addr %s5515, 64
          %s5517 = scalar_lea.vmem [#allocation6], %s5516
          %5518 = dma.done %s5514, 1024
        $region56: #{tpu_custom_call.1} parent=51 // pred_fallthru
          _
      $region52: #{tpu_custom_call.1} parent=5 // pred_fallthru
        _
    $region6: #{tpu_custom_call.1} parent=1 // loop_footer
      %s21 = sadd.s32 1, %s17
    $region7: #{tpu_custom_call.1} parent=1 // loop_footer_branch
      %16 = sbr.rel target = $region3
    $region8: #{tpu_custom_call.1} parent=1 // loop_exit
      _
    %5519 = vsyncpa [#allocation4], 1
    %s5520 = scalar_lea.sflag [#allocation4], 1
    %5521 = vsyncpa %s5520, 1
    %5522 = vsyncpa [#allocation5], 1
    %s5523 = scalar_lea.sflag [#allocation5], 1
    %5524 = vsyncpa %s5523, 1

</llo_original>
